<compile_context>
chip_gen: v7x
topology: tpu7x:2x2x1
jax: 0.10.0
libtpu: 0.0.40
codegen_flags: <defaults>
</compile_context>

<pallas_src>
import jax
import jax.numpy as jnp
from jax.experimental import pallas as pl
from jax.experimental.pallas import tpu as pltpu

EPS_FLOAT = 2.220446049250313e-16   # sys.float_info.epsilon
IN_EPS = 1e-5                       # nn.InstanceNorm2d default eps
_TAPS = [(di, dj) for di in range(3) for dj in range(3)]


def _round_up(x, m):
    return (x + m - 1) // m * m


def _vmem_limit_bytes():
    try:
        cap = pltpu.get_tpu_info().vmem_capacity_bytes
        return min(int(cap * 3 // 4), 96 * 1024 * 1024)   # ~48 MiB on v7x
    except Exception:
        return 64 * 1024 * 1024


def _cparams(dims):
    return pltpu.CompilerParams(dimension_semantics=dims,
                                vmem_limit_bytes=_vmem_limit_bytes())


# ---------------------------------------------------------------------------
# Kernel 1: 3x3 conv (9 shifted [L,Cin]x[Cin,Cout] MXU matmuls, no im2col)
#           + InstanceNorm(affine=False) + PReLU     (layer*_1 heads)
# ---------------------------------------------------------------------------
def _conv3x3_in_prelu(x_wide, w9, alpha, *, Wp, L, stride, out_h, out_w):
    """x_wide: [B, Lx, Cin] bf16, reflection-padded image in wide layout
    (padded width Wp, Wp % 8 == 0, Lx = (H+3)*Wp).
    w9: [9*Cin, Cout] bf16, tap-major (torch [Cout,Cin,3,3] via
        permute(2,3,1,0).reshape(9*Cin, Cout)).  Bias omitted (cancelled by IN).
    Returns [B, L, Cout] bf16; output pixel (oh,ow) lives at row
    (stride*oh)*Wp + stride*ow of the wide grid."""
    B, Lx, Cin = x_wide.shape
    Cout = w9.shape[1]
    inv_cnt = 1.0 / float(out_h * out_w)
    w_extent = stride * (out_w - 1) + 1

    def kernel(x_ref, w_ref, a_ref, o_ref):
        acc = jnp.zeros((L, Cout), jnp.float32)
        for di, dj in _TAPS:
            t = 3 * di + dj
            # di*Wp is sublane aligned; dj in {1,2} taps stay unaligned.
            acc = acc + jnp.dot(x_ref[pl.ds(di * Wp + dj, L), :],
                                w_ref[t * Cin:(t + 1) * Cin, :],
                                preferred_element_type=jnp.float32)

        # one-pass masked InstanceNorm stats (padding-overlap / skipped
        # stride-2 positions excluded via jnp.where, NaN-safe).
        ridx = jax.lax.broadcasted_iota(jnp.int32, (L, 1), 0)
        col = ridx % Wp
        if stride == 1:
            valid = col < w_extent
        else:
            row = ridx // Wp
            valid = (col < w_extent) & (col % stride == 0) & (row % stride == 0)
        s1 = jnp.sum(jnp.where(valid, acc, 0.0), axis=0, keepdims=True)
        s2 = jnp.sum(jnp.where(valid, acc * acc, 0.0), axis=0, keepdims=True)
        mean = s1 * inv_cnt
        var = jnp.maximum(s2 * inv_cnt - mean * mean, 0.0)
        y = (acc - mean) * jax.lax.rsqrt(var + IN_EPS)
        a = a_ref[0, 0]
        o_ref[...] = jnp.where(y >= 0.0, y, a * y).astype(o_ref.dtype)

    # TODO(synk): at large resolutions tile over spatial rows (two-pass IN).
    return pl.pallas_call(
        kernel,
        out_shape=jax.ShapeDtypeStruct((B, L, Cout), jnp.bfloat16),
        grid=(B,),
        in_specs=[
            pl.BlockSpec((None, Lx, Cin), lambda i: (i, 0, 0)),
            pl.BlockSpec((9 * Cin, Cout), lambda i: (0, 0)),
            pl.BlockSpec(memory_space=pltpu.MemorySpace.SMEM),
        ],
        out_specs=pl.BlockSpec((None, L, Cout), lambda i: (i, 0, 0)),
        compiler_params=_cparams(("parallel",)),
    )(x_wide, w9, alpha)


def _pad_wide(x_nhwc, Wp):
    """ReflectionPad2d(1), width-align to Wp (zeros) + one zero tail row,
    flattened row-major -> [B, (H+3)*Wp, C] bf16."""
    B, H, W, C = x_nhwc.shape
    xp = jnp.pad(x_nhwc.astype(jnp.bfloat16),
                 ((0, 0), (1, 1), (1, 1), (0, 0)), mode='reflect')
    xp = jnp.pad(xp, ((0, 0), (0, 1), (0, Wp - (W + 2)), (0, 0)))
    return xp.reshape(B, (H + 3) * Wp, C)


def conv_block(x_nhwc, w9, alpha, *, stride=1):
    """ReflectionPad(1) + 3x3 conv + InstanceNorm + PReLU (bf16 out)."""
    B, H, W, Cin = x_nhwc.shape
    Cout = w9.shape[1]
    Wp = _round_up(W + 2, 8)
    L = H * Wp
    out_h = (H - 1) // stride + 1
    out_w = (W - 1) // stride + 1
    x_wide = _pad_wide(x_nhwc, Wp)
    out_wide = _conv3x3_in_prelu(x_wide, w9.astype(jnp.bfloat16), alpha,
                                 Wp=Wp, L=L, stride=stride,
                                 out_h=out_h, out_w=out_w)
    w_extent = stride * (out_w - 1) + 1
    # TODO(synk): compact the stride-2 output in-kernel instead of this slice.
    return out_wide.reshape(B, H, Wp, Cout)[:, ::stride, 0:w_extent:stride, :]


# ---------------------------------------------------------------------------
# Kernel 2: fully fused ResidualBlock
#   conv1 -> IN -> PReLU -> (in-VMEM reflection pad) -> conv2 -> IN -> +x -> PReLU
# Input and output are both in the reflection-padded wide layout so three
# chained blocks need no XLA glue between them.
# ---------------------------------------------------------------------------
def _residual_block_fused(xp_wide, w1, w2, alpha, *, Wp, H, W):
    B, Lx, C = xp_wide.shape
    L = H * Wp
    inv_cnt = 1.0 / float(H * W)

    def kernel(x_ref, w1_ref, w2_ref, a_ref, o_ref, hp_ref):
        a = a_ref[0, 0]
        col = jax.lax.broadcasted_iota(jnp.int32, (L, 1), 0) % Wp
        valid = col < W

        def conv(src_ref, w_ref):
            acc = jnp.zeros((L, C), jnp.float32)
            for di, dj in _TAPS:
                t = 3 * di + dj
                acc = acc + jnp.dot(src_ref[pl.ds(di * Wp + dj, L), :],
                                    w_ref[t * C:(t + 1) * C, :],
                                    preferred_element_type=jnp.float32)
            return acc

        def inst_norm(acc):
            s1 = jnp.sum(jnp.where(valid, acc, 0.0), axis=0, keepdims=True)
            s2 = jnp.sum(jnp.where(valid, acc * acc, 0.0), axis=0, keepdims=True)
            mean = s1 * inv_cnt
            var = jnp.maximum(s2 * inv_cnt - mean * mean, 0.0)
            return (acc - mean) * jax.lax.rsqrt(var + IN_EPS)

        def store_reflect_padded(dst_ref, v):
            """v: [L, C] f32 valid at col < W.  Writes ReflectionPad2d(1) of
            the valid region into dst_ref in the same wide layout (rows 0..H+1
            meaningful, zero tail).  The shifted left/interior/right column
            views are built with sublane rolls (XLU) + an iota select."""
            left = pltpu.roll(v, L - 1, axis=0)    # v[j+1] -> padded col 0
            inner = pltpu.roll(v, 1, axis=0)       # v[j-1] -> padded cols 1..W
            right = pltpu.roll(v, 3, axis=0)       # v[j-3] -> padded col W+1
            mid = jnp.where(col == 0, left,
                            jnp.where(col == W + 1, right, inner))
            mid = mid.astype(dst_ref.dtype)
            dst_ref[pl.ds(Wp, L), :] = mid                           # rows 1..H
            dst_ref[pl.ds(0, Wp), :] = mid[Wp:2 * Wp, :]             # row 0 = row 2
            dst_ref[pl.ds((H + 1) * Wp, Wp), :] = (                  # row H+1 = row H-1
                mid[(H - 2) * Wp:(H - 1) * Wp, :])
            dst_ref[pl.ds((H + 2) * Wp, Lx - (H + 2) * Wp), :] = (   # zero tail
                jnp.zeros((Lx - (H + 2) * Wp, C), dst_ref.dtype))

        # conv1 -> IN -> PReLU ; mid activation never leaves VMEM
        h = inst_norm(conv(x_ref, w1_ref))
        h = jnp.where(h >= 0.0, h, a * h)
        store_reflect_padded(hp_ref, h)

        # conv2 -> IN -> residual add -> PReLU (residual = interior of x)
        y = inst_norm(conv(hp_ref, w2_ref))
        y = y + x_ref[pl.ds(Wp + 1, L), :].astype(jnp.float32)
        y = jnp.where(y >= 0.0, y, a * y)
        store_reflect_padded(o_ref, y)

    # TODO(synk): spatial row tiling (two-pass IN) for large feature maps.
    return pl.pallas_call(
        kernel,
        out_shape=jax.ShapeDtypeStruct((B, Lx, C), jnp.bfloat16),
        grid=(B,),
        in_specs=[
            pl.BlockSpec((None, Lx, C), lambda i: (i, 0, 0)),
            pl.BlockSpec((9 * C, C), lambda i: (0, 0)),
            pl.BlockSpec((9 * C, C), lambda i: (0, 0)),
            pl.BlockSpec(memory_space=pltpu.MemorySpace.SMEM),
        ],
        out_specs=pl.BlockSpec((None, Lx, C), lambda i: (i, 0, 0)),
        scratch_shapes=[pltpu.VMEM((Lx, C), jnp.bfloat16)],
        compiler_params=_cparams(("parallel",)),
    )(xp_wide, w1.astype(jnp.bfloat16), w2.astype(jnp.bfloat16), alpha)


def residual_stack(feats_nhwc, res_params):
    B, H, W, C = feats_nhwc.shape
    Wp = _round_up(W + 2, 8)
    x = _pad_wide(feats_nhwc, Wp)
    for p in res_params:
        x = _residual_block_fused(x, p["w1"], p["w2"], p["alpha"],
                                  Wp=Wp, H=H, W=W)
    return x.reshape(B, H + 3, Wp, C)[:, 1:H + 1, 1:W + 1, :]   # valid interior


# ---------------------------------------------------------------------------
# Kernel 3: theta/phi 1x1 convs + spatial-mean centering + L2-normalize
# ---------------------------------------------------------------------------
def _theta_phi_prep(a_feat, b_feat, wt, wphi):
    B, N, C = a_feat.shape
    Ci = wt.shape[1]

    def kernel(a_ref, b_ref, wt_ref, wp_ref, th_ref, ph_ref):
        def embed(f_ref, w_ref):
            e = jnp.dot(f_ref[...], w_ref[...],
                        preferred_element_type=jnp.float32)
            e = e - jnp.mean(e, axis=0, keepdims=True)   # per-channel spatial mean
            nrm = jnp.sqrt(jnp.sum(e * e, axis=1, keepdims=True)) + EPS_FLOAT
            return e / nrm                               # L2 over channels / loc
        th_ref[...] = embed(a_ref, wt_ref).astype(th_ref.dtype)
        ph_ref[...] = embed(b_ref, wp_ref).astype(ph_ref.dtype)

    return pl.pallas_call(
        kernel,
        out_shape=(jax.ShapeDtypeStruct((B, N, Ci), jnp.bfloat16),
                   jax.ShapeDtypeStruct((B, N, Ci), jnp.bfloat16)),
        grid=(B,),
        in_specs=[
            pl.BlockSpec((None, N, C), lambda i: (i, 0, 0)),
            pl.BlockSpec((None, N, C), lambda i: (i, 0, 0)),
            pl.BlockSpec((C, Ci), lambda i: (0, 0)),
            pl.BlockSpec((C, Ci), lambda i: (0, 0)),
        ],
        out_specs=(pl.BlockSpec((None, N, Ci), lambda i: (i, 0, 0)),
                   pl.BlockSpec((None, N, Ci), lambda i: (i, 0, 0))),
        compiler_params=_cparams(("parallel",)),
    )(a_feat, b_feat, wt, wphi)


# ---------------------------------------------------------------------------
# Kernel 4: query-row-tiled correlation + similarity (row max) + softmax +
#           attention read of B_hist.  phi arrives pre-transposed [Ci, N].
# ---------------------------------------------------------------------------
def _pick_tile(n, cands=(512, 256, 128, 64, 32, 16, 8)):
    for c in cands:
        if n % c == 0:
            return c
    return n


def _corr_attention(theta_n, phi_t, bhist, temperature):
    B, N, Ci = theta_n.shape
    Ch = bhist.shape[-1]
    tq = _pick_tile(N)
    inv_t = 1.0 / float(temperature)

    def kernel(th_ref, pt_ref, h_ref, y_ref, s_ref):
        f = jnp.dot(th_ref[...], pt_ref[...],
                    preferred_element_type=jnp.float32)        # [tq, N]
        m = jnp.max(f, axis=1, keepdims=True)                  # reused for sim + shift
        s_ref[...] = m
        e = jnp.exp((f - m) * inv_t)                           # == softmax(f / T)
        p = e * pl.reciprocal(jnp.sum(e, axis=1, keepdims=True), approx=True)
        y_ref[...] = jnp.dot(p.astype(jnp.bfloat16), h_ref[...],
                             preferred_element_type=jnp.float32)

    return pl.pallas_call(
        kernel,
        out_shape=(jax.ShapeDtypeStruct((B, N, Ch), jnp.float32),
                   jax.ShapeDtypeStruct((B, N, 1), jnp.float32)),
        grid=(B, N // tq),
        in_specs=[
            pl.BlockSpec((None, tq, Ci), lambda b, q: (b, q, 0)),
            pl.BlockSpec((None, Ci, N), lambda b, q: (b, 0, 0)),
            pl.BlockSpec((None, N, Ch), lambda b, q: (b, 0, 0)),
        ],
        out_specs=(pl.BlockSpec((None, tq, Ch), lambda b, q: (b, q, 0)),
                   pl.BlockSpec((None, tq, 1), lambda b, q: (b, q, 0))),
        compiler_params=_cparams(("parallel", "parallel")),
    )(theta_n, phi_t, bhist)


# ---------------------------------------------------------------------------
# Plain-JAX glue (upsample, pooling, replicate pad)
# ---------------------------------------------------------------------------
def upsample2_nhwc(x):
    return jnp.repeat(jnp.repeat(x, 2, axis=1), 2, axis=2)


def up2_nchw(x):
    return jnp.repeat(jnp.repeat(x, 2, axis=2), 2, axis=3)


def avg_pool_nchw(x, k):
    b, c, h, w = x.shape
    return x.reshape(b, c, h // k, k, w // k, k).mean(axis=(3, 5))


def pad_like_nhwc(x1, x2):  # replicate pad (padding_customize)
    dY = x2.shape[1] - x1.shape[1]
    dX = x2.shape[2] - x1.shape[2]
    return jnp.pad(x1, ((0, 0), (dY // 2, dY - dY // 2),
                        (dX // 2, dX - dX // 2), (0, 0)), mode='edge')


# ---------------------------------------------------------------------------
# WarpNet forward
# ---------------------------------------------------------------------------
def warpnet_forward(params, B_hist, A2, A3, A4, A5, B2, B3, B4, B5,
                    temperature=0.001 * 5):
    to_nhwc = lambda t: jnp.transpose(t, (0, 2, 3, 1)).astype(jnp.bfloat16)

    def layer2_1(x):
        p = params["layer2_1"]
        x = conv_block(x, p["w1"], p["a1"], stride=1)
        return conv_block(x, p["w2"], p["a2"], stride=2)

    def layer3_1(x):
        p = params["layer3_1"]
        x = conv_block(x, p["w1"], p["a1"])
        return conv_block(x, p["w2"], p["a2"])

    def layer4_1(x):
        p = params["layer4_1"]
        x = conv_block(x, p["w1"], p["a1"])
        x = conv_block(x, p["w2"], p["a2"])
        return upsample2_nhwc(x)

    def layer5_1(x):
        p = params["layer5_1"]
        x = conv_block(x, p["w1"], p["a1"])
        x = upsample2_nhwc(x)
        x = conv_block(x, p["w2"], p["a2"])
        return upsample2_nhwc(x)

    Bn = B_hist.shape[0]
    # A and B share weights in every stage: one doubled batch per stage.
    F2 = layer2_1(jnp.concatenate([to_nhwc(A2), to_nhwc(B2)], axis=0))
    F3 = layer3_1(jnp.concatenate([to_nhwc(A3), to_nhwc(B3)], axis=0))
    F4 = layer4_1(jnp.concatenate([to_nhwc(A4), to_nhwc(B4)], axis=0))
    F5 = layer5_1(jnp.concatenate([to_nhwc(A5), to_nhwc(B5)], axis=0))

    if F5.shape[1:3] != F2.shape[1:3]:
        F2, F3, F4 = (pad_like_nhwc(F2, F5), pad_like_nhwc(F3, F5),
                      pad_like_nhwc(F4, F5))

    # TODO(synk): lane-dense packing -- have the four Cout=64 head convs write
    # channel offsets of one [*, HW, 256] buffer to delete this concat and the
    # 64-lane masked stores.
    feats = residual_stack(jnp.concatenate([F2, F3, F4, F5], axis=-1),
                           params["res"])
    A_features, B_features = feats[:Bn], feats[Bn:]

    _, h, w, Cfeat = A_features.shape
    N = h * w
    A_flat = A_features.reshape(Bn, N, Cfeat)
    B_flat = B_features.reshape(Bn, N, Cfeat)

    theta_n, phi_n = _theta_phi_prep(A_flat, B_flat,
                                     params["theta"]["w"].astype(jnp.bfloat16),
                                     params["phi"]["w"].astype(jnp.bfloat16))
    phi_t = jnp.transpose(phi_n, (0, 2, 1))   # [B, Ci, N]: MXU-native contraction

    fh, fw = B_hist.shape[2], B_hist.shape[3]
    assert fh * fw == N, "B_hist spatial size must match the fused feature map"
    bhist_flat = jnp.transpose(B_hist.reshape(Bn, 512, fh * fw),
                               (0, 2, 1)).astype(jnp.bfloat16)

    y_flat, sim_flat = _corr_attention(theta_n, phi_t, bhist_flat, temperature)

    # back to NCHW outputs (PyTorch convention)
    y_hist_1 = jnp.transpose(y_flat, (0, 2, 1)).reshape(Bn, 512, fh, fw)
    similarity_map = sim_flat.reshape(Bn, 1, h, w)

    y_hist_0 = up2_nchw(y_hist_1)
    y_hist_2 = avg_pool_nchw(y_hist_1, 2)
    y_hist_3 = avg_pool_nchw(y_hist_1, 4)
    sm0 = up2_nchw(similarity_map)
    sm2 = avg_pool_nchw(similarity_map, 2)
    sm3 = avg_pool_nchw(similarity_map, 4)
    # TODO(synk): detach_flag only affects autograd (no-op in inference port).
    return [(y_hist_0, sm0), (y_hist_1, similarity_map),
            (y_hist_2, sm2), (y_hist_3, sm3)]


# ---------------------------------------------------------------------------
# Deterministic parameter init (shapes follow WarpNet.__init__)
# ---------------------------------------------------------------------------
def init_params(key):
    keys = iter(jax.random.split(key, 32))

    def conv_w(cin, cout, k=3):
        # Tap-major layout: torch weight [Cout, Cin, 3, 3] maps via
        # w.permute(2, 3, 1, 0).reshape(9 * Cin, Cout).
        fan = cin * k * k
        return jax.random.normal(next(keys), (k * k * cin, cout),
                                 jnp.float32) / jnp.sqrt(fan)

    def alpha():
        return jnp.full((1, 1), 0.25, jnp.float32)   # nn.PReLU() default

    # conv / theta / phi biases intentionally not materialised: exactly
    # cancelled by the InstanceNorm / spatial-mean subtraction.
    p = {}
    for name, (c1, c2, c3) in {"layer2_1": (64, 128, 64),
                               "layer3_1": (128, 128, 64),
                               "layer4_1": (256, 256, 64),
                               "layer5_1": (512, 256, 64)}.items():
        p[name] = dict(w1=conv_w(c1, c2), a1=alpha(),
                       w2=conv_w(c2, c3), a2=alpha())
    p["res"] = [dict(w1=conv_w(256, 256), w2=conv_w(256, 256), alpha=alpha())
                for _ in range(3)]
    p["theta"] = dict(w=conv_w(256, 256, k=1))
    p["phi"] = dict(w=conv_w(256, 256, k=1))
    return p


if __name__ == "__main__":
    key = jax.random.PRNGKey(0)
    pkey, dkey = jax.random.split(key)
    params = init_params(pkey)

    Bsz, H, W = 2, 16, 16
    ks = jax.random.split(dkey, 9)
    B_hist = jax.random.normal(ks[0], (Bsz, 512, H // 2, W // 2), jnp.float32)
    A2 = jax.random.normal(ks[1], (Bsz, 64, H, W), jnp.float32)
    A3 = jax.random.normal(ks[2], (Bsz, 128, H // 2, W // 2), jnp.float32)
    A4 = jax.random.normal(ks[3], (Bsz, 256, H // 4, W // 4), jnp.float32)
    A5 = jax.random.normal(ks[4], (Bsz, 512, H // 8, W // 8), jnp.float32)
    B2 = jax.random.normal(ks[5], (Bsz, 64, H, W), jnp.float32)
    B3 = jax.random.normal(ks[6], (Bsz, 128, H // 2, W // 2), jnp.float32)
    B4 = jax.random.normal(ks[7], (Bsz, 256, H // 4, W // 4), jnp.float32)
    B5 = jax.random.normal(ks[8], (Bsz, 512, H // 8, W // 8), jnp.float32)

    outs = warpnet_forward(params, B_hist, A2, A3, A4, A5, B2, B3, B4, B5)
    outs = jax.tree_util.tree_map(lambda a: a.block_until_ready(), outs)

    assert outs[1][0].shape == (Bsz, 512, H // 2, W // 2)
    assert outs[1][1].shape == (Bsz, 1, H // 2, W // 2)
    assert outs[0][0].shape == (Bsz, 512, H, W)
    assert outs[3][1].shape == (Bsz, 1, H // 8, W // 8)
    print("KERNEL_OK")
</pallas_src>

<mosaic_0001>
module attributes {stable_mosaic.version = 11 : i64} {
  func.func @kernel(%arg0: i32, %arg1: memref<1x456x64xbf16, #tpu.memory_space<vmem>>, %arg2: memref<576x128xbf16, #tpu.memory_space<vmem>>, %arg3: memref<1x1xf32, #tpu.memory_space<smem>>, %arg4: memref<1x384x128xbf16, #tpu.memory_space<vmem>>) attributes {dimension_semantics = [#tpu.dimension_semantics<parallel>], iteration_bounds = array<i64: 4>, scalar_prefetch = 0 : i64, scratch_operands = 0 : i64, tpu.core_type = #tpu.core_type<tc>, window_params = [{transform_indices = @transform_0, window_bounds = array<i64: 1, 456, 64>}, {pipeline_mode = #tpu.pipeline_mode<synchronous>, transform_indices = @transform_1, window_bounds = array<i64: 576, 128>}, {transform_indices = @transform_2, window_bounds = array<i64: 1, 1>}, {transform_indices = @transform_3, window_bounds = array<i64: 1, 384, 128>}]} {
    %cst = arith.constant 0.000000e+00 : f32
    %0 = vector.broadcast %cst : f32 to vector<384x128xf32>
    %c0 = arith.constant 0 : index
    %c0_0 = arith.constant 0 : index
    %c0_1 = arith.constant 0 : index
    %1 = vector.load %arg1[%c0, %c0_0, %c0_1] : memref<1x456x64xbf16, #tpu.memory_space<vmem>>, vector<1x384x64xbf16>
    %2 = vector.shape_cast %1 : vector<1x384x64xbf16> to vector<384x64xbf16>
    %c0_2 = arith.constant 0 : index
    %c0_3 = arith.constant 0 : index
    %3 = vector.load %arg2[%c0_2, %c0_3] : memref<576x128xbf16, #tpu.memory_space<vmem>>, vector<64x128xbf16>
    %cst_4 = arith.constant dense<0.000000e+00> : vector<384x128xf32>
    %4 = tpu.matmul %2, %3, %cst_4 {dimension_numbers = #tpu.dot_dimension_numbers<[1], [0], [0], [1], [0, 0, 1, 1], [], []>} : vector<384x64xbf16>, vector<64x128xbf16>, vector<384x128xf32> -> vector<384x128xf32>
    %5 = arith.addf %0, %4 : vector<384x128xf32>
    %c0_5 = arith.constant 0 : index
    %c1 = arith.constant 1 : index
    %c0_6 = arith.constant 0 : index
    %6 = vector.load %arg1[%c0_5, %c1, %c0_6] : memref<1x456x64xbf16, #tpu.memory_space<vmem>>, vector<1x384x64xbf16>
    %7 = vector.shape_cast %6 : vector<1x384x64xbf16> to vector<384x64xbf16>
    %c64 = arith.constant 64 : index
    %c0_7 = arith.constant 0 : index
    %8 = vector.load %arg2[%c64, %c0_7] : memref<576x128xbf16, #tpu.memory_space<vmem>>, vector<64x128xbf16>
    %cst_8 = arith.constant dense<0.000000e+00> : vector<384x128xf32>
    %9 = tpu.matmul %7, %8, %cst_8 {dimension_numbers = #tpu.dot_dimension_numbers<[1], [0], [0], [1], [0, 0, 1, 1], [], []>} : vector<384x64xbf16>, vector<64x128xbf16>, vector<384x128xf32> -> vector<384x128xf32>
    %10 = arith.addf %5, %9 : vector<384x128xf32>
    %c0_9 = arith.constant 0 : index
    %c2 = arith.constant 2 : index
    %c0_10 = arith.constant 0 : index
    %11 = vector.load %arg1[%c0_9, %c2, %c0_10] : memref<1x456x64xbf16, #tpu.memory_space<vmem>>, vector<1x384x64xbf16>
    %12 = vector.shape_cast %11 : vector<1x384x64xbf16> to vector<384x64xbf16>
    %c128 = arith.constant 128 : index
    %c0_11 = arith.constant 0 : index
    %13 = vector.load %arg2[%c128, %c0_11] : memref<576x128xbf16, #tpu.memory_space<vmem>>, vector<64x128xbf16>
    %cst_12 = arith.constant dense<0.000000e+00> : vector<384x128xf32>
    %14 = tpu.matmul %12, %13, %cst_12 {dimension_numbers = #tpu.dot_dimension_numbers<[1], [0], [0], [1], [0, 0, 1, 1], [], []>} : vector<384x64xbf16>, vector<64x128xbf16>, vector<384x128xf32> -> vector<384x128xf32>
    %15 = arith.addf %10, %14 : vector<384x128xf32>
    %c0_13 = arith.constant 0 : index
    %c24 = arith.constant 24 : index
    %c0_14 = arith.constant 0 : index
    %16 = vector.load %arg1[%c0_13, %c24, %c0_14] : memref<1x456x64xbf16, #tpu.memory_space<vmem>>, vector<1x384x64xbf16>
    %17 = vector.shape_cast %16 : vector<1x384x64xbf16> to vector<384x64xbf16>
    %c192 = arith.constant 192 : index
    %c0_15 = arith.constant 0 : index
    %18 = vector.load %arg2[%c192, %c0_15] : memref<576x128xbf16, #tpu.memory_space<vmem>>, vector<64x128xbf16>
    %cst_16 = arith.constant dense<0.000000e+00> : vector<384x128xf32>
    %19 = tpu.matmul %17, %18, %cst_16 {dimension_numbers = #tpu.dot_dimension_numbers<[1], [0], [0], [1], [0, 0, 1, 1], [], []>} : vector<384x64xbf16>, vector<64x128xbf16>, vector<384x128xf32> -> vector<384x128xf32>
    %20 = arith.addf %15, %19 : vector<384x128xf32>
    %c0_17 = arith.constant 0 : index
    %c25 = arith.constant 25 : index
    %c0_18 = arith.constant 0 : index
    %21 = vector.load %arg1[%c0_17, %c25, %c0_18] : memref<1x456x64xbf16, #tpu.memory_space<vmem>>, vector<1x384x64xbf16>
    %22 = vector.shape_cast %21 : vector<1x384x64xbf16> to vector<384x64xbf16>
    %c256 = arith.constant 256 : index
    %c0_19 = arith.constant 0 : index
    %23 = vector.load %arg2[%c256, %c0_19] : memref<576x128xbf16, #tpu.memory_space<vmem>>, vector<64x128xbf16>
    %cst_20 = arith.constant dense<0.000000e+00> : vector<384x128xf32>
    %24 = tpu.matmul %22, %23, %cst_20 {dimension_numbers = #tpu.dot_dimension_numbers<[1], [0], [0], [1], [0, 0, 1, 1], [], []>} : vector<384x64xbf16>, vector<64x128xbf16>, vector<384x128xf32> -> vector<384x128xf32>
    %25 = arith.addf %20, %24 : vector<384x128xf32>
    %c0_21 = arith.constant 0 : index
    %c26 = arith.constant 26 : index
    %c0_22 = arith.constant 0 : index
    %26 = vector.load %arg1[%c0_21, %c26, %c0_22] : memref<1x456x64xbf16, #tpu.memory_space<vmem>>, vector<1x384x64xbf16>
    %27 = vector.shape_cast %26 : vector<1x384x64xbf16> to vector<384x64xbf16>
    %c320 = arith.constant 320 : index
    %c0_23 = arith.constant 0 : index
    %28 = vector.load %arg2[%c320, %c0_23] : memref<576x128xbf16, #tpu.memory_space<vmem>>, vector<64x128xbf16>
    %cst_24 = arith.constant dense<0.000000e+00> : vector<384x128xf32>
    %29 = tpu.matmul %27, %28, %cst_24 {dimension_numbers = #tpu.dot_dimension_numbers<[1], [0], [0], [1], [0, 0, 1, 1], [], []>} : vector<384x64xbf16>, vector<64x128xbf16>, vector<384x128xf32> -> vector<384x128xf32>
    %30 = arith.addf %25, %29 : vector<384x128xf32>
    %c0_25 = arith.constant 0 : index
    %c48 = arith.constant 48 : index
    %c0_26 = arith.constant 0 : index
    %31 = vector.load %arg1[%c0_25, %c48, %c0_26] : memref<1x456x64xbf16, #tpu.memory_space<vmem>>, vector<1x384x64xbf16>
    %32 = vector.shape_cast %31 : vector<1x384x64xbf16> to vector<384x64xbf16>
    %c384 = arith.constant 384 : index
    %c0_27 = arith.constant 0 : index
    %33 = vector.load %arg2[%c384, %c0_27] : memref<576x128xbf16, #tpu.memory_space<vmem>>, vector<64x128xbf16>
    %cst_28 = arith.constant dense<0.000000e+00> : vector<384x128xf32>
    %34 = tpu.matmul %32, %33, %cst_28 {dimension_numbers = #tpu.dot_dimension_numbers<[1], [0], [0], [1], [0, 0, 1, 1], [], []>} : vector<384x64xbf16>, vector<64x128xbf16>, vector<384x128xf32> -> vector<384x128xf32>
    %35 = arith.addf %30, %34 : vector<384x128xf32>
    %c0_29 = arith.constant 0 : index
    %c49 = arith.constant 49 : index
    %c0_30 = arith.constant 0 : index
    %36 = vector.load %arg1[%c0_29, %c49, %c0_30] : memref<1x456x64xbf16, #tpu.memory_space<vmem>>, vector<1x384x64xbf16>
    %37 = vector.shape_cast %36 : vector<1x384x64xbf16> to vector<384x64xbf16>
    %c448 = arith.constant 448 : index
    %c0_31 = arith.constant 0 : index
    %38 = vector.load %arg2[%c448, %c0_31] : memref<576x128xbf16, #tpu.memory_space<vmem>>, vector<64x128xbf16>
    %cst_32 = arith.constant dense<0.000000e+00> : vector<384x128xf32>
    %39 = tpu.matmul %37, %38, %cst_32 {dimension_numbers = #tpu.dot_dimension_numbers<[1], [0], [0], [1], [0, 0, 1, 1], [], []>} : vector<384x64xbf16>, vector<64x128xbf16>, vector<384x128xf32> -> vector<384x128xf32>
    %40 = arith.addf %35, %39 : vector<384x128xf32>
    %c0_33 = arith.constant 0 : index
    %c50 = arith.constant 50 : index
    %c0_34 = arith.constant 0 : index
    %41 = vector.load %arg1[%c0_33, %c50, %c0_34] : memref<1x456x64xbf16, #tpu.memory_space<vmem>>, vector<1x384x64xbf16>
    %42 = vector.shape_cast %41 : vector<1x384x64xbf16> to vector<384x64xbf16>
    %c512 = arith.constant 512 : index
    %c0_35 = arith.constant 0 : index
    %43 = vector.load %arg2[%c512, %c0_35] : memref<576x128xbf16, #tpu.memory_space<vmem>>, vector<64x128xbf16>
    %cst_36 = arith.constant dense<0.000000e+00> : vector<384x128xf32>
    %44 = tpu.matmul %42, %43, %cst_36 {dimension_numbers = #tpu.dot_dimension_numbers<[1], [0], [0], [1], [0, 0, 1, 1], [], []>} : vector<384x64xbf16>, vector<64x128xbf16>, vector<384x128xf32> -> vector<384x128xf32>
    %45 = arith.addf %40, %44 : vector<384x128xf32>
    %46 = tpu.iota {dimensions = array<i32: 0>} : vector<384x1xi32>
    %c24_i32 = arith.constant 24 : i32
    %c0_i32 = arith.constant 0 : i32
    %47 = arith.cmpi eq, %c24_i32, %c0_i32 : i32
    %c1_i32 = arith.constant 1 : i32
    %48 = arith.select %47, %c1_i32, %c24_i32 : i32
    %49 = vector.broadcast %48 : i32 to vector<384x1xi32>
    %50 = arith.remsi %46, %49 : vector<384x1xi32>
    %c0_i32_37 = arith.constant 0 : i32
    %51 = vector.broadcast %c0_i32_37 : i32 to vector<384x1xi32>
    %52 = arith.cmpi ne, %50, %51 : vector<384x1xi32>
    %c0_i32_38 = arith.constant 0 : i32
    %53 = vector.broadcast %c0_i32_38 : i32 to vector<384x1xi32>
    %54 = arith.cmpi slt, %50, %53 : vector<384x1xi32>
    %c0_i32_39 = arith.constant 0 : i32
    %55 = arith.cmpi slt, %48, %c0_i32_39 : i32
    %56 = vector.broadcast %55 : i1 to vector<384x1xi1>
    %57 = vector.broadcast %56 : vector<384x1xi1> to vector<384x1xi1>
    %58 = arith.xori %54, %57 : vector<384x1xi1>
    %59 = arith.andi %58, %52 : vector<384x1xi1>
    %60 = vector.broadcast %48 : i32 to vector<384x1xi32>
    %61 = arith.addi %50, %60 : vector<384x1xi32>
    %62 = arith.select %59, %61, %50 : vector<384x1xi1>, vector<384x1xi32>
    %c16_i32 = arith.constant 16 : i32
    %63 = vector.broadcast %c16_i32 : i32 to vector<384x1xi32>
    %64 = arith.cmpi slt, %62, %63 : vector<384x1xi32>
    %cst_40 = arith.constant 0.000000e+00 : f32
    %65 = vector.shape_cast %64 : vector<384x1xi1> to vector<384x1xi1>
    %66 = vector.broadcast %65 : vector<384x1xi1> to vector<384x128xi1>
    %67 = vector.broadcast %cst_40 : f32 to vector<384x128xf32>
    %68 = arith.select %66, %45, %67 : vector<384x128xi1>, vector<384x128xf32>
    %cst_41 = arith.constant dense<0.000000e+00> : vector<128xf32>
    %69 = vector.multi_reduction <add>, %68, %cst_41 [0] : vector<384x128xf32> to vector<128xf32>
    %70 = vector.shape_cast %69 : vector<128xf32> to vector<1x128xf32>
    %71 = arith.mulf %45, %45 : vector<384x128xf32>
    %cst_42 = arith.constant 0.000000e+00 : f32
    %72 = vector.shape_cast %64 : vector<384x1xi1> to vector<384x1xi1>
    %73 = vector.broadcast %72 : vector<384x1xi1> to vector<384x128xi1>
    %74 = vector.broadcast %cst_42 : f32 to vector<384x128xf32>
    %75 = arith.select %73, %71, %74 : vector<384x128xi1>, vector<384x128xf32>
    %cst_43 = arith.constant dense<0.000000e+00> : vector<128xf32>
    %76 = vector.multi_reduction <add>, %75, %cst_43 [0] : vector<384x128xf32> to vector<128xf32>
    %77 = vector.shape_cast %76 : vector<128xf32> to vector<1x128xf32>
    %cst_44 = arith.constant 3.906250e-03 : f32
    %78 = vector.broadcast %cst_44 : f32 to vector<1x128xf32>
    %79 = arith.mulf %70, %78 : vector<1x128xf32>
    %cst_45 = arith.constant 3.906250e-03 : f32
    %80 = vector.broadcast %cst_45 : f32 to vector<1x128xf32>
    %81 = arith.mulf %77, %80 : vector<1x128xf32>
    %82 = arith.mulf %79, %79 : vector<1x128xf32>
    %83 = arith.subf %81, %82 : vector<1x128xf32>
    %cst_46 = arith.constant 0.000000e+00 : f32
    %84 = vector.broadcast %cst_46 : f32 to vector<1x128xf32>
    %85 = arith.maximumf %83, %84 : vector<1x128xf32>
    %86 = vector.broadcast %79 : vector<1x128xf32> to vector<384x128xf32>
    %87 = arith.subf %45, %86 : vector<384x128xf32>
    %cst_47 = arith.constant 9.99999974E-6 : f32
    %88 = vector.broadcast %cst_47 : f32 to vector<1x128xf32>
    %89 = arith.addf %85, %88 : vector<1x128xf32>
    %90 = math.rsqrt %89 : vector<1x128xf32>
    %91 = vector.broadcast %90 : vector<1x128xf32> to vector<384x128xf32>
    %92 = arith.mulf %87, %91 : vector<384x128xf32>
    %c0_48 = arith.constant 0 : index
    %c0_49 = arith.constant 0 : index
    %93 = memref.load %arg3[%c0_48, %c0_49] : memref<1x1xf32, #tpu.memory_space<smem>>
    %cst_50 = arith.constant 0.000000e+00 : f32
    %94 = vector.broadcast %cst_50 : f32 to vector<384x128xf32>
    %95 = arith.cmpf oge, %92, %94 : vector<384x128xf32>
    %96 = vector.broadcast %93 : f32 to vector<384x128xf32>
    %97 = arith.mulf %96, %92 : vector<384x128xf32>
    %98 = arith.select %95, %92, %97 : vector<384x128xi1>, vector<384x128xf32>
    %99 = arith.truncf %98 : vector<384x128xf32> to vector<384x128xbf16>
    %c0_51 = arith.constant 0 : index
    %c0_52 = arith.constant 0 : index
    %c0_53 = arith.constant 0 : index
    %100 = vector.load %arg4[%c0_51, %c0_52, %c0_53] : memref<1x384x128xbf16, #tpu.memory_space<vmem>>, vector<1x384x128xbf16>
    %101 = vector.shape_cast %100 : vector<1x384x128xbf16> to vector<384x128xbf16>
    %102 = vector.shape_cast %99 : vector<384x128xbf16> to vector<1x384x128xbf16>
    tpu.vector_store %arg4[%c0_51, %c0_52, %c0_53], %102 {strides = array<i32>} : memref<1x384x128xbf16, #tpu.memory_space<vmem>>, vector<1x384x128xbf16>,
    return
  }
  func.func @transform_0(%arg0: i32) -> (i32, i32, i32) {
    %c0_i32 = arith.constant 0 : i32
    %c0_i32_0 = arith.constant 0 : i32
    %c0_i32_1 = arith.constant 0 : i32
    return %arg0, %c0_i32, %c0_i32_0 : i32, i32, i32
  }
  func.func @transform_1(%arg0: i32) -> (i32, i32) {
    %c0_i32 = arith.constant 0 : i32
    %c0_i32_0 = arith.constant 0 : i32
    %c0_i32_1 = arith.constant 0 : i32
    return %c0_i32, %c0_i32_0 : i32, i32
  }
  func.func @transform_2(%arg0: i32) -> (i32, i32) {
    %c0_i32 = arith.constant 0 : i32
    %c0_i32_0 = arith.constant 0 : i32
    %c0_i32_1 = arith.constant 0 : i32
    return %c0_i32, %c0_i32_0 : i32, i32
  }
  func.func @transform_3(%arg0: i32) -> (i32, i32, i32) {
    %c0_i32 = arith.constant 0 : i32
    %c0_i32_0 = arith.constant 0 : i32
    %c0_i32_1 = arith.constant 0 : i32
    return %arg0, %c0_i32, %c0_i32_0 : i32, i32, i32
  }
}

</mosaic_0001>

<llo_original>
// kernel: tpu_custom_call.1
$region0: #{tpu_custom_call.1}
  #allocation0 [shape = 'u32[]', space=smem, size = 0x4, offset = 0x4, fixed_abs, tag = 'smem constant byte address 0x4 - core index']
  #allocation1 [shape = 'u32[144,128]{1,0:T(1,128)}', space=vmem, size = 0x12000, scoped, tag = 'internal scratch']
  #allocation2 [shape = 'f32[1,1]{1,0:T(1,128)S(6)}', space=smem, size = 0x200, scoped, tag = 'scoped memory for tpu_custom_call.1']
  %s0 = inlined_call_operand.hbm [shape: bf16[4,456,64], index: 0, kind: input, shape index: {}]
  %s1 = inlined_call_operand.hbm [shape: bf16[576,128], index: 1, kind: input, shape index: {}]
  %s2 = inlined_call_operand.<no memory space> [shape: f32[1,1], index: 2, kind: input, shape index: {}]
  %s3 = inlined_call_operand.hbm [shape: bf16[4,384,128], index: 3, kind: output, shape index: {}]
  %s4 = sld [smem:[#allocation0]]
  $region53: #{tpu_custom_call.1} parent=0
    _
  %s6 = ssub.s32 1, %s4
  %s7 = scalar_select 0, %s6, %s4
  %8 = sst [smem:[#allocation2]] %s2
  $region1: #{tpu_custom_call.1} parent=0
    #allocation3 [shape = 'u8[233472]{0}', space=vmem, size = 0x39000, scoped, tag = 'input window, operand 0']
    #allocation4 [shape = 's32[2]{0}', space=sflag, size = 0x8, scoped, tag = 'scoped memory for tpu_custom_call.1']
    #allocation5 [shape = 's32[2]{0}', space=sflag, size = 0x8, scoped, tag = 'scoped memory for tpu_custom_call.1']
    #allocation6 [shape = 'u8[147456]{0}', space=vmem, size = 0x24000, scoped, tag = 'input window, operand 1, single buffered']
    #allocation7 [shape = 's32[1]{0}', space=sflag, size = 0x4, scoped, tag = 'scoped memory for tpu_custom_call.1']
    #allocation8 [shape = 'u8[196608]{0}', space=vmem, size = 0x30000, scoped, tag = 'output window, operand 0']
    %9 = vsyncpa [#allocation4], 0
    %s10 = scalar_lea.sflag [#allocation4], 1
    %11 = vsyncpa %s10, 0
    %12 = vsyncpa [#allocation7], 0
    %13 = vsyncpa [#allocation5], 0
    %s14 = scalar_lea.sflag [#allocation5], 1
    %15 = vsyncpa %s14, 0
    loop: start=0, step=1, limit=6
    $region2: #{tpu_custom_call.1} parent=1 // loop_pre_header
      _
    $region3: #{tpu_custom_call.1} parent=1 // loop_header
      %s17 = sphi 0, %s21
      %p18 = scmp.ge.s32.totalorder %s17, 6
      %s27 = sphi 0, %s29
      %s30 = sphi 0, %s27
      %s31 = sphi 0, %s30
      %s47 = sphi 0, %s31
      %s51 = sphi 0, %s51
      %s53 = sphi 0, %s51
      %s54 = sphi 0, %s53
      %s68 = sphi 0, %s54
      %s72 = sphi 0, %s72
      %s74 = sphi 0, %s72
      %s75 = sphi 0, %s74
      %s89 = sphi 0, %s75
      %s95 = sphi 0, %s97
      %s98 = sphi 0, %s95
      %s99 = sphi 0, %s98
      %s115 = sphi 0, %s99
    $region4: #{tpu_custom_call.1} parent=1 // loop_header_branch
      %20 = sbr.rel (%p18) target = $region8
    $region5: #{tpu_custom_call.1} parent=1 // loop_body
      %s22 = ssub.s32 %s17, 1
      %s23 = ssub.s32 %s17, 2
      %s24 = sadd.s32 %s17, 1
      %s25 = ssub.s32 %s17, %s24
      %p26 = scmp.eq.s32.totalorder %s25, 0
      %s28 = sadd.s32 %s27, 1
      %s29 = scalar_select %p26, %s27, %s28
      %p32 = pneg %p26
      %p33 = scmp.eq.s32.totalorder %s17, 3
      %p34 = por %p32, %p33
      %p35 = scmp.ne.s32.totalorder %s27, %s30
      %p36 = scmp.eq.s32.totalorder %s17, 0
      %p37 = por %p35, %p36
      %p38 = scmp.ne.s32.totalorder %s27, %s30
      %p39 = scmp.eq.s32.totalorder %s22, 3
      %p40 = por %p38, %p39
      %p41 = scmp.ne.s32.totalorder %s30, %s31
      %p42 = scmp.eq.s32.totalorder %s22, 0
      %p43 = por %p41, %p42
      %p44 = scmp.ne.s32.totalorder %s30, %s31
      %p45 = scmp.eq.s32.totalorder %s23, 3
      %p46 = por %p44, %p45
      %p48 = scmp.ne.s32.totalorder %s31, %s47
      %p49 = scmp.eq.s32.totalorder %s23, 0
      %p50 = por %p48, %p49
      %s52 = sadd.s32 %s51, 1
      %p55 = scmp.eq.s32.totalorder %s17, 3
      %p56 = scmp.ne.s32.totalorder %s51, %s53
      %p57 = scmp.eq.s32.totalorder %s17, 0
      %p58 = por %p56, %p57
      %p59 = scmp.ne.s32.totalorder %s51, %s53
      %p60 = scmp.eq.s32.totalorder %s22, 3
      %p61 = por %p59, %p60
      %p62 = scmp.ne.s32.totalorder %s53, %s54
      %p63 = scmp.eq.s32.totalorder %s22, 0
      %p64 = por %p62, %p63
      %p65 = scmp.ne.s32.totalorder %s53, %s54
      %p66 = scmp.eq.s32.totalorder %s23, 3
      %p67 = por %p65, %p66
      %p69 = scmp.ne.s32.totalorder %s54, %s68
      %p70 = scmp.eq.s32.totalorder %s23, 0
      %p71 = por %p69, %p70
      %s73 = sadd.s32 %s72, 1
      %p76 = scmp.eq.s32.totalorder %s17, 3
      %p77 = scmp.ne.s32.totalorder %s72, %s74
      %p78 = scmp.eq.s32.totalorder %s17, 0
      %p79 = por %p77, %p78
      %p80 = scmp.ne.s32.totalorder %s72, %s74
      %p81 = scmp.eq.s32.totalorder %s22, 3
      %p82 = por %p80, %p81
      %p83 = scmp.ne.s32.totalorder %s74, %s75
      %p84 = scmp.eq.s32.totalorder %s22, 0
      %p85 = por %p83, %p84
      %p86 = scmp.ne.s32.totalorder %s74, %s75
      %p87 = scmp.eq.s32.totalorder %s23, 3
      %p88 = por %p86, %p87
      %p90 = scmp.ne.s32.totalorder %s75, %s89
      %p91 = scmp.eq.s32.totalorder %s23, 0
      %p92 = por %p90, %p91
      %s93 = ssub.s32 %s17, %s24
      %p94 = scmp.eq.s32.totalorder %s93, 0
      %s96 = sadd.s32 %s95, 1
      %s97 = scalar_select %p94, %s95, %s96
      %p100 = pneg %p94
      %p101 = scmp.eq.s32.totalorder %s17, 3
      %p102 = por %p100, %p101
      %p103 = scmp.ne.s32.totalorder %s95, %s98
      %p104 = scmp.eq.s32.totalorder %s17, 0
      %p105 = por %p103, %p104
      %p106 = scmp.ne.s32.totalorder %s95, %s98
      %p107 = scmp.eq.s32.totalorder %s22, 3
      %p108 = por %p106, %p107
      %p109 = scmp.ne.s32.totalorder %s98, %s99
      %p110 = scmp.eq.s32.totalorder %s22, 0
      %p111 = por %p109, %p110
      %p112 = scmp.ne.s32.totalorder %s98, %s99
      %p113 = scmp.eq.s32.totalorder %s23, 3
      %p114 = por %p112, %p113
      %p116 = scmp.ne.s32.totalorder %s99, %s115
      %p117 = scmp.eq.s32.totalorder %s23, 0
      %p118 = por %p116, %p117
      %p119 = scmp.le.s32.totalorder 1, %s17
      %p120 = scmp.lt.s32.totalorder %s17, 5
      %p121 = pnand %p119, %p120
      %p122 = pneg %p121
      // Predicated region
      $region9: #{tpu_custom_call.1} parent=5 // pred_check
        _
      $region10: #{tpu_custom_call.1} parent=5 // pred_check_branch
        %124 = sbr.rel (%p121) target = $region12
      $region11: #{tpu_custom_call.1} parent=5 // pred_region
        %s125 = ssub.s32 %s17, 1
        // Predicated region
        $region13: #{tpu_custom_call.1} parent=11 // pred_check
          %p126 = pneg %p64
        $region14: #{tpu_custom_call.1} parent=11 // pred_check_branch
          %128 = sbr.rel (%p126) target = $region16
        $region15: #{tpu_custom_call.1} parent=11 // pred_region
          %s130 = ssub.s32 4608, 4608
          %131 = vsyncadd [#allocation7], %s130
          %s132 = sshll.u32 [#allocation6], 4
          %s133 = int_to_ptr.vmem [resolvable:$true] %s132
          %138 = dma.hbm_to_vmem [thread:$0]  %s1, 4608, %s133, [#allocation7], 64, 64, 4
        $region16: #{tpu_custom_call.1} parent=11 // pred_fallthru
          _
        // Predicated region
        $region17: #{tpu_custom_call.1} parent=11 // pred_check
          %p139 = pneg %p85
        $region18: #{tpu_custom_call.1} parent=11 // pred_check_branch
          %141 = sbr.rel (%p139) target = $region20
        $region19: #{tpu_custom_call.1} parent=11 // pred_region
          _
        $region20: #{tpu_custom_call.1} parent=11 // pred_fallthru
          _
      $region12: #{tpu_custom_call.1} parent=5 // pred_fallthru
        _
      %p142 = scmp.lt.s32.totalorder %s17, 4
      // Predicated region
      $region21: #{tpu_custom_call.1} parent=5 // pred_check
        %p143 = pneg %p142
      $region22: #{tpu_custom_call.1} parent=5 // pred_check_branch
        %145 = sbr.rel (%p143) target = $region24
      $region23: #{tpu_custom_call.1} parent=5 // pred_region
        // Predicated region
        $region25: #{tpu_custom_call.1} parent=23 // pred_check
          %p146 = pneg %p37
        $region26: #{tpu_custom_call.1} parent=23 // pred_check_branch
          %148 = sbr.rel (%p146) target = $region28
        $region27: #{tpu_custom_call.1} parent=23 // pred_region
          %s149 = sand.u32 %s27, 1
          %s150 = scalar_lea.sflag [#allocation4], %s149
          %s151 = sand.u32 %s27, 1
          %s152 = smul.addr %s151, 228
          %s153 = scalar_lea.vmem [#allocation3], %s152
          %s155 = ssub.s32 3648, 3648
          %156 = vsyncadd %s150, %s155
          %s157 = smul.addr %s17, 57
          %s158 = smul.addr %s157, 64
          %s159 = scalar_lea.hbm %s0, %s158
          %s160 = sshll.u32 %s153, 4
          %s161 = int_to_ptr.vmem [resolvable:$true] %s160
          %166 = dma.hbm_to_vmem [thread:$0]  %s159, 3648, %s161, %s150, 64, 64, 4
        $region28: #{tpu_custom_call.1} parent=23 // pred_fallthru
          _
      $region24: #{tpu_custom_call.1} parent=5 // pred_fallthru
        _
      %p167 = scmp.le.s32.totalorder 1, %s17
      %p168 = scmp.lt.s32.totalorder %s17, 5
      %p169 = pnand %p167, %p168
      %p170 = pneg %p169
      // Predicated region
      $region29: #{tpu_custom_call.1} parent=5 // pred_check
        _
      $region30: #{tpu_custom_call.1} parent=5 // pred_check_branch
        %172 = sbr.rel (%p169) target = $region32
      $region31: #{tpu_custom_call.1} parent=5 // pred_region
        %s173 = ssub.s32 %s17, 1
        %s174 = sand.u32 %s30, 1
        %s175 = scalar_lea.sflag [#allocation4], %s174
        %s176 = sand.u32 %s30, 1
        %s177 = smul.addr %s176, 228
        %s178 = scalar_lea.vmem [#allocation3], %s177
        // Predicated region
        $region33: #{tpu_custom_call.1} parent=31 // pred_check
          %p179 = pneg %p43
        $region34: #{tpu_custom_call.1} parent=31 // pred_check_branch
          %181 = sbr.rel (%p179) target = $region36
        $region35: #{tpu_custom_call.1} parent=31 // pred_region
          %182 = dma.done %s175, 3648
        $region36: #{tpu_custom_call.1} parent=31 // pred_fallthru
          _
        // Predicated region
        $region37: #{tpu_custom_call.1} parent=31 // pred_check
          %p183 = pneg %p64
        $region38: #{tpu_custom_call.1} parent=31 // pred_check_branch
          %185 = sbr.rel (%p183) target = $region40
        $region39: #{tpu_custom_call.1} parent=31 // pred_region
          %186 = dma.done [#allocation7], 4608
        $region40: #{tpu_custom_call.1} parent=31 // pred_fallthru
          _
        %s187 = sand.u32 %s30, 1
        %s188 = scalar_lea.sflag [#allocation4], %s187
        %s189 = sand.u32 %s30, 1
        %s190 = smul.addr %s189, 228
        %s191 = scalar_lea.vmem [#allocation3], %s190
        %p192 = pneg %p43
        %p193 = pneg %p40
        %p194 = pneg %p64
        %p195 = pneg %p61
        %p196 = pneg %p85
        %p197 = pneg %p82
        %p198 = pneg %p111
        %p199 = pneg %p108
        %s200 = sand.u32 %s98, 1
        %s201 = scalar_lea.sflag [#allocation5], %s200
        %s202 = sand.u32 %s98, 1
        %s203 = smul.addr %s202, 192
        %s204 = scalar_lea.vmem [#allocation8], %s203
        %v206 = vld [vmem:[%s178] sm:$0xf]
        %v207 = vld [vmem:[%s178 + $0x4] sm:$0xf]
        %v208 = vld [vmem:[%s178 + $0x8] sm:$0xf]
        %v209 = vld [vmem:[%s178 + $0xc] sm:$0xf]
        %v210 = vld [vmem:[%s178 + $0x10] sm:$0xf]
        %v211 = vld [vmem:[%s178 + $0x14] sm:$0xf]
        %v212 = vld [vmem:[%s178 + $0x18] sm:$0xf]
        %v213 = vld [vmem:[%s178 + $0x1c] sm:$0xf]
        %v214 = vld [vmem:[%s178 + $0x20] sm:$0xf]
        %v215 = vld [vmem:[%s178 + $0x24] sm:$0xf]
        %v216 = vld [vmem:[%s178 + $0x28] sm:$0xf]
        %v217 = vld [vmem:[%s178 + $0x2c] sm:$0xf]
        %v218 = vld [vmem:[%s178 + $0x30] sm:$0xf]
        %v219 = vld [vmem:[%s178 + $0x34] sm:$0xf]
        %v220 = vld [vmem:[%s178 + $0x38] sm:$0xf]
        %v221 = vld [vmem:[%s178 + $0x3c] sm:$0xf]
        %v222 = vld [vmem:[%s178 + $0x40] sm:$0xf]
        %v223 = vld [vmem:[%s178 + $0x44] sm:$0xf]
        %v224 = vld [vmem:[%s178 + $0x48] sm:$0xf]
        %v225 = vld [vmem:[%s178 + $0x4c] sm:$0xf]
        %v226 = vld [vmem:[%s178 + $0x50] sm:$0xf]
        %v227 = vld [vmem:[%s178 + $0x54] sm:$0xf]
        %v228 = vld [vmem:[%s178 + $0x58] sm:$0xf]
        %v229 = vld [vmem:[%s178 + $0x5c] sm:$0xf]
        %v230 = vld [vmem:[%s178 + $0x60] sm:$0xf]
        %v231 = vld [vmem:[%s178 + $0x64] sm:$0xf]
        %v232 = vld [vmem:[%s178 + $0x68] sm:$0xf]
        %v233 = vld [vmem:[%s178 + $0x6c] sm:$0xf]
        %v234 = vld [vmem:[%s178 + $0x70] sm:$0xf]
        %v235 = vld [vmem:[%s178 + $0x74] sm:$0xf]
        %v236 = vld [vmem:[%s178 + $0x78] sm:$0xf]
        %v237 = vld [vmem:[%s178 + $0x7c] sm:$0xf]
        %v238 = vld [vmem:[%s178 + $0x80] sm:$0xf]
        %v239 = vld [vmem:[%s178 + $0x84] sm:$0xf]
        %v240 = vld [vmem:[%s178 + $0x88] sm:$0xf]
        %v241 = vld [vmem:[%s178 + $0x8c] sm:$0xf]
        %v242 = vld [vmem:[%s178 + $0x90] sm:$0xf]
        %v243 = vld [vmem:[%s178 + $0x94] sm:$0xf]
        %v244 = vld [vmem:[%s178 + $0x98] sm:$0xf]
        %v245 = vld [vmem:[%s178 + $0x9c] sm:$0xf]
        %v246 = vld [vmem:[%s178 + $0xa0] sm:$0xf]
        %v247 = vld [vmem:[%s178 + $0xa4] sm:$0xf]
        %v248 = vld [vmem:[%s178 + $0xa8] sm:$0xf]
        %v249 = vld [vmem:[%s178 + $0xac] sm:$0xf]
        %v250 = vld [vmem:[%s178 + $0xb0] sm:$0xf]
        %v251 = vld [vmem:[%s178 + $0xb4] sm:$0xf]
        %v252 = vld [vmem:[%s178 + $0xb8] sm:$0xf]
        %v253 = vld [vmem:[%s178 + $0xbc] sm:$0xf]
        %v254 = vld [vmem:[#allocation6] sm:$0xf]
        %v255 = vld [vmem:[#allocation6 + $0x4] sm:$0xf]
        %v256 = vld [vmem:[#allocation6 + $0x8] sm:$0xf]
        %v257 = vld [vmem:[#allocation6 + $0xc] sm:$0xf]
        %v258 = vld [vmem:[#allocation6 + $0x10] sm:$0xf]
        %v259 = vld [vmem:[#allocation6 + $0x14] sm:$0xf]
        %v260 = vld [vmem:[#allocation6 + $0x18] sm:$0xf]
        %v261 = vld [vmem:[#allocation6 + $0x1c] sm:$0xf]
        %v262 = vld [vmem:[%s178 + $0xc0] sm:$0x1]
        %v263 = vld [vmem:[#allocation6 + $0x20] sm:$0xf]
        %v264 = vld [vmem:[#allocation6 + $0x24] sm:$0xf]
        %v265 = vld [vmem:[#allocation6 + $0x28] sm:$0xf]
        %v266 = vld [vmem:[#allocation6 + $0x2c] sm:$0xf]
        %v267 = vld [vmem:[#allocation6 + $0x30] sm:$0xf]
        %v268 = vld [vmem:[#allocation6 + $0x34] sm:$0xf]
        %v269 = vld [vmem:[#allocation6 + $0x38] sm:$0xf]
        %v270 = vld [vmem:[#allocation6 + $0x3c] sm:$0xf]
        %v320 = vunpack.c.l.b16 %v206
        %v321 = vunpack.c.l.b16 %v207
        %v322 = vunpack.c.l.b16 %v208
        %v323 = vunpack.c.l.b16 %v209
        %v324 = vunpack.c.l.b16 %v210
        %v325 = vunpack.c.l.b16 %v211
        %v326 = vunpack.c.l.b16 %v212
        %v327 = vunpack.c.l.b16 %v213
        %v328 = vunpack.c.l.b16 %v214
        %v329 = vunpack.c.l.b16 %v215
        %v330 = vunpack.c.l.b16 %v216
        %v331 = vunpack.c.l.b16 %v217
        %v332 = vunpack.c.l.b16 %v218
        %v333 = vunpack.c.l.b16 %v219
        %v334 = vunpack.c.l.b16 %v220
        %v335 = vunpack.c.l.b16 %v221
        %v336 = vunpack.c.l.b16 %v222
        %v337 = vunpack.c.l.b16 %v223
        %v338 = vunpack.c.l.b16 %v224
        %v339 = vunpack.c.l.b16 %v225
        %v340 = vunpack.c.l.b16 %v226
        %v341 = vunpack.c.l.b16 %v227
        %v342 = vunpack.c.l.b16 %v228
        %v343 = vunpack.c.l.b16 %v229
        %v344 = vunpack.c.l.b16 %v230
        %v345 = vunpack.c.l.b16 %v231
        %v346 = vunpack.c.l.b16 %v232
        %v347 = vunpack.c.l.b16 %v233
        %v348 = vunpack.c.l.b16 %v234
        %v349 = vunpack.c.l.b16 %v235
        %v350 = vunpack.c.l.b16 %v236
        %v351 = vunpack.c.l.b16 %v237
        %v352 = vunpack.c.l.b16 %v238
        %v353 = vunpack.c.l.b16 %v239
        %v354 = vunpack.c.l.b16 %v240
        %v355 = vunpack.c.l.b16 %v241
        %v356 = vunpack.c.l.b16 %v242
        %v357 = vunpack.c.l.b16 %v243
        %v358 = vunpack.c.l.b16 %v244
        %v359 = vunpack.c.l.b16 %v245
        %v360 = vunpack.c.l.b16 %v246
        %v361 = vunpack.c.l.b16 %v247
        %v362 = vunpack.c.l.b16 %v248
        %v363 = vunpack.c.l.b16 %v249
        %v364 = vunpack.c.l.b16 %v250
        %v365 = vunpack.c.l.b16 %v251
        %v366 = vunpack.c.l.b16 %v252
        %v367 = vunpack.c.l.b16 %v253
        %v368 = vunpack.c.l.b16 %v262
        %v369 = vpack.c.b16 %v321, %v320
        %v370 = vpack.c.b16 %v323, %v322
        %v371 = vpack.c.b16 %v325, %v324
        %v372 = vpack.c.b16 %v327, %v326
        %v373 = vpack.c.b16 %v329, %v328
        %v374 = vpack.c.b16 %v331, %v330
        %v375 = vpack.c.b16 %v333, %v332
        %v376 = vpack.c.b16 %v335, %v334
        %v377 = vpack.c.b16 %v337, %v336
        %v378 = vpack.c.b16 %v339, %v338
        %v379 = vpack.c.b16 %v341, %v340
        %v380 = vpack.c.b16 %v343, %v342
        %v381 = vpack.c.b16 %v345, %v344
        %v382 = vpack.c.b16 %v347, %v346
        %v383 = vpack.c.b16 %v349, %v348
        %v384 = vpack.c.b16 %v351, %v350
        %v385 = vpack.c.b16 %v353, %v352
        %v386 = vpack.c.b16 %v355, %v354
        %v387 = vpack.c.b16 %v357, %v356
        %v388 = vpack.c.b16 %v359, %v358
        %v389 = vpack.c.b16 %v361, %v360
        %v390 = vpack.c.b16 %v363, %v362
        %v391 = vpack.c.b16 %v365, %v364
        %v392 = vpack.c.b16 %v367, %v366
        %v393 = vpack.c.b16 %v368, %v368
        %vm394 = vsmask.f32 7424
        %v396 = vshrl.u32 %v369, 16
        %v398 = vshll.u32 %v369, 16
        %v400 = vrot.slane %v398, 1
        %v401 = vor.u32 %v396, %v400
        %v403 = vshll.u32 %v370, 16
        %v405 = vrot.slane %v403, 1
        %v406 = vsel %vm394, %v401, %v405
        %v407 = vshrl.u32 %v370, 16
        %v409 = vor.u32 %v407, %v405
        %v411 = vshll.u32 %v371, 16
        %v413 = vrot.slane %v411, 1
        %v414 = vsel %vm394, %v409, %v413
        %v415 = vshrl.u32 %v371, 16
        %v417 = vor.u32 %v415, %v413
        %v419 = vshll.u32 %v372, 16
        %v421 = vrot.slane %v419, 1
        %v422 = vsel %vm394, %v417, %v421
        %v423 = vshrl.u32 %v372, 16
        %v425 = vor.u32 %v423, %v421
        %v427 = vshll.u32 %v373, 16
        %v429 = vrot.slane %v427, 1
        %v430 = vsel %vm394, %v425, %v429
        %v431 = vshrl.u32 %v373, 16
        %v433 = vor.u32 %v431, %v429
        %v435 = vshll.u32 %v374, 16
        %v437 = vrot.slane %v435, 1
        %v438 = vsel %vm394, %v433, %v437
        %v439 = vshrl.u32 %v374, 16
        %v441 = vor.u32 %v439, %v437
        %v443 = vshll.u32 %v375, 16
        %v445 = vrot.slane %v443, 1
        %v446 = vsel %vm394, %v441, %v445
        %v447 = vshrl.u32 %v375, 16
        %v449 = vor.u32 %v447, %v445
        %v451 = vshll.u32 %v376, 16
        %v453 = vrot.slane %v451, 1
        %v454 = vsel %vm394, %v449, %v453
        %v455 = vshrl.u32 %v376, 16
        %v457 = vor.u32 %v455, %v453
        %v459 = vshll.u32 %v377, 16
        %v461 = vrot.slane %v459, 1
        %v462 = vsel %vm394, %v457, %v461
        %v463 = vshrl.u32 %v377, 16
        %v465 = vor.u32 %v463, %v461
        %v467 = vshll.u32 %v378, 16
        %v469 = vrot.slane %v467, 1
        %v470 = vsel %vm394, %v465, %v469
        %v471 = vshrl.u32 %v378, 16
        %v473 = vor.u32 %v471, %v469
        %v475 = vshll.u32 %v379, 16
        %v477 = vrot.slane %v475, 1
        %v478 = vsel %vm394, %v473, %v477
        %v479 = vshrl.u32 %v379, 16
        %v481 = vor.u32 %v479, %v477
        %v483 = vshll.u32 %v380, 16
        %v485 = vrot.slane %v483, 1
        %v486 = vsel %vm394, %v481, %v485
        %v487 = vshrl.u32 %v380, 16
        %v489 = vor.u32 %v487, %v485
        %v491 = vshll.u32 %v381, 16
        %v493 = vrot.slane %v491, 1
        %v494 = vsel %vm394, %v489, %v493
        %v495 = vshrl.u32 %v381, 16
        %v497 = vor.u32 %v495, %v493
        %v499 = vshll.u32 %v382, 16
        %v501 = vrot.slane %v499, 1
        %v502 = vsel %vm394, %v497, %v501
        %v503 = vshrl.u32 %v382, 16
        %v505 = vor.u32 %v503, %v501
        %v507 = vshll.u32 %v383, 16
        %v509 = vrot.slane %v507, 1
        %v510 = vsel %vm394, %v505, %v509
        %v511 = vshrl.u32 %v383, 16
        %v513 = vor.u32 %v511, %v509
        %v515 = vshll.u32 %v384, 16
        %v517 = vrot.slane %v515, 1
        %v518 = vsel %vm394, %v513, %v517
        %v519 = vshrl.u32 %v384, 16
        %v521 = vor.u32 %v519, %v517
        %v523 = vshll.u32 %v385, 16
        %v525 = vrot.slane %v523, 1
        %v526 = vsel %vm394, %v521, %v525
        %v527 = vshrl.u32 %v385, 16
        %v529 = vor.u32 %v527, %v525
        %v531 = vshll.u32 %v386, 16
        %v533 = vrot.slane %v531, 1
        %v534 = vsel %vm394, %v529, %v533
        %v535 = vshrl.u32 %v386, 16
        %v537 = vor.u32 %v535, %v533
        %v539 = vshll.u32 %v387, 16
        %v541 = vrot.slane %v539, 1
        %v542 = vsel %vm394, %v537, %v541
        %v543 = vshrl.u32 %v387, 16
        %v545 = vor.u32 %v543, %v541
        %v547 = vshll.u32 %v388, 16
        %v549 = vrot.slane %v547, 1
        %v550 = vsel %vm394, %v545, %v549
        %v551 = vshrl.u32 %v388, 16
        %v553 = vor.u32 %v551, %v549
        %v555 = vshll.u32 %v389, 16
        %v557 = vrot.slane %v555, 1
        %v558 = vsel %vm394, %v553, %v557
        %v559 = vshrl.u32 %v389, 16
        %v561 = vor.u32 %v559, %v557
        %v563 = vshll.u32 %v390, 16
        %v565 = vrot.slane %v563, 1
        %v566 = vsel %vm394, %v561, %v565
        %v567 = vshrl.u32 %v390, 16
        %v569 = vor.u32 %v567, %v565
        %v571 = vshll.u32 %v391, 16
        %v573 = vrot.slane %v571, 1
        %v574 = vsel %vm394, %v569, %v573
        %v575 = vshrl.u32 %v391, 16
        %v577 = vor.u32 %v575, %v573
        %v579 = vshll.u32 %v392, 16
        %v581 = vrot.slane %v579, 1
        %v582 = vsel %vm394, %v577, %v581
        %v583 = vshrl.u32 %v392, 16
        %v585 = vor.u32 %v583, %v581
        %v587 = vshll.u32 %v393, 16
        %v589 = vrot.slane %v587, 1
        %v590 = vsel %vm394, %v585, %v589
        %v599 = vunpack.c.l.b16 %v263
        %v600 = vunpack.c.l.b16 %v264
        %v601 = vunpack.c.l.b16 %v265
        %v602 = vunpack.c.l.b16 %v266
        %v603 = vunpack.c.l.b16 %v267
        %v604 = vunpack.c.l.b16 %v268
        %v605 = vunpack.c.l.b16 %v269
        %v606 = vunpack.c.l.b16 %v270
        %v607 = vpack.c.b16 %v600, %v599
        %v608 = vpack.c.b16 %v602, %v601
        %v609 = vpack.c.b16 %v604, %v603
        %v610 = vpack.c.b16 %v606, %v605
        %vm615 = vcmask 523264
        %v617 = vsel %vm615, %v406, 0
        %v620 = vsel %vm615, %v414, 0
        %v623 = vsel %vm615, %v422, 0
        %v626 = vsel %vm615, %v430, 0
        %v629 = vsel %vm615, %v438, 0
        %v632 = vsel %vm615, %v446, 0
        %v635 = vsel %vm615, %v454, 0
        %v638 = vsel %vm615, %v462, 0
        %v641 = vsel %vm615, %v470, 0
        %v644 = vsel %vm615, %v478, 0
        %v647 = vsel %vm615, %v486, 0
        %v650 = vsel %vm615, %v494, 0
        %v653 = vsel %vm615, %v502, 0
        %v656 = vsel %vm615, %v510, 0
        %v659 = vsel %vm615, %v518, 0
        %v662 = vsel %vm615, %v526, 0
        %v665 = vsel %vm615, %v534, 0
        %v668 = vsel %vm615, %v542, 0
        %v671 = vsel %vm615, %v550, 0
        %v674 = vsel %vm615, %v558, 0
        %v677 = vsel %vm615, %v566, 0
        %v680 = vsel %vm615, %v574, 0
        %v683 = vsel %vm615, %v582, 0
        %v686 = vsel %vm615, %v590, 0
        %688 = vmatprep.subr.bf16.mxu0 0
        %689 = vmatpush1.bf16.msra.mxu0 %v607
        %690 = vmatprep.subr.bf16.mxu0 0
        %691 = vmatpush1.bf16.msra.mxu0 %v608
        %692 = vmatprep.subr.bf16.mxu0 0
        %693 = vmatpush1.bf16.msra.mxu0 %v609
        %694 = vmatprep.subr.bf16.mxu0 0
        %695 = vmatpush1.bf16.msra.mxu0 %v610
        %696 = vmatprep.subr.bf16.mxu0 0
        %697 = vmatpush1.bf16.msra.mxu0 0
        %698 = vmatprep.subr.bf16.mxu0 0
        %699 = vmatpush1.bf16.msra.mxu0 0
        %700 = vmatprep.subr.bf16.mxu0 0
        %701 = vmatpush1.bf16.msra.mxu0 0
        %702 = vmatprep.subr.bf16.mxu0 0
        %703 = vmatpush1.bf16.msra.mxu0 0
        %704 = vmatprep.subr.bf16.mxu0 0
        %705 = vmatpush1.bf16.msra.mxu0 0
        %706 = vmatprep.subr.bf16.mxu0 0
        %707 = vmatpush1.bf16.msra.mxu0 0
        %708 = vmatprep.subr.bf16.mxu0 0
        %709 = vmatpush1.bf16.msra.mxu0 0
        %710 = vmatprep.subr.bf16.mxu0 0
        %711 = vmatpush1.bf16.msra.mxu0 0
        %712 = vmatprep.subr.bf16.mxu0 0
        %713 = vmatpush1.bf16.msra.mxu0 0
        %714 = vmatprep.subr.bf16.mxu0 0
        %715 = vmatpush1.bf16.msra.mxu0 0
        %716 = vmatprep.subr.bf16.mxu0 0
        %717 = vmatpush1.bf16.msra.mxu0 0
        %718 = vmatprep.subr.bf16.mxu0 0
        %719 = vmatpush1.bf16.msra.mxu0 0
        %720 = vmatprep.mubr.bf16.mxu0 0
        %721 = vmatmul.mubr.bf16.gmra.mrb[0].mxu0 %v617
        %v722 = vpop.f32.mrb[0].mxu0
        %v723 = vadd.f32 0.0, %v722
        %v724 = vpop.f32.mrb[0].mxu0
        %v725 = vpop.f32.mrb[0].mxu0
        %v726 = vadd.f32 0.0, %v725
        %v727 = vpop.f32.mrb[0].mxu0
        %728 = vmatprep.mubr.bf16.mxu0 0
        %729 = vmatmul.mubr.bf16.gmra.mrb[0].mxu0 %v620
        %v730 = vpop.f32.mrb[0].mxu0
        %v731 = vadd.f32 0.0, %v730
        %v732 = vpop.f32.mrb[0].mxu0
        %v733 = vpop.f32.mrb[0].mxu0
        %v734 = vadd.f32 0.0, %v733
        %v735 = vpop.f32.mrb[0].mxu0
        %736 = vmatprep.mubr.bf16.mxu0 0
        %737 = vmatmul.mubr.bf16.gmra.mrb[0].mxu0 %v623
        %v738 = vpop.f32.mrb[0].mxu0
        %v739 = vadd.f32 0.0, %v738
        %v740 = vpop.f32.mrb[0].mxu0
        %v741 = vpop.f32.mrb[0].mxu0
        %v742 = vadd.f32 0.0, %v741
        %v743 = vpop.f32.mrb[0].mxu0
        %744 = vmatprep.mubr.bf16.mxu0 0
        %745 = vmatmul.mubr.bf16.gmra.mrb[0].mxu0 %v626
        %v746 = vpop.f32.mrb[0].mxu0
        %v747 = vadd.f32 0.0, %v746
        %v748 = vpop.f32.mrb[0].mxu0
        %v749 = vpop.f32.mrb[0].mxu0
        %v750 = vadd.f32 0.0, %v749
        %v751 = vpop.f32.mrb[0].mxu0
        %752 = vmatprep.mubr.bf16.mxu0 0
        %753 = vmatmul.mubr.bf16.gmra.mrb[0].mxu0 %v629
        %v754 = vpop.f32.mrb[0].mxu0
        %v755 = vadd.f32 0.0, %v754
        %v756 = vpop.f32.mrb[0].mxu0
        %v757 = vpop.f32.mrb[0].mxu0
        %v758 = vadd.f32 0.0, %v757
        %v759 = vpop.f32.mrb[0].mxu0
        %760 = vmatprep.mubr.bf16.mxu0 0
        %761 = vmatmul.mubr.bf16.gmra.mrb[0].mxu0 %v632
        %v762 = vpop.f32.mrb[0].mxu0
        %v763 = vadd.f32 0.0, %v762
        %v764 = vpop.f32.mrb[0].mxu0
        %v765 = vpop.f32.mrb[0].mxu0
        %v766 = vadd.f32 0.0, %v765
        %v767 = vpop.f32.mrb[0].mxu0
        %768 = vmatprep.mubr.bf16.mxu0 0
        %769 = vmatmul.mubr.bf16.gmra.mrb[0].mxu0 %v635
        %v770 = vpop.f32.mrb[0].mxu0
        %v771 = vadd.f32 0.0, %v770
        %v772 = vpop.f32.mrb[0].mxu0
        %v773 = vpop.f32.mrb[0].mxu0
        %v774 = vadd.f32 0.0, %v773
        %v775 = vpop.f32.mrb[0].mxu0
        %776 = vmatprep.mubr.bf16.mxu0 0
        %777 = vmatmul.mubr.bf16.gmra.mrb[0].mxu0 %v638
        %v778 = vpop.f32.mrb[0].mxu0
        %v779 = vadd.f32 0.0, %v778
        %v780 = vpop.f32.mrb[0].mxu0
        %v781 = vpop.f32.mrb[0].mxu0
        %v782 = vadd.f32 0.0, %v781
        %v783 = vpop.f32.mrb[0].mxu0
        %784 = vmatprep.mubr.bf16.mxu0 0
        %785 = vmatmul.mubr.bf16.gmra.mrb[0].mxu0 %v641
        %v786 = vpop.f32.mrb[0].mxu0
        %v787 = vadd.f32 0.0, %v786
        %v788 = vpop.f32.mrb[0].mxu0
        %v789 = vpop.f32.mrb[0].mxu0
        %v790 = vadd.f32 0.0, %v789
        %v791 = vpop.f32.mrb[0].mxu0
        %792 = vmatprep.mubr.bf16.mxu0 0
        %793 = vmatmul.mubr.bf16.gmra.mrb[0].mxu0 %v644
        %v794 = vpop.f32.mrb[0].mxu0
        %v795 = vadd.f32 0.0, %v794
        %v796 = vpop.f32.mrb[0].mxu0
        %v797 = vpop.f32.mrb[0].mxu0
        %v798 = vadd.f32 0.0, %v797
        %v799 = vpop.f32.mrb[0].mxu0
        %800 = vmatprep.mubr.bf16.mxu0 0
        %801 = vmatmul.mubr.bf16.gmra.mrb[0].mxu0 %v647
        %v802 = vpop.f32.mrb[0].mxu0
        %v803 = vadd.f32 0.0, %v802
        %v804 = vpop.f32.mrb[0].mxu0
        %v805 = vpop.f32.mrb[0].mxu0
        %v806 = vadd.f32 0.0, %v805
        %v807 = vpop.f32.mrb[0].mxu0
        %808 = vmatprep.mubr.bf16.mxu0 0
        %809 = vmatmul.mubr.bf16.gmra.mrb[0].mxu0 %v650
        %v810 = vpop.f32.mrb[0].mxu0
        %v811 = vadd.f32 0.0, %v810
        %v812 = vpop.f32.mrb[0].mxu0
        %v813 = vpop.f32.mrb[0].mxu0
        %v814 = vadd.f32 0.0, %v813
        %v815 = vpop.f32.mrb[0].mxu0
        %816 = vmatprep.mubr.bf16.mxu0 0
        %817 = vmatmul.mubr.bf16.gmra.mrb[0].mxu0 %v653
        %v818 = vpop.f32.mrb[0].mxu0
        %v819 = vadd.f32 0.0, %v818
        %v820 = vpop.f32.mrb[0].mxu0
        %v821 = vpop.f32.mrb[0].mxu0
        %v822 = vadd.f32 0.0, %v821
        %v823 = vpop.f32.mrb[0].mxu0
        %824 = vmatprep.mubr.bf16.mxu0 0
        %825 = vmatmul.mubr.bf16.gmra.mrb[0].mxu0 %v656
        %v826 = vpop.f32.mrb[0].mxu0
        %v827 = vadd.f32 0.0, %v826
        %v828 = vpop.f32.mrb[0].mxu0
        %v829 = vpop.f32.mrb[0].mxu0
        %v830 = vadd.f32 0.0, %v829
        %v831 = vpop.f32.mrb[0].mxu0
        %832 = vmatprep.mubr.bf16.mxu0 0
        %833 = vmatmul.mubr.bf16.gmra.mrb[0].mxu0 %v659
        %v834 = vpop.f32.mrb[0].mxu0
        %v835 = vadd.f32 0.0, %v834
        %v836 = vpop.f32.mrb[0].mxu0
        %v837 = vpop.f32.mrb[0].mxu0
        %v838 = vadd.f32 0.0, %v837
        %v839 = vpop.f32.mrb[0].mxu0
        %840 = vmatprep.mubr.bf16.mxu0 0
        %841 = vmatmul.mubr.bf16.gmra.mrb[0].mxu0 %v662
        %v842 = vpop.f32.mrb[0].mxu0
        %v843 = vadd.f32 0.0, %v842
        %v844 = vpop.f32.mrb[0].mxu0
        %v845 = vpop.f32.mrb[0].mxu0
        %v846 = vadd.f32 0.0, %v845
        %v847 = vpop.f32.mrb[0].mxu0
        %848 = vmatprep.mubr.bf16.mxu0 0
        %849 = vmatmul.mubr.bf16.gmra.mrb[0].mxu0 %v665
        %v850 = vpop.f32.mrb[0].mxu0
        %v851 = vadd.f32 0.0, %v850
        %v852 = vpop.f32.mrb[0].mxu0
        %v853 = vpop.f32.mrb[0].mxu0
        %v854 = vadd.f32 0.0, %v853
        %v855 = vpop.f32.mrb[0].mxu0
        %856 = vmatprep.mubr.bf16.mxu0 0
        %857 = vmatmul.mubr.bf16.gmra.mrb[0].mxu0 %v668
        %v858 = vpop.f32.mrb[0].mxu0
        %v859 = vadd.f32 0.0, %v858
        %v860 = vpop.f32.mrb[0].mxu0
        %v861 = vpop.f32.mrb[0].mxu0
        %v862 = vadd.f32 0.0, %v861
        %v863 = vpop.f32.mrb[0].mxu0
        %864 = vmatprep.mubr.bf16.mxu0 0
        %865 = vmatmul.mubr.bf16.gmra.mrb[0].mxu0 %v671
        %v866 = vpop.f32.mrb[0].mxu0
        %v867 = vadd.f32 0.0, %v866
        %v868 = vpop.f32.mrb[0].mxu0
        %v869 = vpop.f32.mrb[0].mxu0
        %v870 = vadd.f32 0.0, %v869
        %v871 = vpop.f32.mrb[0].mxu0
        %872 = vmatprep.mubr.bf16.mxu0 0
        %873 = vmatmul.mubr.bf16.gmra.mrb[0].mxu0 %v674
        %v874 = vpop.f32.mrb[0].mxu0
        %v875 = vadd.f32 0.0, %v874
        %v876 = vpop.f32.mrb[0].mxu0
        %v877 = vpop.f32.mrb[0].mxu0
        %v878 = vadd.f32 0.0, %v877
        %v879 = vpop.f32.mrb[0].mxu0
        %880 = vmatprep.mubr.bf16.mxu0 0
        %881 = vmatmul.mubr.bf16.gmra.mrb[0].mxu0 %v677
        %v882 = vpop.f32.mrb[0].mxu0
        %v883 = vadd.f32 0.0, %v882
        %v884 = vpop.f32.mrb[0].mxu0
        %v885 = vpop.f32.mrb[0].mxu0
        %v886 = vadd.f32 0.0, %v885
        %v887 = vpop.f32.mrb[0].mxu0
        %888 = vmatprep.mubr.bf16.mxu0 0
        %889 = vmatmul.mubr.bf16.gmra.mrb[0].mxu0 %v680
        %v890 = vpop.f32.mrb[0].mxu0
        %v891 = vadd.f32 0.0, %v890
        %v892 = vpop.f32.mrb[0].mxu0
        %v893 = vpop.f32.mrb[0].mxu0
        %v894 = vadd.f32 0.0, %v893
        %v895 = vpop.f32.mrb[0].mxu0
        %896 = vmatprep.mubr.bf16.mxu0 0
        %897 = vmatmul.mubr.bf16.gmra.mrb[0].mxu0 %v683
        %v898 = vpop.f32.mrb[0].mxu0
        %v899 = vadd.f32 0.0, %v898
        %v900 = vpop.f32.mrb[0].mxu0
        %v901 = vpop.f32.mrb[0].mxu0
        %v902 = vadd.f32 0.0, %v901
        %v903 = vpop.f32.mrb[0].mxu0
        %904 = vmatprep.mubr.bf16.mxu0 0
        %905 = vmatmul.mubr.bf16.gmra.mrb[0].mxu0 %v686
        %v906 = vpop.f32.mrb[0].mxu0
        %v907 = vadd.f32 0.0, %v906
        %v908 = vpop.f32.mrb[0].mxu0
        %v909 = vpop.f32.mrb[0].mxu0
        %v910 = vadd.f32 0.0, %v909
        %v911 = vpop.f32.mrb[0].mxu0
        %912 = vdwg.mxu0
        %v921 = vunpack.c.l.b16 %v254
        %v922 = vunpack.c.l.b16 %v255
        %v923 = vunpack.c.l.b16 %v256
        %v924 = vunpack.c.l.b16 %v257
        %v925 = vunpack.c.l.b16 %v258
        %v926 = vunpack.c.l.b16 %v259
        %v927 = vunpack.c.l.b16 %v260
        %v928 = vunpack.c.l.b16 %v261
        %v929 = vpack.c.b16 %v922, %v921
        %v930 = vpack.c.b16 %v924, %v923
        %v931 = vpack.c.b16 %v926, %v925
        %v932 = vpack.c.b16 %v928, %v927
        %v937 = vsel %vm615, %v369, 0
        %v939 = vsel %vm615, %v370, 0
        %v941 = vsel %vm615, %v371, 0
        %v943 = vsel %vm615, %v372, 0
        %v945 = vsel %vm615, %v373, 0
        %v947 = vsel %vm615, %v374, 0
        %v949 = vsel %vm615, %v375, 0
        %v951 = vsel %vm615, %v376, 0
        %v953 = vsel %vm615, %v377, 0
        %v955 = vsel %vm615, %v378, 0
        %v957 = vsel %vm615, %v379, 0
        %v959 = vsel %vm615, %v380, 0
        %v961 = vsel %vm615, %v381, 0
        %v963 = vsel %vm615, %v382, 0
        %v965 = vsel %vm615, %v383, 0
        %v967 = vsel %vm615, %v384, 0
        %v969 = vsel %vm615, %v385, 0
        %v971 = vsel %vm615, %v386, 0
        %v973 = vsel %vm615, %v387, 0
        %v975 = vsel %vm615, %v388, 0
        %v977 = vsel %vm615, %v389, 0
        %v979 = vsel %vm615, %v390, 0
        %v981 = vsel %vm615, %v391, 0
        %v983 = vsel %vm615, %v392, 0
        %985 = vmatprep.subr.bf16.mxu0 0
        %986 = vmatpush1.bf16.msra.mxu0 %v929
        %987 = vmatprep.subr.bf16.mxu0 0
        %988 = vmatpush1.bf16.msra.mxu0 %v930
        %989 = vmatprep.subr.bf16.mxu0 0
        %990 = vmatpush1.bf16.msra.mxu0 %v931
        %991 = vmatprep.subr.bf16.mxu0 0
        %992 = vmatpush1.bf16.msra.mxu0 %v932
        %993 = vmatprep.subr.bf16.mxu0 0
        %994 = vmatpush1.bf16.msra.mxu0 0
        %995 = vmatprep.subr.bf16.mxu0 0
        %996 = vmatpush1.bf16.msra.mxu0 0
        %997 = vmatprep.subr.bf16.mxu0 0
        %998 = vmatpush1.bf16.msra.mxu0 0
        %999 = vmatprep.subr.bf16.mxu0 0
        %1000 = vmatpush1.bf16.msra.mxu0 0
        %1001 = vmatprep.subr.bf16.mxu0 0
        %1002 = vmatpush1.bf16.msra.mxu0 0
        %1003 = vmatprep.subr.bf16.mxu0 0
        %1004 = vmatpush1.bf16.msra.mxu0 0
        %1005 = vmatprep.subr.bf16.mxu0 0
        %1006 = vmatpush1.bf16.msra.mxu0 0
        %1007 = vmatprep.subr.bf16.mxu0 0
        %1008 = vmatpush1.bf16.msra.mxu0 0
        %1009 = vmatprep.subr.bf16.mxu0 0
        %1010 = vmatpush1.bf16.msra.mxu0 0
        %1011 = vmatprep.subr.bf16.mxu0 0
        %1012 = vmatpush1.bf16.msra.mxu0 0
        %1013 = vmatprep.subr.bf16.mxu0 0
        %1014 = vmatpush1.bf16.msra.mxu0 0
        %1015 = vmatprep.subr.bf16.mxu0 0
        %1016 = vmatpush1.bf16.msra.mxu0 0
        %1017 = vmatprep.mubr.bf16.mxu0 0
        %1018 = vmatmul.mubr.bf16.gmra.mrb[0].mxu0 %v937
        %v1019 = vpop.f32.mrb[0].mxu0
        %v1020 = vadd.f32 %v723, %v1019
        %v1021 = vpop.f32.mrb[0].mxu0
        %v1022 = vpop.f32.mrb[0].mxu0
        %v1023 = vadd.f32 %v726, %v1022
        %v1024 = vpop.f32.mrb[0].mxu0
        %1025 = vmatprep.mubr.bf16.mxu0 0
        %1026 = vmatmul.mubr.bf16.gmra.mrb[0].mxu0 %v939
        %v1027 = vpop.f32.mrb[0].mxu0
        %v1028 = vadd.f32 %v731, %v1027
        %v1029 = vpop.f32.mrb[0].mxu0
        %v1030 = vpop.f32.mrb[0].mxu0
        %v1031 = vadd.f32 %v734, %v1030
        %v1032 = vpop.f32.mrb[0].mxu0
        %1033 = vmatprep.mubr.bf16.mxu0 0
        %1034 = vmatmul.mubr.bf16.gmra.mrb[0].mxu0 %v941
        %v1035 = vpop.f32.mrb[0].mxu0
        %v1036 = vadd.f32 %v739, %v1035
        %v1037 = vpop.f32.mrb[0].mxu0
        %v1038 = vpop.f32.mrb[0].mxu0
        %v1039 = vadd.f32 %v742, %v1038
        %v1040 = vpop.f32.mrb[0].mxu0
        %1041 = vmatprep.mubr.bf16.mxu0 0
        %1042 = vmatmul.mubr.bf16.gmra.mrb[0].mxu0 %v943
        %v1043 = vpop.f32.mrb[0].mxu0
        %v1044 = vadd.f32 %v747, %v1043
        %v1045 = vpop.f32.mrb[0].mxu0
        %v1046 = vpop.f32.mrb[0].mxu0
        %v1047 = vadd.f32 %v750, %v1046
        %v1048 = vpop.f32.mrb[0].mxu0
        %1049 = vmatprep.mubr.bf16.mxu0 0
        %1050 = vmatmul.mubr.bf16.gmra.mrb[0].mxu0 %v945
        %v1051 = vpop.f32.mrb[0].mxu0
        %v1052 = vadd.f32 %v755, %v1051
        %v1053 = vpop.f32.mrb[0].mxu0
        %v1054 = vpop.f32.mrb[0].mxu0
        %v1055 = vadd.f32 %v758, %v1054
        %v1056 = vpop.f32.mrb[0].mxu0
        %1057 = vmatprep.mubr.bf16.mxu0 0
        %1058 = vmatmul.mubr.bf16.gmra.mrb[0].mxu0 %v947
        %v1059 = vpop.f32.mrb[0].mxu0
        %v1060 = vadd.f32 %v763, %v1059
        %v1061 = vpop.f32.mrb[0].mxu0
        %v1062 = vpop.f32.mrb[0].mxu0
        %v1063 = vadd.f32 %v766, %v1062
        %v1064 = vpop.f32.mrb[0].mxu0
        %1065 = vmatprep.mubr.bf16.mxu0 0
        %1066 = vmatmul.mubr.bf16.gmra.mrb[0].mxu0 %v949
        %v1067 = vpop.f32.mrb[0].mxu0
        %v1068 = vadd.f32 %v771, %v1067
        %v1069 = vpop.f32.mrb[0].mxu0
        %v1070 = vpop.f32.mrb[0].mxu0
        %v1071 = vadd.f32 %v774, %v1070
        %v1072 = vpop.f32.mrb[0].mxu0
        %1073 = vmatprep.mubr.bf16.mxu0 0
        %1074 = vmatmul.mubr.bf16.gmra.mrb[0].mxu0 %v951
        %v1075 = vpop.f32.mrb[0].mxu0
        %v1076 = vadd.f32 %v779, %v1075
        %v1077 = vpop.f32.mrb[0].mxu0
        %v1078 = vpop.f32.mrb[0].mxu0
        %v1079 = vadd.f32 %v782, %v1078
        %v1080 = vpop.f32.mrb[0].mxu0
        %1081 = vmatprep.mubr.bf16.mxu0 0
        %1082 = vmatmul.mubr.bf16.gmra.mrb[0].mxu0 %v953
        %v1083 = vpop.f32.mrb[0].mxu0
        %v1084 = vadd.f32 %v787, %v1083
        %v1085 = vpop.f32.mrb[0].mxu0
        %v1086 = vpop.f32.mrb[0].mxu0
        %v1087 = vadd.f32 %v790, %v1086
        %v1088 = vpop.f32.mrb[0].mxu0
        %1089 = vmatprep.mubr.bf16.mxu0 0
        %1090 = vmatmul.mubr.bf16.gmra.mrb[0].mxu0 %v955
        %v1091 = vpop.f32.mrb[0].mxu0
        %v1092 = vadd.f32 %v795, %v1091
        %v1093 = vpop.f32.mrb[0].mxu0
        %v1094 = vpop.f32.mrb[0].mxu0
        %v1095 = vadd.f32 %v798, %v1094
        %v1096 = vpop.f32.mrb[0].mxu0
        %1097 = vmatprep.mubr.bf16.mxu0 0
        %1098 = vmatmul.mubr.bf16.gmra.mrb[0].mxu0 %v957
        %v1099 = vpop.f32.mrb[0].mxu0
        %v1100 = vadd.f32 %v803, %v1099
        %v1101 = vpop.f32.mrb[0].mxu0
        %v1102 = vpop.f32.mrb[0].mxu0
        %v1103 = vadd.f32 %v806, %v1102
        %v1104 = vpop.f32.mrb[0].mxu0
        %1105 = vmatprep.mubr.bf16.mxu0 0
        %1106 = vmatmul.mubr.bf16.gmra.mrb[0].mxu0 %v959
        %v1107 = vpop.f32.mrb[0].mxu0
        %v1108 = vadd.f32 %v811, %v1107
        %v1109 = vpop.f32.mrb[0].mxu0
        %v1110 = vpop.f32.mrb[0].mxu0
        %v1111 = vadd.f32 %v814, %v1110
        %v1112 = vpop.f32.mrb[0].mxu0
        %1113 = vmatprep.mubr.bf16.mxu0 0
        %1114 = vmatmul.mubr.bf16.gmra.mrb[0].mxu0 %v961
        %v1115 = vpop.f32.mrb[0].mxu0
        %v1116 = vadd.f32 %v819, %v1115
        %v1117 = vpop.f32.mrb[0].mxu0
        %v1118 = vpop.f32.mrb[0].mxu0
        %v1119 = vadd.f32 %v822, %v1118
        %v1120 = vpop.f32.mrb[0].mxu0
        %1121 = vmatprep.mubr.bf16.mxu0 0
        %1122 = vmatmul.mubr.bf16.gmra.mrb[0].mxu0 %v963
        %v1123 = vpop.f32.mrb[0].mxu0
        %v1124 = vadd.f32 %v827, %v1123
        %v1125 = vpop.f32.mrb[0].mxu0
        %v1126 = vpop.f32.mrb[0].mxu0
        %v1127 = vadd.f32 %v830, %v1126
        %v1128 = vpop.f32.mrb[0].mxu0
        %1129 = vmatprep.mubr.bf16.mxu0 0
        %1130 = vmatmul.mubr.bf16.gmra.mrb[0].mxu0 %v965
        %v1131 = vpop.f32.mrb[0].mxu0
        %v1132 = vadd.f32 %v835, %v1131
        %v1133 = vpop.f32.mrb[0].mxu0
        %v1134 = vpop.f32.mrb[0].mxu0
        %v1135 = vadd.f32 %v838, %v1134
        %v1136 = vpop.f32.mrb[0].mxu0
        %1137 = vmatprep.mubr.bf16.mxu0 0
        %1138 = vmatmul.mubr.bf16.gmra.mrb[0].mxu0 %v967
        %v1139 = vpop.f32.mrb[0].mxu0
        %v1140 = vadd.f32 %v843, %v1139
        %v1141 = vpop.f32.mrb[0].mxu0
        %v1142 = vpop.f32.mrb[0].mxu0
        %v1143 = vadd.f32 %v846, %v1142
        %v1144 = vpop.f32.mrb[0].mxu0
        %1145 = vmatprep.mubr.bf16.mxu0 0
        %1146 = vmatmul.mubr.bf16.gmra.mrb[0].mxu0 %v969
        %v1147 = vpop.f32.mrb[0].mxu0
        %v1148 = vadd.f32 %v851, %v1147
        %v1149 = vpop.f32.mrb[0].mxu0
        %v1150 = vpop.f32.mrb[0].mxu0
        %v1151 = vadd.f32 %v854, %v1150
        %v1152 = vpop.f32.mrb[0].mxu0
        %1153 = vmatprep.mubr.bf16.mxu0 0
        %1154 = vmatmul.mubr.bf16.gmra.mrb[0].mxu0 %v971
        %v1155 = vpop.f32.mrb[0].mxu0
        %v1156 = vadd.f32 %v859, %v1155
        %v1157 = vpop.f32.mrb[0].mxu0
        %v1158 = vpop.f32.mrb[0].mxu0
        %v1159 = vadd.f32 %v862, %v1158
        %v1160 = vpop.f32.mrb[0].mxu0
        %1161 = vmatprep.mubr.bf16.mxu0 0
        %1162 = vmatmul.mubr.bf16.gmra.mrb[0].mxu0 %v973
        %v1163 = vpop.f32.mrb[0].mxu0
        %v1164 = vadd.f32 %v867, %v1163
        %v1165 = vpop.f32.mrb[0].mxu0
        %v1166 = vpop.f32.mrb[0].mxu0
        %v1167 = vadd.f32 %v870, %v1166
        %v1168 = vpop.f32.mrb[0].mxu0
        %1169 = vmatprep.mubr.bf16.mxu0 0
        %1170 = vmatmul.mubr.bf16.gmra.mrb[0].mxu0 %v975
        %v1171 = vpop.f32.mrb[0].mxu0
        %v1172 = vadd.f32 %v875, %v1171
        %v1173 = vpop.f32.mrb[0].mxu0
        %v1174 = vpop.f32.mrb[0].mxu0
        %v1175 = vadd.f32 %v878, %v1174
        %v1176 = vpop.f32.mrb[0].mxu0
        %1177 = vmatprep.mubr.bf16.mxu0 0
        %1178 = vmatmul.mubr.bf16.gmra.mrb[0].mxu0 %v977
        %v1179 = vpop.f32.mrb[0].mxu0
        %v1180 = vadd.f32 %v883, %v1179
        %v1181 = vpop.f32.mrb[0].mxu0
        %v1182 = vpop.f32.mrb[0].mxu0
        %v1183 = vadd.f32 %v886, %v1182
        %v1184 = vpop.f32.mrb[0].mxu0
        %1185 = vmatprep.mubr.bf16.mxu0 0
        %1186 = vmatmul.mubr.bf16.gmra.mrb[0].mxu0 %v979
        %v1187 = vpop.f32.mrb[0].mxu0
        %v1188 = vadd.f32 %v891, %v1187
        %v1189 = vpop.f32.mrb[0].mxu0
        %v1190 = vpop.f32.mrb[0].mxu0
        %v1191 = vadd.f32 %v894, %v1190
        %v1192 = vpop.f32.mrb[0].mxu0
        %1193 = vmatprep.mubr.bf16.mxu0 0
        %1194 = vmatmul.mubr.bf16.gmra.mrb[0].mxu0 %v981
        %v1195 = vpop.f32.mrb[0].mxu0
        %v1196 = vadd.f32 %v899, %v1195
        %v1197 = vpop.f32.mrb[0].mxu0
        %v1198 = vpop.f32.mrb[0].mxu0
        %v1199 = vadd.f32 %v902, %v1198
        %v1200 = vpop.f32.mrb[0].mxu0
        %1201 = vmatprep.mubr.bf16.mxu0 0
        %1202 = vmatmul.mubr.bf16.gmra.mrb[0].mxu0 %v983
        %v1203 = vpop.f32.mrb[0].mxu0
        %v1204 = vadd.f32 %v907, %v1203
        %v1205 = vpop.f32.mrb[0].mxu0
        %v1206 = vpop.f32.mrb[0].mxu0
        %v1207 = vadd.f32 %v910, %v1206
        %v1208 = vpop.f32.mrb[0].mxu0
        %1209 = vdwg.mxu0
        %v1210 = vld [vmem:[%s178] sm:$0xe]
        %v1211 = vld [vmem:[#allocation6 + $0x40] sm:$0xf]
        %v1212 = vld [vmem:[#allocation6 + $0x44] sm:$0xf]
        %v1213 = vld [vmem:[#allocation6 + $0x48] sm:$0xf]
        %v1214 = vld [vmem:[#allocation6 + $0x4c] sm:$0xf]
        %v1215 = vld [vmem:[#allocation6 + $0x50] sm:$0xf]
        %v1216 = vld [vmem:[#allocation6 + $0x54] sm:$0xf]
        %v1217 = vld [vmem:[#allocation6 + $0x58] sm:$0xf]
        %v1218 = vld [vmem:[#allocation6 + $0x5c] sm:$0xf]
        %v1220 = vunpack.c.l.b16 %v1210
        %v1221 = vpack.c.b16 %v321, %v1220
        %vm1222 = vcmask 1046528
        %v1223 = vrot.slane %v1221, 1
        %v1224 = vrot.slane %v370, 1
        %v1225 = vsel %vm1222, %v1223, %v1224
        %v1226 = vrot.slane %v371, 1
        %v1227 = vsel %vm1222, %v1224, %v1226
        %v1228 = vrot.slane %v372, 1
        %v1229 = vsel %vm1222, %v1226, %v1228
        %v1230 = vrot.slane %v373, 1
        %v1231 = vsel %vm1222, %v1228, %v1230
        %v1232 = vrot.slane %v374, 1
        %v1233 = vsel %vm1222, %v1230, %v1232
        %v1234 = vrot.slane %v375, 1
        %v1235 = vsel %vm1222, %v1232, %v1234
        %v1236 = vrot.slane %v376, 1
        %v1237 = vsel %vm1222, %v1234, %v1236
        %v1238 = vrot.slane %v377, 1
        %v1239 = vsel %vm1222, %v1236, %v1238
        %v1240 = vrot.slane %v378, 1
        %v1241 = vsel %vm1222, %v1238, %v1240
        %v1242 = vrot.slane %v379, 1
        %v1243 = vsel %vm1222, %v1240, %v1242
        %v1244 = vrot.slane %v380, 1
        %v1245 = vsel %vm1222, %v1242, %v1244
        %v1246 = vrot.slane %v381, 1
        %v1247 = vsel %vm1222, %v1244, %v1246
        %v1248 = vrot.slane %v382, 1
        %v1249 = vsel %vm1222, %v1246, %v1248
        %v1250 = vrot.slane %v383, 1
        %v1251 = vsel %vm1222, %v1248, %v1250
        %v1252 = vrot.slane %v384, 1
        %v1253 = vsel %vm1222, %v1250, %v1252
        %v1254 = vrot.slane %v385, 1
        %v1255 = vsel %vm1222, %v1252, %v1254
        %v1256 = vrot.slane %v386, 1
        %v1257 = vsel %vm1222, %v1254, %v1256
        %v1258 = vrot.slane %v387, 1
        %v1259 = vsel %vm1222, %v1256, %v1258
        %v1260 = vrot.slane %v388, 1
        %v1261 = vsel %vm1222, %v1258, %v1260
        %v1262 = vrot.slane %v389, 1
        %v1263 = vsel %vm1222, %v1260, %v1262
        %v1264 = vrot.slane %v390, 1
        %v1265 = vsel %vm1222, %v1262, %v1264
        %v1266 = vrot.slane %v391, 1
        %v1267 = vsel %vm1222, %v1264, %v1266
        %v1268 = vrot.slane %v392, 1
        %v1269 = vsel %vm1222, %v1266, %v1268
        %v1270 = vrot.slane %v393, 1
        %v1271 = vsel %vm1222, %v1268, %v1270
        %v1280 = vunpack.c.l.b16 %v1211
        %v1281 = vunpack.c.l.b16 %v1212
        %v1282 = vunpack.c.l.b16 %v1213
        %v1283 = vunpack.c.l.b16 %v1214
        %v1284 = vunpack.c.l.b16 %v1215
        %v1285 = vunpack.c.l.b16 %v1216
        %v1286 = vunpack.c.l.b16 %v1217
        %v1287 = vunpack.c.l.b16 %v1218
        %v1288 = vpack.c.b16 %v1281, %v1280
        %v1289 = vpack.c.b16 %v1283, %v1282
        %v1290 = vpack.c.b16 %v1285, %v1284
        %v1291 = vpack.c.b16 %v1287, %v1286
        %v1297 = vsel %vm615, %v1225, 0
        %v1300 = vsel %vm615, %v1227, 0
        %v1303 = vsel %vm615, %v1229, 0
        %v1306 = vsel %vm615, %v1231, 0
        %v1309 = vsel %vm615, %v1233, 0
        %v1312 = vsel %vm615, %v1235, 0
        %v1315 = vsel %vm615, %v1237, 0
        %v1318 = vsel %vm615, %v1239, 0
        %v1321 = vsel %vm615, %v1241, 0
        %v1324 = vsel %vm615, %v1243, 0
        %v1327 = vsel %vm615, %v1245, 0
        %v1330 = vsel %vm615, %v1247, 0
        %v1333 = vsel %vm615, %v1249, 0
        %v1336 = vsel %vm615, %v1251, 0
        %v1339 = vsel %vm615, %v1253, 0
        %v1342 = vsel %vm615, %v1255, 0
        %v1345 = vsel %vm615, %v1257, 0
        %v1348 = vsel %vm615, %v1259, 0
        %v1351 = vsel %vm615, %v1261, 0
        %v1354 = vsel %vm615, %v1263, 0
        %v1357 = vsel %vm615, %v1265, 0
        %v1360 = vsel %vm615, %v1267, 0
        %v1363 = vsel %vm615, %v1269, 0
        %v1366 = vsel %vm615, %v1271, 0
        %1368 = vmatprep.subr.bf16.mxu0 0
        %1369 = vmatpush1.bf16.msra.mxu0 %v1288
        %1370 = vmatprep.subr.bf16.mxu0 0
        %1371 = vmatpush1.bf16.msra.mxu0 %v1289
        %1372 = vmatprep.subr.bf16.mxu0 0
        %1373 = vmatpush1.bf16.msra.mxu0 %v1290
        %1374 = vmatprep.subr.bf16.mxu0 0
        %1375 = vmatpush1.bf16.msra.mxu0 %v1291
        %1376 = vmatprep.subr.bf16.mxu0 0
        %1377 = vmatpush1.bf16.msra.mxu0 0
        %1378 = vmatprep.subr.bf16.mxu0 0
        %1379 = vmatpush1.bf16.msra.mxu0 0
        %1380 = vmatprep.subr.bf16.mxu0 0
        %1381 = vmatpush1.bf16.msra.mxu0 0
        %1382 = vmatprep.subr.bf16.mxu0 0
        %1383 = vmatpush1.bf16.msra.mxu0 0
        %1384 = vmatprep.subr.bf16.mxu0 0
        %1385 = vmatpush1.bf16.msra.mxu0 0
        %1386 = vmatprep.subr.bf16.mxu0 0
        %1387 = vmatpush1.bf16.msra.mxu0 0
        %1388 = vmatprep.subr.bf16.mxu0 0
        %1389 = vmatpush1.bf16.msra.mxu0 0
        %1390 = vmatprep.subr.bf16.mxu0 0
        %1391 = vmatpush1.bf16.msra.mxu0 0
        %1392 = vmatprep.subr.bf16.mxu0 0
        %1393 = vmatpush1.bf16.msra.mxu0 0
        %1394 = vmatprep.subr.bf16.mxu0 0
        %1395 = vmatpush1.bf16.msra.mxu0 0
        %1396 = vmatprep.subr.bf16.mxu0 0
        %1397 = vmatpush1.bf16.msra.mxu0 0
        %1398 = vmatprep.subr.bf16.mxu0 0
        %1399 = vmatpush1.bf16.msra.mxu0 0
        %1400 = vmatprep.mubr.bf16.mxu0 0
        %1401 = vmatmul.mubr.bf16.gmra.mrb[0].mxu0 %v1297
        %v1402 = vpop.f32.mrb[0].mxu0
        %v1403 = vadd.f32 0.0, %v1402
        %v1404 = vpop.f32.mrb[0].mxu0
        %v1405 = vpop.f32.mrb[0].mxu0
        %v1406 = vadd.f32 0.0, %v1405
        %v1407 = vpop.f32.mrb[0].mxu0
        %1408 = vmatprep.mubr.bf16.mxu0 0
        %1409 = vmatmul.mubr.bf16.gmra.mrb[0].mxu0 %v1300
        %v1410 = vpop.f32.mrb[0].mxu0
        %v1411 = vadd.f32 0.0, %v1410
        %v1412 = vpop.f32.mrb[0].mxu0
        %v1413 = vpop.f32.mrb[0].mxu0
        %v1414 = vadd.f32 0.0, %v1413
        %v1415 = vpop.f32.mrb[0].mxu0
        %1416 = vmatprep.mubr.bf16.mxu0 0
        %1417 = vmatmul.mubr.bf16.gmra.mrb[0].mxu0 %v1303
        %v1418 = vpop.f32.mrb[0].mxu0
        %v1419 = vadd.f32 0.0, %v1418
        %v1420 = vpop.f32.mrb[0].mxu0
        %v1421 = vpop.f32.mrb[0].mxu0
        %v1422 = vadd.f32 0.0, %v1421
        %v1423 = vpop.f32.mrb[0].mxu0
        %1424 = vmatprep.mubr.bf16.mxu0 0
        %1425 = vmatmul.mubr.bf16.gmra.mrb[0].mxu0 %v1306
        %v1426 = vpop.f32.mrb[0].mxu0
        %v1427 = vadd.f32 0.0, %v1426
        %v1428 = vpop.f32.mrb[0].mxu0
        %v1429 = vpop.f32.mrb[0].mxu0
        %v1430 = vadd.f32 0.0, %v1429
        %v1431 = vpop.f32.mrb[0].mxu0
        %1432 = vmatprep.mubr.bf16.mxu0 0
        %1433 = vmatmul.mubr.bf16.gmra.mrb[0].mxu0 %v1309
        %v1434 = vpop.f32.mrb[0].mxu0
        %v1435 = vadd.f32 0.0, %v1434
        %v1436 = vpop.f32.mrb[0].mxu0
        %v1437 = vpop.f32.mrb[0].mxu0
        %v1438 = vadd.f32 0.0, %v1437
        %v1439 = vpop.f32.mrb[0].mxu0
        %1440 = vmatprep.mubr.bf16.mxu0 0
        %1441 = vmatmul.mubr.bf16.gmra.mrb[0].mxu0 %v1312
        %v1442 = vpop.f32.mrb[0].mxu0
        %v1443 = vadd.f32 0.0, %v1442
        %v1444 = vpop.f32.mrb[0].mxu0
        %v1445 = vpop.f32.mrb[0].mxu0
        %v1446 = vadd.f32 0.0, %v1445
        %v1447 = vpop.f32.mrb[0].mxu0
        %1448 = vmatprep.mubr.bf16.mxu0 0
        %1449 = vmatmul.mubr.bf16.gmra.mrb[0].mxu0 %v1315
        %v1450 = vpop.f32.mrb[0].mxu0
        %v1451 = vadd.f32 0.0, %v1450
        %v1452 = vpop.f32.mrb[0].mxu0
        %v1453 = vpop.f32.mrb[0].mxu0
        %v1454 = vadd.f32 0.0, %v1453
        %v1455 = vpop.f32.mrb[0].mxu0
        %1456 = vmatprep.mubr.bf16.mxu0 0
        %1457 = vmatmul.mubr.bf16.gmra.mrb[0].mxu0 %v1318
        %v1458 = vpop.f32.mrb[0].mxu0
        %v1459 = vadd.f32 0.0, %v1458
        %v1460 = vpop.f32.mrb[0].mxu0
        %v1461 = vpop.f32.mrb[0].mxu0
        %v1462 = vadd.f32 0.0, %v1461
        %v1463 = vpop.f32.mrb[0].mxu0
        %1464 = vmatprep.mubr.bf16.mxu0 0
        %1465 = vmatmul.mubr.bf16.gmra.mrb[0].mxu0 %v1321
        %v1466 = vpop.f32.mrb[0].mxu0
        %v1467 = vadd.f32 0.0, %v1466
        %v1468 = vpop.f32.mrb[0].mxu0
        %v1469 = vpop.f32.mrb[0].mxu0
        %v1470 = vadd.f32 0.0, %v1469
        %v1471 = vpop.f32.mrb[0].mxu0
        %1472 = vmatprep.mubr.bf16.mxu0 0
        %1473 = vmatmul.mubr.bf16.gmra.mrb[0].mxu0 %v1324
        %v1474 = vpop.f32.mrb[0].mxu0
        %v1475 = vadd.f32 0.0, %v1474
        %v1476 = vpop.f32.mrb[0].mxu0
        %v1477 = vpop.f32.mrb[0].mxu0
        %v1478 = vadd.f32 0.0, %v1477
        %v1479 = vpop.f32.mrb[0].mxu0
        %1480 = vmatprep.mubr.bf16.mxu0 0
        %1481 = vmatmul.mubr.bf16.gmra.mrb[0].mxu0 %v1327
        %v1482 = vpop.f32.mrb[0].mxu0
        %v1483 = vadd.f32 0.0, %v1482
        %v1484 = vpop.f32.mrb[0].mxu0
        %v1485 = vpop.f32.mrb[0].mxu0
        %v1486 = vadd.f32 0.0, %v1485
        %v1487 = vpop.f32.mrb[0].mxu0
        %1488 = vmatprep.mubr.bf16.mxu0 0
        %1489 = vmatmul.mubr.bf16.gmra.mrb[0].mxu0 %v1330
        %v1490 = vpop.f32.mrb[0].mxu0
        %v1491 = vadd.f32 0.0, %v1490
        %v1492 = vpop.f32.mrb[0].mxu0
        %v1493 = vpop.f32.mrb[0].mxu0
        %v1494 = vadd.f32 0.0, %v1493
        %v1495 = vpop.f32.mrb[0].mxu0
        %1496 = vmatprep.mubr.bf16.mxu0 0
        %1497 = vmatmul.mubr.bf16.gmra.mrb[0].mxu0 %v1333
        %v1498 = vpop.f32.mrb[0].mxu0
        %v1499 = vadd.f32 0.0, %v1498
        %v1500 = vpop.f32.mrb[0].mxu0
        %v1501 = vpop.f32.mrb[0].mxu0
        %v1502 = vadd.f32 0.0, %v1501
        %v1503 = vpop.f32.mrb[0].mxu0
        %1504 = vmatprep.mubr.bf16.mxu0 0
        %1505 = vmatmul.mubr.bf16.gmra.mrb[0].mxu0 %v1336
        %v1506 = vpop.f32.mrb[0].mxu0
        %v1507 = vadd.f32 0.0, %v1506
        %v1508 = vpop.f32.mrb[0].mxu0
        %v1509 = vpop.f32.mrb[0].mxu0
        %v1510 = vadd.f32 0.0, %v1509
        %v1511 = vpop.f32.mrb[0].mxu0
        %1512 = vmatprep.mubr.bf16.mxu0 0
        %1513 = vmatmul.mubr.bf16.gmra.mrb[0].mxu0 %v1339
        %v1514 = vpop.f32.mrb[0].mxu0
        %v1515 = vadd.f32 0.0, %v1514
        %v1516 = vpop.f32.mrb[0].mxu0
        %v1517 = vpop.f32.mrb[0].mxu0
        %v1518 = vadd.f32 0.0, %v1517
        %v1519 = vpop.f32.mrb[0].mxu0
        %1520 = vmatprep.mubr.bf16.mxu0 0
        %1521 = vmatmul.mubr.bf16.gmra.mrb[0].mxu0 %v1342
        %v1522 = vpop.f32.mrb[0].mxu0
        %v1523 = vadd.f32 0.0, %v1522
        %v1524 = vpop.f32.mrb[0].mxu0
        %v1525 = vpop.f32.mrb[0].mxu0
        %v1526 = vadd.f32 0.0, %v1525
        %v1527 = vpop.f32.mrb[0].mxu0
        %1528 = vmatprep.mubr.bf16.mxu0 0
        %1529 = vmatmul.mubr.bf16.gmra.mrb[0].mxu0 %v1345
        %v1530 = vpop.f32.mrb[0].mxu0
        %v1531 = vadd.f32 0.0, %v1530
        %v1532 = vpop.f32.mrb[0].mxu0
        %v1533 = vpop.f32.mrb[0].mxu0
        %v1534 = vadd.f32 0.0, %v1533
        %v1535 = vpop.f32.mrb[0].mxu0
        %1536 = vmatprep.mubr.bf16.mxu0 0
        %1537 = vmatmul.mubr.bf16.gmra.mrb[0].mxu0 %v1348
        %v1538 = vpop.f32.mrb[0].mxu0
        %v1539 = vadd.f32 0.0, %v1538
        %v1540 = vpop.f32.mrb[0].mxu0
        %v1541 = vpop.f32.mrb[0].mxu0
        %v1542 = vadd.f32 0.0, %v1541
        %v1543 = vpop.f32.mrb[0].mxu0
        %1544 = vmatprep.mubr.bf16.mxu0 0
        %1545 = vmatmul.mubr.bf16.gmra.mrb[0].mxu0 %v1351
        %v1546 = vpop.f32.mrb[0].mxu0
        %v1547 = vadd.f32 0.0, %v1546
        %v1548 = vpop.f32.mrb[0].mxu0
        %v1549 = vpop.f32.mrb[0].mxu0
        %v1550 = vadd.f32 0.0, %v1549
        %v1551 = vpop.f32.mrb[0].mxu0
        %1552 = vmatprep.mubr.bf16.mxu0 0
        %1553 = vmatmul.mubr.bf16.gmra.mrb[0].mxu0 %v1354
        %v1554 = vpop.f32.mrb[0].mxu0
        %v1555 = vadd.f32 0.0, %v1554
        %v1556 = vpop.f32.mrb[0].mxu0
        %v1557 = vpop.f32.mrb[0].mxu0
        %v1558 = vadd.f32 0.0, %v1557
        %v1559 = vpop.f32.mrb[0].mxu0
        %1560 = vmatprep.mubr.bf16.mxu0 0
        %1561 = vmatmul.mubr.bf16.gmra.mrb[0].mxu0 %v1357
        %v1562 = vpop.f32.mrb[0].mxu0
        %v1563 = vadd.f32 0.0, %v1562
        %v1564 = vpop.f32.mrb[0].mxu0
        %v1565 = vpop.f32.mrb[0].mxu0
        %v1566 = vadd.f32 0.0, %v1565
        %v1567 = vpop.f32.mrb[0].mxu0
        %1568 = vmatprep.mubr.bf16.mxu0 0
        %1569 = vmatmul.mubr.bf16.gmra.mrb[0].mxu0 %v1360
        %v1570 = vpop.f32.mrb[0].mxu0
        %v1571 = vadd.f32 0.0, %v1570
        %v1572 = vpop.f32.mrb[0].mxu0
        %v1573 = vpop.f32.mrb[0].mxu0
        %v1574 = vadd.f32 0.0, %v1573
        %v1575 = vpop.f32.mrb[0].mxu0
        %1576 = vmatprep.mubr.bf16.mxu0 0
        %1577 = vmatmul.mubr.bf16.gmra.mrb[0].mxu0 %v1363
        %v1578 = vpop.f32.mrb[0].mxu0
        %v1579 = vadd.f32 0.0, %v1578
        %v1580 = vpop.f32.mrb[0].mxu0
        %v1581 = vpop.f32.mrb[0].mxu0
        %v1582 = vadd.f32 0.0, %v1581
        %v1583 = vpop.f32.mrb[0].mxu0
        %1584 = vmatprep.mubr.bf16.mxu0 0
        %1585 = vmatmul.mubr.bf16.gmra.mrb[0].mxu0 %v1366
        %v1586 = vpop.f32.mrb[0].mxu0
        %v1587 = vadd.f32 0.0, %v1586
        %v1588 = vpop.f32.mrb[0].mxu0
        %v1589 = vpop.f32.mrb[0].mxu0
        %v1590 = vadd.f32 0.0, %v1589
        %v1591 = vpop.f32.mrb[0].mxu0
        %1592 = vdwg.mxu0
        %v1593 = vadd.f32 %v1020, %v1403
        %v1594 = vadd.f32 %v1023, %v1406
        %v1595 = vadd.f32 %v1028, %v1411
        %v1596 = vadd.f32 %v1031, %v1414
        %v1597 = vadd.f32 %v1036, %v1419
        %v1598 = vadd.f32 %v1039, %v1422
        %v1599 = vadd.f32 %v1044, %v1427
        %v1600 = vadd.f32 %v1047, %v1430
        %v1601 = vadd.f32 %v1052, %v1435
        %v1602 = vadd.f32 %v1055, %v1438
        %v1603 = vadd.f32 %v1060, %v1443
        %v1604 = vadd.f32 %v1063, %v1446
        %v1605 = vadd.f32 %v1068, %v1451
        %v1606 = vadd.f32 %v1071, %v1454
        %v1607 = vadd.f32 %v1076, %v1459
        %v1608 = vadd.f32 %v1079, %v1462
        %v1609 = vadd.f32 %v1084, %v1467
        %v1610 = vadd.f32 %v1087, %v1470
        %v1611 = vadd.f32 %v1092, %v1475
        %v1612 = vadd.f32 %v1095, %v1478
        %v1613 = vadd.f32 %v1100, %v1483
        %v1614 = vadd.f32 %v1103, %v1486
        %v1615 = vadd.f32 %v1108, %v1491
        %v1616 = vadd.f32 %v1111, %v1494
        %v1617 = vadd.f32 %v1116, %v1499
        %v1618 = vadd.f32 %v1119, %v1502
        %v1619 = vadd.f32 %v1124, %v1507
        %v1620 = vadd.f32 %v1127, %v1510
        %v1621 = vadd.f32 %v1132, %v1515
        %v1622 = vadd.f32 %v1135, %v1518
        %v1623 = vadd.f32 %v1140, %v1523
        %v1624 = vadd.f32 %v1143, %v1526
        %v1625 = vadd.f32 %v1148, %v1531
        %v1626 = vadd.f32 %v1151, %v1534
        %v1627 = vadd.f32 %v1156, %v1539
        %v1628 = vadd.f32 %v1159, %v1542
        %v1629 = vadd.f32 %v1164, %v1547
        %v1630 = vadd.f32 %v1167, %v1550
        %v1631 = vadd.f32 %v1172, %v1555
        %v1632 = vadd.f32 %v1175, %v1558
        %v1633 = vadd.f32 %v1180, %v1563
        %v1634 = vadd.f32 %v1183, %v1566
        %v1635 = vadd.f32 %v1188, %v1571
        %v1636 = vadd.f32 %v1191, %v1574
        %v1637 = vadd.f32 %v1196, %v1579
        %v1638 = vadd.f32 %v1199, %v1582
        %v1639 = vadd.f32 %v1204, %v1587
        %v1640 = vadd.f32 %v1207, %v1590
        %v1641 = vld [vmem:[%s178 + $0xc] sm:$0xf]
        %v1642 = vld [vmem:[%s178 + $0x10] sm:$0xf]
        %v1643 = vld [vmem:[%s178 + $0x14] sm:$0xf]
        %v1644 = vld [vmem:[%s178 + $0x18] sm:$0xf]
        %v1645 = vld [vmem:[%s178 + $0x1c] sm:$0xf]
        %v1646 = vld [vmem:[%s178 + $0x20] sm:$0xf]
        %v1647 = vld [vmem:[%s178 + $0x24] sm:$0xf]
        %v1648 = vld [vmem:[%s178 + $0x28] sm:$0xf]
        %v1649 = vld [vmem:[%s178 + $0x2c] sm:$0xf]
        %v1650 = vld [vmem:[%s178 + $0x30] sm:$0xf]
        %v1651 = vld [vmem:[%s178 + $0x34] sm:$0xf]
        %v1652 = vld [vmem:[%s178 + $0x38] sm:$0xf]
        %v1653 = vld [vmem:[%s178 + $0x3c] sm:$0xf]
        %v1654 = vld [vmem:[%s178 + $0x40] sm:$0xf]
        %v1655 = vld [vmem:[%s178 + $0x44] sm:$0xf]
        %v1656 = vld [vmem:[%s178 + $0x48] sm:$0xf]
        %v1657 = vld [vmem:[%s178 + $0x4c] sm:$0xf]
        %v1658 = vld [vmem:[%s178 + $0x50] sm:$0xf]
        %v1659 = vld [vmem:[%s178 + $0x54] sm:$0xf]
        %v1660 = vld [vmem:[%s178 + $0x58] sm:$0xf]
        %v1661 = vld [vmem:[%s178 + $0x5c] sm:$0xf]
        %v1662 = vld [vmem:[%s178 + $0x60] sm:$0xf]
        %v1663 = vld [vmem:[%s178 + $0x64] sm:$0xf]
        %v1664 = vld [vmem:[%s178 + $0x68] sm:$0xf]
        %v1665 = vld [vmem:[%s178 + $0x6c] sm:$0xf]
        %v1666 = vld [vmem:[%s178 + $0x70] sm:$0xf]
        %v1667 = vld [vmem:[%s178 + $0x74] sm:$0xf]
        %v1668 = vld [vmem:[%s178 + $0x78] sm:$0xf]
        %v1669 = vld [vmem:[%s178 + $0x7c] sm:$0xf]
        %v1670 = vld [vmem:[%s178 + $0x80] sm:$0xf]
        %v1671 = vld [vmem:[%s178 + $0x84] sm:$0xf]
        %v1672 = vld [vmem:[%s178 + $0x88] sm:$0xf]
        %v1673 = vld [vmem:[%s178 + $0x8c] sm:$0xf]
        %v1674 = vld [vmem:[%s178 + $0x90] sm:$0xf]
        %v1675 = vld [vmem:[%s178 + $0x94] sm:$0xf]
        %v1676 = vld [vmem:[%s178 + $0x98] sm:$0xf]
        %v1677 = vld [vmem:[%s178 + $0x9c] sm:$0xf]
        %v1678 = vld [vmem:[%s178 + $0xa0] sm:$0xf]
        %v1679 = vld [vmem:[%s178 + $0xa4] sm:$0xf]
        %v1680 = vld [vmem:[%s178 + $0xa8] sm:$0xf]
        %v1681 = vld [vmem:[%s178 + $0xac] sm:$0xf]
        %v1682 = vld [vmem:[%s178 + $0xb0] sm:$0xf]
        %v1683 = vld [vmem:[%s178 + $0xb4] sm:$0xf]
        %v1684 = vld [vmem:[%s178 + $0xb8] sm:$0xf]
        %v1685 = vld [vmem:[%s178 + $0xbc] sm:$0xf]
        %v1686 = vld [vmem:[%s178 + $0xc0] sm:$0xf]
        %v1687 = vld [vmem:[%s178 + $0xc4] sm:$0xf]
        %v1688 = vld [vmem:[%s178 + $0xc8] sm:$0xf]
        %v1689 = vld [vmem:[#allocation6 + $0x60] sm:$0xf]
        %v1690 = vld [vmem:[#allocation6 + $0x64] sm:$0xf]
        %v1691 = vld [vmem:[#allocation6 + $0x68] sm:$0xf]
        %v1692 = vld [vmem:[#allocation6 + $0x6c] sm:$0xf]
        %v1693 = vld [vmem:[#allocation6 + $0x70] sm:$0xf]
        %v1694 = vld [vmem:[#allocation6 + $0x74] sm:$0xf]
        %v1695 = vld [vmem:[#allocation6 + $0x78] sm:$0xf]
        %v1696 = vld [vmem:[#allocation6 + $0x7c] sm:$0xf]
        %v1745 = vunpack.c.l.b16 %v1641
        %v1746 = vunpack.c.l.b16 %v1642
        %v1747 = vunpack.c.l.b16 %v1643
        %v1748 = vunpack.c.l.b16 %v1644
        %v1749 = vunpack.c.l.b16 %v1645
        %v1750 = vunpack.c.l.b16 %v1646
        %v1751 = vunpack.c.l.b16 %v1647
        %v1752 = vunpack.c.l.b16 %v1648
        %v1753 = vunpack.c.l.b16 %v1649
        %v1754 = vunpack.c.l.b16 %v1650
        %v1755 = vunpack.c.l.b16 %v1651
        %v1756 = vunpack.c.l.b16 %v1652
        %v1757 = vunpack.c.l.b16 %v1653
        %v1758 = vunpack.c.l.b16 %v1654
        %v1759 = vunpack.c.l.b16 %v1655
        %v1760 = vunpack.c.l.b16 %v1656
        %v1761 = vunpack.c.l.b16 %v1657
        %v1762 = vunpack.c.l.b16 %v1658
        %v1763 = vunpack.c.l.b16 %v1659
        %v1764 = vunpack.c.l.b16 %v1660
        %v1765 = vunpack.c.l.b16 %v1661
        %v1766 = vunpack.c.l.b16 %v1662
        %v1767 = vunpack.c.l.b16 %v1663
        %v1768 = vunpack.c.l.b16 %v1664
        %v1769 = vunpack.c.l.b16 %v1665
        %v1770 = vunpack.c.l.b16 %v1666
        %v1771 = vunpack.c.l.b16 %v1667
        %v1772 = vunpack.c.l.b16 %v1668
        %v1773 = vunpack.c.l.b16 %v1669
        %v1774 = vunpack.c.l.b16 %v1670
        %v1775 = vunpack.c.l.b16 %v1671
        %v1776 = vunpack.c.l.b16 %v1672
        %v1777 = vunpack.c.l.b16 %v1673
        %v1778 = vunpack.c.l.b16 %v1674
        %v1779 = vunpack.c.l.b16 %v1675
        %v1780 = vunpack.c.l.b16 %v1676
        %v1781 = vunpack.c.l.b16 %v1677
        %v1782 = vunpack.c.l.b16 %v1678
        %v1783 = vunpack.c.l.b16 %v1679
        %v1784 = vunpack.c.l.b16 %v1680
        %v1785 = vunpack.c.l.b16 %v1681
        %v1786 = vunpack.c.l.b16 %v1682
        %v1787 = vunpack.c.l.b16 %v1683
        %v1788 = vunpack.c.l.b16 %v1684
        %v1789 = vunpack.c.l.b16 %v1685
        %v1790 = vunpack.c.l.b16 %v1686
        %v1791 = vunpack.c.l.b16 %v1687
        %v1792 = vunpack.c.l.b16 %v1688
        %v1793 = vpack.c.b16 %v1746, %v1745
        %v1794 = vpack.c.b16 %v1748, %v1747
        %v1795 = vpack.c.b16 %v1750, %v1749
        %v1796 = vpack.c.b16 %v1752, %v1751
        %v1797 = vpack.c.b16 %v1754, %v1753
        %v1798 = vpack.c.b16 %v1756, %v1755
        %v1799 = vpack.c.b16 %v1758, %v1757
        %v1800 = vpack.c.b16 %v1760, %v1759
        %v1801 = vpack.c.b16 %v1762, %v1761
        %v1802 = vpack.c.b16 %v1764, %v1763
        %v1803 = vpack.c.b16 %v1766, %v1765
        %v1804 = vpack.c.b16 %v1768, %v1767
        %v1805 = vpack.c.b16 %v1770, %v1769
        %v1806 = vpack.c.b16 %v1772, %v1771
        %v1807 = vpack.c.b16 %v1774, %v1773
        %v1808 = vpack.c.b16 %v1776, %v1775
        %v1809 = vpack.c.b16 %v1778, %v1777
        %v1810 = vpack.c.b16 %v1780, %v1779
        %v1811 = vpack.c.b16 %v1782, %v1781
        %v1812 = vpack.c.b16 %v1784, %v1783
        %v1813 = vpack.c.b16 %v1786, %v1785
        %v1814 = vpack.c.b16 %v1788, %v1787
        %v1815 = vpack.c.b16 %v1790, %v1789
        %v1816 = vpack.c.b16 %v1792, %v1791
        %v1825 = vunpack.c.l.b16 %v1689
        %v1826 = vunpack.c.l.b16 %v1690
        %v1827 = vunpack.c.l.b16 %v1691
        %v1828 = vunpack.c.l.b16 %v1692
        %v1829 = vunpack.c.l.b16 %v1693
        %v1830 = vunpack.c.l.b16 %v1694
        %v1831 = vunpack.c.l.b16 %v1695
        %v1832 = vunpack.c.l.b16 %v1696
        %v1833 = vpack.c.b16 %v1826, %v1825
        %v1834 = vpack.c.b16 %v1828, %v1827
        %v1835 = vpack.c.b16 %v1830, %v1829
        %v1836 = vpack.c.b16 %v1832, %v1831
        %v1842 = vsel %vm615, %v1793, 0
        %v1845 = vsel %vm615, %v1794, 0
        %v1848 = vsel %vm615, %v1795, 0
        %v1851 = vsel %vm615, %v1796, 0
        %v1854 = vsel %vm615, %v1797, 0
        %v1857 = vsel %vm615, %v1798, 0
        %v1860 = vsel %vm615, %v1799, 0
        %v1863 = vsel %vm615, %v1800, 0
        %v1866 = vsel %vm615, %v1801, 0
        %v1869 = vsel %vm615, %v1802, 0
        %v1872 = vsel %vm615, %v1803, 0
        %v1875 = vsel %vm615, %v1804, 0
        %v1878 = vsel %vm615, %v1805, 0
        %v1881 = vsel %vm615, %v1806, 0
        %v1884 = vsel %vm615, %v1807, 0
        %v1887 = vsel %vm615, %v1808, 0
        %v1890 = vsel %vm615, %v1809, 0
        %v1893 = vsel %vm615, %v1810, 0
        %v1896 = vsel %vm615, %v1811, 0
        %v1899 = vsel %vm615, %v1812, 0
        %v1902 = vsel %vm615, %v1813, 0
        %v1905 = vsel %vm615, %v1814, 0
        %v1908 = vsel %vm615, %v1815, 0
        %v1911 = vsel %vm615, %v1816, 0
        %1913 = vmatprep.subr.bf16.mxu0 0
        %1914 = vmatpush1.bf16.msra.mxu0 %v1833
        %1915 = vmatprep.subr.bf16.mxu0 0
        %1916 = vmatpush1.bf16.msra.mxu0 %v1834
        %1917 = vmatprep.subr.bf16.mxu0 0
        %1918 = vmatpush1.bf16.msra.mxu0 %v1835
        %1919 = vmatprep.subr.bf16.mxu0 0
        %1920 = vmatpush1.bf16.msra.mxu0 %v1836
        %1921 = vmatprep.subr.bf16.mxu0 0
        %1922 = vmatpush1.bf16.msra.mxu0 0
        %1923 = vmatprep.subr.bf16.mxu0 0
        %1924 = vmatpush1.bf16.msra.mxu0 0
        %1925 = vmatprep.subr.bf16.mxu0 0
        %1926 = vmatpush1.bf16.msra.mxu0 0
        %1927 = vmatprep.subr.bf16.mxu0 0
        %1928 = vmatpush1.bf16.msra.mxu0 0
        %1929 = vmatprep.subr.bf16.mxu0 0
        %1930 = vmatpush1.bf16.msra.mxu0 0
        %1931 = vmatprep.subr.bf16.mxu0 0
        %1932 = vmatpush1.bf16.msra.mxu0 0
        %1933 = vmatprep.subr.bf16.mxu0 0
        %1934 = vmatpush1.bf16.msra.mxu0 0
        %1935 = vmatprep.subr.bf16.mxu0 0
        %1936 = vmatpush1.bf16.msra.mxu0 0
        %1937 = vmatprep.subr.bf16.mxu0 0
        %1938 = vmatpush1.bf16.msra.mxu0 0
        %1939 = vmatprep.subr.bf16.mxu0 0
        %1940 = vmatpush1.bf16.msra.mxu0 0
        %1941 = vmatprep.subr.bf16.mxu0 0
        %1942 = vmatpush1.bf16.msra.mxu0 0
        %1943 = vmatprep.subr.bf16.mxu0 0
        %1944 = vmatpush1.bf16.msra.mxu0 0
        %1945 = vmatprep.mubr.bf16.mxu0 0
        %1946 = vmatmul.mubr.bf16.gmra.mrb[0].mxu0 %v1842
        %v1947 = vpop.f32.mrb[0].mxu0
        %v1948 = vadd.f32 0.0, %v1947
        %v1949 = vpop.f32.mrb[0].mxu0
        %v1950 = vpop.f32.mrb[0].mxu0
        %v1951 = vadd.f32 0.0, %v1950
        %v1952 = vpop.f32.mrb[0].mxu0
        %1953 = vmatprep.mubr.bf16.mxu0 0
        %1954 = vmatmul.mubr.bf16.gmra.mrb[0].mxu0 %v1845
        %v1955 = vpop.f32.mrb[0].mxu0
        %v1956 = vadd.f32 0.0, %v1955
        %v1957 = vpop.f32.mrb[0].mxu0
        %v1958 = vpop.f32.mrb[0].mxu0
        %v1959 = vadd.f32 0.0, %v1958
        %v1960 = vpop.f32.mrb[0].mxu0
        %1961 = vmatprep.mubr.bf16.mxu0 0
        %1962 = vmatmul.mubr.bf16.gmra.mrb[0].mxu0 %v1848
        %v1963 = vpop.f32.mrb[0].mxu0
        %v1964 = vadd.f32 0.0, %v1963
        %v1965 = vpop.f32.mrb[0].mxu0
        %v1966 = vpop.f32.mrb[0].mxu0
        %v1967 = vadd.f32 0.0, %v1966
        %v1968 = vpop.f32.mrb[0].mxu0
        %1969 = vmatprep.mubr.bf16.mxu0 0
        %1970 = vmatmul.mubr.bf16.gmra.mrb[0].mxu0 %v1851
        %v1971 = vpop.f32.mrb[0].mxu0
        %v1972 = vadd.f32 0.0, %v1971
        %v1973 = vpop.f32.mrb[0].mxu0
        %v1974 = vpop.f32.mrb[0].mxu0
        %v1975 = vadd.f32 0.0, %v1974
        %v1976 = vpop.f32.mrb[0].mxu0
        %1977 = vmatprep.mubr.bf16.mxu0 0
        %1978 = vmatmul.mubr.bf16.gmra.mrb[0].mxu0 %v1854
        %v1979 = vpop.f32.mrb[0].mxu0
        %v1980 = vadd.f32 0.0, %v1979
        %v1981 = vpop.f32.mrb[0].mxu0
        %v1982 = vpop.f32.mrb[0].mxu0
        %v1983 = vadd.f32 0.0, %v1982
        %v1984 = vpop.f32.mrb[0].mxu0
        %1985 = vmatprep.mubr.bf16.mxu0 0
        %1986 = vmatmul.mubr.bf16.gmra.mrb[0].mxu0 %v1857
        %v1987 = vpop.f32.mrb[0].mxu0
        %v1988 = vadd.f32 0.0, %v1987
        %v1989 = vpop.f32.mrb[0].mxu0
        %v1990 = vpop.f32.mrb[0].mxu0
        %v1991 = vadd.f32 0.0, %v1990
        %v1992 = vpop.f32.mrb[0].mxu0
        %1993 = vmatprep.mubr.bf16.mxu0 0
        %1994 = vmatmul.mubr.bf16.gmra.mrb[0].mxu0 %v1860
        %v1995 = vpop.f32.mrb[0].mxu0
        %v1996 = vadd.f32 0.0, %v1995
        %v1997 = vpop.f32.mrb[0].mxu0
        %v1998 = vpop.f32.mrb[0].mxu0
        %v1999 = vadd.f32 0.0, %v1998
        %v2000 = vpop.f32.mrb[0].mxu0
        %2001 = vmatprep.mubr.bf16.mxu0 0
        %2002 = vmatmul.mubr.bf16.gmra.mrb[0].mxu0 %v1863
        %v2003 = vpop.f32.mrb[0].mxu0
        %v2004 = vadd.f32 0.0, %v2003
        %v2005 = vpop.f32.mrb[0].mxu0
        %v2006 = vpop.f32.mrb[0].mxu0
        %v2007 = vadd.f32 0.0, %v2006
        %v2008 = vpop.f32.mrb[0].mxu0
        %2009 = vmatprep.mubr.bf16.mxu0 0
        %2010 = vmatmul.mubr.bf16.gmra.mrb[0].mxu0 %v1866
        %v2011 = vpop.f32.mrb[0].mxu0
        %v2012 = vadd.f32 0.0, %v2011
        %v2013 = vpop.f32.mrb[0].mxu0
        %v2014 = vpop.f32.mrb[0].mxu0
        %v2015 = vadd.f32 0.0, %v2014
        %v2016 = vpop.f32.mrb[0].mxu0
        %2017 = vmatprep.mubr.bf16.mxu0 0
        %2018 = vmatmul.mubr.bf16.gmra.mrb[0].mxu0 %v1869
        %v2019 = vpop.f32.mrb[0].mxu0
        %v2020 = vadd.f32 0.0, %v2019
        %v2021 = vpop.f32.mrb[0].mxu0
        %v2022 = vpop.f32.mrb[0].mxu0
        %v2023 = vadd.f32 0.0, %v2022
        %v2024 = vpop.f32.mrb[0].mxu0
        %2025 = vmatprep.mubr.bf16.mxu0 0
        %2026 = vmatmul.mubr.bf16.gmra.mrb[0].mxu0 %v1872
        %v2027 = vpop.f32.mrb[0].mxu0
        %v2028 = vadd.f32 0.0, %v2027
        %v2029 = vpop.f32.mrb[0].mxu0
        %v2030 = vpop.f32.mrb[0].mxu0
        %v2031 = vadd.f32 0.0, %v2030
        %v2032 = vpop.f32.mrb[0].mxu0
        %2033 = vmatprep.mubr.bf16.mxu0 0
        %2034 = vmatmul.mubr.bf16.gmra.mrb[0].mxu0 %v1875
        %v2035 = vpop.f32.mrb[0].mxu0
        %v2036 = vadd.f32 0.0, %v2035
        %v2037 = vpop.f32.mrb[0].mxu0
        %v2038 = vpop.f32.mrb[0].mxu0
        %v2039 = vadd.f32 0.0, %v2038
        %v2040 = vpop.f32.mrb[0].mxu0
        %2041 = vmatprep.mubr.bf16.mxu0 0
        %2042 = vmatmul.mubr.bf16.gmra.mrb[0].mxu0 %v1878
        %v2043 = vpop.f32.mrb[0].mxu0
        %v2044 = vadd.f32 0.0, %v2043
        %v2045 = vpop.f32.mrb[0].mxu0
        %v2046 = vpop.f32.mrb[0].mxu0
        %v2047 = vadd.f32 0.0, %v2046
        %v2048 = vpop.f32.mrb[0].mxu0
        %2049 = vmatprep.mubr.bf16.mxu0 0
        %2050 = vmatmul.mubr.bf16.gmra.mrb[0].mxu0 %v1881
        %v2051 = vpop.f32.mrb[0].mxu0
        %v2052 = vadd.f32 0.0, %v2051
        %v2053 = vpop.f32.mrb[0].mxu0
        %v2054 = vpop.f32.mrb[0].mxu0
        %v2055 = vadd.f32 0.0, %v2054
        %v2056 = vpop.f32.mrb[0].mxu0
        %2057 = vmatprep.mubr.bf16.mxu0 0
        %2058 = vmatmul.mubr.bf16.gmra.mrb[0].mxu0 %v1884
        %v2059 = vpop.f32.mrb[0].mxu0
        %v2060 = vadd.f32 0.0, %v2059
        %v2061 = vpop.f32.mrb[0].mxu0
        %v2062 = vpop.f32.mrb[0].mxu0
        %v2063 = vadd.f32 0.0, %v2062
        %v2064 = vpop.f32.mrb[0].mxu0
        %2065 = vmatprep.mubr.bf16.mxu0 0
        %2066 = vmatmul.mubr.bf16.gmra.mrb[0].mxu0 %v1887
        %v2067 = vpop.f32.mrb[0].mxu0
        %v2068 = vadd.f32 0.0, %v2067
        %v2069 = vpop.f32.mrb[0].mxu0
        %v2070 = vpop.f32.mrb[0].mxu0
        %v2071 = vadd.f32 0.0, %v2070
        %v2072 = vpop.f32.mrb[0].mxu0
        %2073 = vmatprep.mubr.bf16.mxu0 0
        %2074 = vmatmul.mubr.bf16.gmra.mrb[0].mxu0 %v1890
        %v2075 = vpop.f32.mrb[0].mxu0
        %v2076 = vadd.f32 0.0, %v2075
        %v2077 = vpop.f32.mrb[0].mxu0
        %v2078 = vpop.f32.mrb[0].mxu0
        %v2079 = vadd.f32 0.0, %v2078
        %v2080 = vpop.f32.mrb[0].mxu0
        %2081 = vmatprep.mubr.bf16.mxu0 0
        %2082 = vmatmul.mubr.bf16.gmra.mrb[0].mxu0 %v1893
        %v2083 = vpop.f32.mrb[0].mxu0
        %v2084 = vadd.f32 0.0, %v2083
        %v2085 = vpop.f32.mrb[0].mxu0
        %v2086 = vpop.f32.mrb[0].mxu0
        %v2087 = vadd.f32 0.0, %v2086
        %v2088 = vpop.f32.mrb[0].mxu0
        %2089 = vmatprep.mubr.bf16.mxu0 0
        %2090 = vmatmul.mubr.bf16.gmra.mrb[0].mxu0 %v1896
        %v2091 = vpop.f32.mrb[0].mxu0
        %v2092 = vadd.f32 0.0, %v2091
        %v2093 = vpop.f32.mrb[0].mxu0
        %v2094 = vpop.f32.mrb[0].mxu0
        %v2095 = vadd.f32 0.0, %v2094
        %v2096 = vpop.f32.mrb[0].mxu0
        %2097 = vmatprep.mubr.bf16.mxu0 0
        %2098 = vmatmul.mubr.bf16.gmra.mrb[0].mxu0 %v1899
        %v2099 = vpop.f32.mrb[0].mxu0
        %v2100 = vadd.f32 0.0, %v2099
        %v2101 = vpop.f32.mrb[0].mxu0
        %v2102 = vpop.f32.mrb[0].mxu0
        %v2103 = vadd.f32 0.0, %v2102
        %v2104 = vpop.f32.mrb[0].mxu0
        %2105 = vmatprep.mubr.bf16.mxu0 0
        %2106 = vmatmul.mubr.bf16.gmra.mrb[0].mxu0 %v1902
        %v2107 = vpop.f32.mrb[0].mxu0
        %v2108 = vadd.f32 0.0, %v2107
        %v2109 = vpop.f32.mrb[0].mxu0
        %v2110 = vpop.f32.mrb[0].mxu0
        %v2111 = vadd.f32 0.0, %v2110
        %v2112 = vpop.f32.mrb[0].mxu0
        %2113 = vmatprep.mubr.bf16.mxu0 0
        %2114 = vmatmul.mubr.bf16.gmra.mrb[0].mxu0 %v1905
        %v2115 = vpop.f32.mrb[0].mxu0
        %v2116 = vadd.f32 0.0, %v2115
        %v2117 = vpop.f32.mrb[0].mxu0
        %v2118 = vpop.f32.mrb[0].mxu0
        %v2119 = vadd.f32 0.0, %v2118
        %v2120 = vpop.f32.mrb[0].mxu0
        %2121 = vmatprep.mubr.bf16.mxu0 0
        %2122 = vmatmul.mubr.bf16.gmra.mrb[0].mxu0 %v1908
        %v2123 = vpop.f32.mrb[0].mxu0
        %v2124 = vadd.f32 0.0, %v2123
        %v2125 = vpop.f32.mrb[0].mxu0
        %v2126 = vpop.f32.mrb[0].mxu0
        %v2127 = vadd.f32 0.0, %v2126
        %v2128 = vpop.f32.mrb[0].mxu0
        %2129 = vmatprep.mubr.bf16.mxu0 0
        %2130 = vmatmul.mubr.bf16.gmra.mrb[0].mxu0 %v1911
        %v2131 = vpop.f32.mrb[0].mxu0
        %v2132 = vadd.f32 0.0, %v2131
        %v2133 = vpop.f32.mrb[0].mxu0
        %v2134 = vpop.f32.mrb[0].mxu0
        %v2135 = vadd.f32 0.0, %v2134
        %v2136 = vpop.f32.mrb[0].mxu0
        %2137 = vdwg.mxu0
        %v2138 = vadd.f32 %v1593, %v1948
        %v2139 = vadd.f32 %v1594, %v1951
        %v2140 = vadd.f32 %v1595, %v1956
        %v2141 = vadd.f32 %v1596, %v1959
        %v2142 = vadd.f32 %v1597, %v1964
        %v2143 = vadd.f32 %v1598, %v1967
        %v2144 = vadd.f32 %v1599, %v1972
        %v2145 = vadd.f32 %v1600, %v1975
        %v2146 = vadd.f32 %v1601, %v1980
        %v2147 = vadd.f32 %v1602, %v1983
        %v2148 = vadd.f32 %v1603, %v1988
        %v2149 = vadd.f32 %v1604, %v1991
        %v2150 = vadd.f32 %v1605, %v1996
        %v2151 = vadd.f32 %v1606, %v1999
        %v2152 = vadd.f32 %v1607, %v2004
        %v2153 = vadd.f32 %v1608, %v2007
        %v2154 = vadd.f32 %v1609, %v2012
        %v2155 = vadd.f32 %v1610, %v2015
        %v2156 = vadd.f32 %v1611, %v2020
        %v2157 = vadd.f32 %v1612, %v2023
        %v2158 = vadd.f32 %v1613, %v2028
        %v2159 = vadd.f32 %v1614, %v2031
        %v2160 = vadd.f32 %v1615, %v2036
        %v2161 = vadd.f32 %v1616, %v2039
        %v2162 = vadd.f32 %v1617, %v2044
        %v2163 = vadd.f32 %v1618, %v2047
        %v2164 = vadd.f32 %v1619, %v2052
        %v2165 = vadd.f32 %v1620, %v2055
        %v2166 = vadd.f32 %v1621, %v2060
        %v2167 = vadd.f32 %v1622, %v2063
        %v2168 = vadd.f32 %v1623, %v2068
        %v2169 = vadd.f32 %v1624, %v2071
        %v2170 = vadd.f32 %v1625, %v2076
        %v2171 = vadd.f32 %v1626, %v2079
        %v2172 = vadd.f32 %v1627, %v2084
        %v2173 = vadd.f32 %v1628, %v2087
        %v2174 = vadd.f32 %v1629, %v2092
        %v2175 = vadd.f32 %v1630, %v2095
        %v2176 = vadd.f32 %v1631, %v2100
        %v2177 = vadd.f32 %v1632, %v2103
        %v2178 = vadd.f32 %v1633, %v2108
        %v2179 = vadd.f32 %v1634, %v2111
        %v2180 = vadd.f32 %v1635, %v2116
        %v2181 = vadd.f32 %v1636, %v2119
        %v2182 = vadd.f32 %v1637, %v2124
        %v2183 = vadd.f32 %v1638, %v2127
        %v2184 = vadd.f32 %v1639, %v2132
        %v2185 = vadd.f32 %v1640, %v2135
        %v2186 = vld [vmem:[%s178 + $0xc] sm:$0xf]
        %v2187 = vld [vmem:[%s178 + $0x10] sm:$0xf]
        %v2188 = vld [vmem:[%s178 + $0x14] sm:$0xf]
        %v2189 = vld [vmem:[%s178 + $0x18] sm:$0xf]
        %v2190 = vld [vmem:[%s178 + $0x1c] sm:$0xf]
        %v2191 = vld [vmem:[%s178 + $0x20] sm:$0xf]
        %v2192 = vld [vmem:[%s178 + $0x24] sm:$0xf]
        %v2193 = vld [vmem:[%s178 + $0x28] sm:$0xf]
        %v2194 = vld [vmem:[%s178 + $0x2c] sm:$0xf]
        %v2195 = vld [vmem:[%s178 + $0x30] sm:$0xf]
        %v2196 = vld [vmem:[%s178 + $0x34] sm:$0xf]
        %v2197 = vld [vmem:[%s178 + $0x38] sm:$0xf]
        %v2198 = vld [vmem:[%s178 + $0x3c] sm:$0xf]
        %v2199 = vld [vmem:[%s178 + $0x40] sm:$0xf]
        %v2200 = vld [vmem:[%s178 + $0x44] sm:$0xf]
        %v2201 = vld [vmem:[%s178 + $0x48] sm:$0xf]
        %v2202 = vld [vmem:[%s178 + $0x4c] sm:$0xf]
        %v2203 = vld [vmem:[%s178 + $0x50] sm:$0xf]
        %v2204 = vld [vmem:[%s178 + $0x54] sm:$0xf]
        %v2205 = vld [vmem:[%s178 + $0x58] sm:$0xf]
        %v2206 = vld [vmem:[%s178 + $0x5c] sm:$0xf]
        %v2207 = vld [vmem:[%s178 + $0x60] sm:$0xf]
        %v2208 = vld [vmem:[%s178 + $0x64] sm:$0xf]
        %v2209 = vld [vmem:[%s178 + $0x68] sm:$0xf]
        %v2210 = vld [vmem:[%s178 + $0x6c] sm:$0xf]
        %v2211 = vld [vmem:[%s178 + $0x70] sm:$0xf]
        %v2212 = vld [vmem:[%s178 + $0x74] sm:$0xf]
        %v2213 = vld [vmem:[%s178 + $0x78] sm:$0xf]
        %v2214 = vld [vmem:[%s178 + $0x7c] sm:$0xf]
        %v2215 = vld [vmem:[%s178 + $0x80] sm:$0xf]
        %v2216 = vld [vmem:[%s178 + $0x84] sm:$0xf]
        %v2217 = vld [vmem:[%s178 + $0x88] sm:$0xf]
        %v2218 = vld [vmem:[%s178 + $0x8c] sm:$0xf]
        %v2219 = vld [vmem:[%s178 + $0x90] sm:$0xf]
        %v2220 = vld [vmem:[%s178 + $0x94] sm:$0xf]
        %v2221 = vld [vmem:[%s178 + $0x98] sm:$0xf]
        %v2222 = vld [vmem:[%s178 + $0x9c] sm:$0xf]
        %v2223 = vld [vmem:[%s178 + $0xa0] sm:$0xf]
        %v2224 = vld [vmem:[%s178 + $0xa4] sm:$0xf]
        %v2225 = vld [vmem:[%s178 + $0xa8] sm:$0xf]
        %v2226 = vld [vmem:[%s178 + $0xac] sm:$0xf]
        %v2227 = vld [vmem:[%s178 + $0xb0] sm:$0xf]
        %v2228 = vld [vmem:[%s178 + $0xb4] sm:$0xf]
        %v2229 = vld [vmem:[%s178 + $0xb8] sm:$0xf]
        %v2230 = vld [vmem:[%s178 + $0xbc] sm:$0xf]
        %v2231 = vld [vmem:[%s178 + $0xc0] sm:$0xf]
        %v2232 = vld [vmem:[%s178 + $0xc4] sm:$0xf]
        %v2233 = vld [vmem:[%s178 + $0xc8] sm:$0xf]
        %v2234 = vld [vmem:[%s178 + $0xcc] sm:$0x1]
        %v2235 = vld [vmem:[#allocation6 + $0x80] sm:$0xf]
        %v2236 = vld [vmem:[#allocation6 + $0x84] sm:$0xf]
        %v2237 = vld [vmem:[#allocation6 + $0x88] sm:$0xf]
        %v2238 = vld [vmem:[#allocation6 + $0x8c] sm:$0xf]
        %v2239 = vld [vmem:[#allocation6 + $0x90] sm:$0xf]
        %v2240 = vld [vmem:[#allocation6 + $0x94] sm:$0xf]
        %v2241 = vld [vmem:[#allocation6 + $0x98] sm:$0xf]
        %v2242 = vld [vmem:[#allocation6 + $0x9c] sm:$0xf]
        %v2292 = vunpack.c.l.b16 %v2186
        %v2293 = vunpack.c.l.b16 %v2187
        %v2294 = vunpack.c.l.b16 %v2188
        %v2295 = vunpack.c.l.b16 %v2189
        %v2296 = vunpack.c.l.b16 %v2190
        %v2297 = vunpack.c.l.b16 %v2191
        %v2298 = vunpack.c.l.b16 %v2192
        %v2299 = vunpack.c.l.b16 %v2193
        %v2300 = vunpack.c.l.b16 %v2194
        %v2301 = vunpack.c.l.b16 %v2195
        %v2302 = vunpack.c.l.b16 %v2196
        %v2303 = vunpack.c.l.b16 %v2197
        %v2304 = vunpack.c.l.b16 %v2198
        %v2305 = vunpack.c.l.b16 %v2199
        %v2306 = vunpack.c.l.b16 %v2200
        %v2307 = vunpack.c.l.b16 %v2201
        %v2308 = vunpack.c.l.b16 %v2202
        %v2309 = vunpack.c.l.b16 %v2203
        %v2310 = vunpack.c.l.b16 %v2204
        %v2311 = vunpack.c.l.b16 %v2205
        %v2312 = vunpack.c.l.b16 %v2206
        %v2313 = vunpack.c.l.b16 %v2207
        %v2314 = vunpack.c.l.b16 %v2208
        %v2315 = vunpack.c.l.b16 %v2209
        %v2316 = vunpack.c.l.b16 %v2210
        %v2317 = vunpack.c.l.b16 %v2211
        %v2318 = vunpack.c.l.b16 %v2212
        %v2319 = vunpack.c.l.b16 %v2213
        %v2320 = vunpack.c.l.b16 %v2214
        %v2321 = vunpack.c.l.b16 %v2215
        %v2322 = vunpack.c.l.b16 %v2216
        %v2323 = vunpack.c.l.b16 %v2217
        %v2324 = vunpack.c.l.b16 %v2218
        %v2325 = vunpack.c.l.b16 %v2219
        %v2326 = vunpack.c.l.b16 %v2220
        %v2327 = vunpack.c.l.b16 %v2221
        %v2328 = vunpack.c.l.b16 %v2222
        %v2329 = vunpack.c.l.b16 %v2223
        %v2330 = vunpack.c.l.b16 %v2224
        %v2331 = vunpack.c.l.b16 %v2225
        %v2332 = vunpack.c.l.b16 %v2226
        %v2333 = vunpack.c.l.b16 %v2227
        %v2334 = vunpack.c.l.b16 %v2228
        %v2335 = vunpack.c.l.b16 %v2229
        %v2336 = vunpack.c.l.b16 %v2230
        %v2337 = vunpack.c.l.b16 %v2231
        %v2338 = vunpack.c.l.b16 %v2232
        %v2339 = vunpack.c.l.b16 %v2233
        %v2340 = vunpack.c.l.b16 %v2234
        %v2341 = vpack.c.b16 %v2293, %v2292
        %v2342 = vpack.c.b16 %v2295, %v2294
        %v2343 = vpack.c.b16 %v2297, %v2296
        %v2344 = vpack.c.b16 %v2299, %v2298
        %v2345 = vpack.c.b16 %v2301, %v2300
        %v2346 = vpack.c.b16 %v2303, %v2302
        %v2347 = vpack.c.b16 %v2305, %v2304
        %v2348 = vpack.c.b16 %v2307, %v2306
        %v2349 = vpack.c.b16 %v2309, %v2308
        %v2350 = vpack.c.b16 %v2311, %v2310
        %v2351 = vpack.c.b16 %v2313, %v2312
        %v2352 = vpack.c.b16 %v2315, %v2314
        %v2353 = vpack.c.b16 %v2317, %v2316
        %v2354 = vpack.c.b16 %v2319, %v2318
        %v2355 = vpack.c.b16 %v2321, %v2320
        %v2356 = vpack.c.b16 %v2323, %v2322
        %v2357 = vpack.c.b16 %v2325, %v2324
        %v2358 = vpack.c.b16 %v2327, %v2326
        %v2359 = vpack.c.b16 %v2329, %v2328
        %v2360 = vpack.c.b16 %v2331, %v2330
        %v2361 = vpack.c.b16 %v2333, %v2332
        %v2362 = vpack.c.b16 %v2335, %v2334
        %v2363 = vpack.c.b16 %v2337, %v2336
        %v2364 = vpack.c.b16 %v2339, %v2338
        %v2365 = vpack.c.b16 %v2340, %v2340
        %v2367 = vshrl.u32 %v2341, 16
        %v2369 = vshll.u32 %v2341, 16
        %v2371 = vrot.slane %v2369, 1
        %v2372 = vor.u32 %v2367, %v2371
        %v2374 = vshll.u32 %v2342, 16
        %v2376 = vrot.slane %v2374, 1
        %v2377 = vsel %vm394, %v2372, %v2376
        %v2378 = vshrl.u32 %v2342, 16
        %v2380 = vor.u32 %v2378, %v2376
        %v2382 = vshll.u32 %v2343, 16
        %v2384 = vrot.slane %v2382, 1
        %v2385 = vsel %vm394, %v2380, %v2384
        %v2386 = vshrl.u32 %v2343, 16
        %v2388 = vor.u32 %v2386, %v2384
        %v2390 = vshll.u32 %v2344, 16
        %v2392 = vrot.slane %v2390, 1
        %v2393 = vsel %vm394, %v2388, %v2392
        %v2394 = vshrl.u32 %v2344, 16
        %v2396 = vor.u32 %v2394, %v2392
        %v2398 = vshll.u32 %v2345, 16
        %v2400 = vrot.slane %v2398, 1
        %v2401 = vsel %vm394, %v2396, %v2400
        %v2402 = vshrl.u32 %v2345, 16
        %v2404 = vor.u32 %v2402, %v2400
        %v2406 = vshll.u32 %v2346, 16
        %v2408 = vrot.slane %v2406, 1
        %v2409 = vsel %vm394, %v2404, %v2408
        %v2410 = vshrl.u32 %v2346, 16
        %v2412 = vor.u32 %v2410, %v2408
        %v2414 = vshll.u32 %v2347, 16
        %v2416 = vrot.slane %v2414, 1
        %v2417 = vsel %vm394, %v2412, %v2416
        %v2418 = vshrl.u32 %v2347, 16
        %v2420 = vor.u32 %v2418, %v2416
        %v2422 = vshll.u32 %v2348, 16
        %v2424 = vrot.slane %v2422, 1
        %v2425 = vsel %vm394, %v2420, %v2424
        %v2426 = vshrl.u32 %v2348, 16
        %v2428 = vor.u32 %v2426, %v2424
        %v2430 = vshll.u32 %v2349, 16
        %v2432 = vrot.slane %v2430, 1
        %v2433 = vsel %vm394, %v2428, %v2432
        %v2434 = vshrl.u32 %v2349, 16
        %v2436 = vor.u32 %v2434, %v2432
        %v2438 = vshll.u32 %v2350, 16
        %v2440 = vrot.slane %v2438, 1
        %v2441 = vsel %vm394, %v2436, %v2440
        %v2442 = vshrl.u32 %v2350, 16
        %v2444 = vor.u32 %v2442, %v2440
        %v2446 = vshll.u32 %v2351, 16
        %v2448 = vrot.slane %v2446, 1
        %v2449 = vsel %vm394, %v2444, %v2448
        %v2450 = vshrl.u32 %v2351, 16
        %v2452 = vor.u32 %v2450, %v2448
        %v2454 = vshll.u32 %v2352, 16
        %v2456 = vrot.slane %v2454, 1
        %v2457 = vsel %vm394, %v2452, %v2456
        %v2458 = vshrl.u32 %v2352, 16
        %v2460 = vor.u32 %v2458, %v2456
        %v2462 = vshll.u32 %v2353, 16
        %v2464 = vrot.slane %v2462, 1
        %v2465 = vsel %vm394, %v2460, %v2464
        %v2466 = vshrl.u32 %v2353, 16
        %v2468 = vor.u32 %v2466, %v2464
        %v2470 = vshll.u32 %v2354, 16
        %v2472 = vrot.slane %v2470, 1
        %v2473 = vsel %vm394, %v2468, %v2472
        %v2474 = vshrl.u32 %v2354, 16
        %v2476 = vor.u32 %v2474, %v2472
        %v2478 = vshll.u32 %v2355, 16
        %v2480 = vrot.slane %v2478, 1
        %v2481 = vsel %vm394, %v2476, %v2480
        %v2482 = vshrl.u32 %v2355, 16
        %v2484 = vor.u32 %v2482, %v2480
        %v2486 = vshll.u32 %v2356, 16
        %v2488 = vrot.slane %v2486, 1
        %v2489 = vsel %vm394, %v2484, %v2488
        %v2490 = vshrl.u32 %v2356, 16
        %v2492 = vor.u32 %v2490, %v2488
        %v2494 = vshll.u32 %v2357, 16
        %v2496 = vrot.slane %v2494, 1
        %v2497 = vsel %vm394, %v2492, %v2496
        %v2498 = vshrl.u32 %v2357, 16
        %v2500 = vor.u32 %v2498, %v2496
        %v2502 = vshll.u32 %v2358, 16
        %v2504 = vrot.slane %v2502, 1
        %v2505 = vsel %vm394, %v2500, %v2504
        %v2506 = vshrl.u32 %v2358, 16
        %v2508 = vor.u32 %v2506, %v2504
        %v2510 = vshll.u32 %v2359, 16
        %v2512 = vrot.slane %v2510, 1
        %v2513 = vsel %vm394, %v2508, %v2512
        %v2514 = vshrl.u32 %v2359, 16
        %v2516 = vor.u32 %v2514, %v2512
        %v2518 = vshll.u32 %v2360, 16
        %v2520 = vrot.slane %v2518, 1
        %v2521 = vsel %vm394, %v2516, %v2520
        %v2522 = vshrl.u32 %v2360, 16
        %v2524 = vor.u32 %v2522, %v2520
        %v2526 = vshll.u32 %v2361, 16
        %v2528 = vrot.slane %v2526, 1
        %v2529 = vsel %vm394, %v2524, %v2528
        %v2530 = vshrl.u32 %v2361, 16
        %v2532 = vor.u32 %v2530, %v2528
        %v2534 = vshll.u32 %v2362, 16
        %v2536 = vrot.slane %v2534, 1
        %v2537 = vsel %vm394, %v2532, %v2536
        %v2538 = vshrl.u32 %v2362, 16
        %v2540 = vor.u32 %v2538, %v2536
        %v2542 = vshll.u32 %v2363, 16
        %v2544 = vrot.slane %v2542, 1
        %v2545 = vsel %vm394, %v2540, %v2544
        %v2546 = vshrl.u32 %v2363, 16
        %v2548 = vor.u32 %v2546, %v2544
        %v2550 = vshll.u32 %v2364, 16
        %v2552 = vrot.slane %v2550, 1
        %v2553 = vsel %vm394, %v2548, %v2552
        %v2554 = vshrl.u32 %v2364, 16
        %v2556 = vor.u32 %v2554, %v2552
        %v2558 = vshll.u32 %v2365, 16
        %v2560 = vrot.slane %v2558, 1
        %v2561 = vsel %vm394, %v2556, %v2560
        %v2570 = vunpack.c.l.b16 %v2235
        %v2571 = vunpack.c.l.b16 %v2236
        %v2572 = vunpack.c.l.b16 %v2237
        %v2573 = vunpack.c.l.b16 %v2238
        %v2574 = vunpack.c.l.b16 %v2239
        %v2575 = vunpack.c.l.b16 %v2240
        %v2576 = vunpack.c.l.b16 %v2241
        %v2577 = vunpack.c.l.b16 %v2242
        %v2578 = vpack.c.b16 %v2571, %v2570
        %v2579 = vpack.c.b16 %v2573, %v2572
        %v2580 = vpack.c.b16 %v2575, %v2574
        %v2581 = vpack.c.b16 %v2577, %v2576
        %v2587 = vsel %vm615, %v2377, 0
        %v2590 = vsel %vm615, %v2385, 0
        %v2593 = vsel %vm615, %v2393, 0
        %v2596 = vsel %vm615, %v2401, 0
        %v2599 = vsel %vm615, %v2409, 0
        %v2602 = vsel %vm615, %v2417, 0
        %v2605 = vsel %vm615, %v2425, 0
        %v2608 = vsel %vm615, %v2433, 0
        %v2611 = vsel %vm615, %v2441, 0
        %v2614 = vsel %vm615, %v2449, 0
        %v2617 = vsel %vm615, %v2457, 0
        %v2620 = vsel %vm615, %v2465, 0
        %v2623 = vsel %vm615, %v2473, 0
        %v2626 = vsel %vm615, %v2481, 0
        %v2629 = vsel %vm615, %v2489, 0
        %v2632 = vsel %vm615, %v2497, 0
        %v2635 = vsel %vm615, %v2505, 0
        %v2638 = vsel %vm615, %v2513, 0
        %v2641 = vsel %vm615, %v2521, 0
        %v2644 = vsel %vm615, %v2529, 0
        %v2647 = vsel %vm615, %v2537, 0
        %v2650 = vsel %vm615, %v2545, 0
        %v2653 = vsel %vm615, %v2553, 0
        %v2656 = vsel %vm615, %v2561, 0
        %2658 = vmatprep.subr.bf16.mxu0 0
        %2659 = vmatpush1.bf16.msra.mxu0 %v2578
        %2660 = vmatprep.subr.bf16.mxu0 0
        %2661 = vmatpush1.bf16.msra.mxu0 %v2579
        %2662 = vmatprep.subr.bf16.mxu0 0
        %2663 = vmatpush1.bf16.msra.mxu0 %v2580
        %2664 = vmatprep.subr.bf16.mxu0 0
        %2665 = vmatpush1.bf16.msra.mxu0 %v2581
        %2666 = vmatprep.subr.bf16.mxu0 0
        %2667 = vmatpush1.bf16.msra.mxu0 0
        %2668 = vmatprep.subr.bf16.mxu0 0
        %2669 = vmatpush1.bf16.msra.mxu0 0
        %2670 = vmatprep.subr.bf16.mxu0 0
        %2671 = vmatpush1.bf16.msra.mxu0 0
        %2672 = vmatprep.subr.bf16.mxu0 0
        %2673 = vmatpush1.bf16.msra.mxu0 0
        %2674 = vmatprep.subr.bf16.mxu0 0
        %2675 = vmatpush1.bf16.msra.mxu0 0
        %2676 = vmatprep.subr.bf16.mxu0 0
        %2677 = vmatpush1.bf16.msra.mxu0 0
        %2678 = vmatprep.subr.bf16.mxu0 0
        %2679 = vmatpush1.bf16.msra.mxu0 0
        %2680 = vmatprep.subr.bf16.mxu0 0
        %2681 = vmatpush1.bf16.msra.mxu0 0
        %2682 = vmatprep.subr.bf16.mxu0 0
        %2683 = vmatpush1.bf16.msra.mxu0 0
        %2684 = vmatprep.subr.bf16.mxu0 0
        %2685 = vmatpush1.bf16.msra.mxu0 0
        %2686 = vmatprep.subr.bf16.mxu0 0
        %2687 = vmatpush1.bf16.msra.mxu0 0
        %2688 = vmatprep.subr.bf16.mxu0 0
        %2689 = vmatpush1.bf16.msra.mxu0 0
        %2690 = vmatprep.mubr.bf16.mxu0 0
        %2691 = vmatmul.mubr.bf16.gmra.mrb[0].mxu0 %v2587
        %v2692 = vpop.f32.mrb[0].mxu0
        %v2693 = vadd.f32 0.0, %v2692
        %v2694 = vpop.f32.mrb[0].mxu0
        %v2695 = vpop.f32.mrb[0].mxu0
        %v2696 = vadd.f32 0.0, %v2695
        %v2697 = vpop.f32.mrb[0].mxu0
        %2698 = vmatprep.mubr.bf16.mxu0 0
        %2699 = vmatmul.mubr.bf16.gmra.mrb[0].mxu0 %v2590
        %v2700 = vpop.f32.mrb[0].mxu0
        %v2701 = vadd.f32 0.0, %v2700
        %v2702 = vpop.f32.mrb[0].mxu0
        %v2703 = vpop.f32.mrb[0].mxu0
        %v2704 = vadd.f32 0.0, %v2703
        %v2705 = vpop.f32.mrb[0].mxu0
        %2706 = vmatprep.mubr.bf16.mxu0 0
        %2707 = vmatmul.mubr.bf16.gmra.mrb[0].mxu0 %v2593
        %v2708 = vpop.f32.mrb[0].mxu0
        %v2709 = vadd.f32 0.0, %v2708
        %v2710 = vpop.f32.mrb[0].mxu0
        %v2711 = vpop.f32.mrb[0].mxu0
        %v2712 = vadd.f32 0.0, %v2711
        %v2713 = vpop.f32.mrb[0].mxu0
        %2714 = vmatprep.mubr.bf16.mxu0 0
        %2715 = vmatmul.mubr.bf16.gmra.mrb[0].mxu0 %v2596
        %v2716 = vpop.f32.mrb[0].mxu0
        %v2717 = vadd.f32 0.0, %v2716
        %v2718 = vpop.f32.mrb[0].mxu0
        %v2719 = vpop.f32.mrb[0].mxu0
        %v2720 = vadd.f32 0.0, %v2719
        %v2721 = vpop.f32.mrb[0].mxu0
        %2722 = vmatprep.mubr.bf16.mxu0 0
        %2723 = vmatmul.mubr.bf16.gmra.mrb[0].mxu0 %v2599
        %v2724 = vpop.f32.mrb[0].mxu0
        %v2725 = vadd.f32 0.0, %v2724
        %v2726 = vpop.f32.mrb[0].mxu0
        %v2727 = vpop.f32.mrb[0].mxu0
        %v2728 = vadd.f32 0.0, %v2727
        %v2729 = vpop.f32.mrb[0].mxu0
        %2730 = vmatprep.mubr.bf16.mxu0 0
        %2731 = vmatmul.mubr.bf16.gmra.mrb[0].mxu0 %v2602
        %v2732 = vpop.f32.mrb[0].mxu0
        %v2733 = vadd.f32 0.0, %v2732
        %v2734 = vpop.f32.mrb[0].mxu0
        %v2735 = vpop.f32.mrb[0].mxu0
        %v2736 = vadd.f32 0.0, %v2735
        %v2737 = vpop.f32.mrb[0].mxu0
        %2738 = vmatprep.mubr.bf16.mxu0 0
        %2739 = vmatmul.mubr.bf16.gmra.mrb[0].mxu0 %v2605
        %v2740 = vpop.f32.mrb[0].mxu0
        %v2741 = vadd.f32 0.0, %v2740
        %v2742 = vpop.f32.mrb[0].mxu0
        %v2743 = vpop.f32.mrb[0].mxu0
        %v2744 = vadd.f32 0.0, %v2743
        %v2745 = vpop.f32.mrb[0].mxu0
        %2746 = vmatprep.mubr.bf16.mxu0 0
        %2747 = vmatmul.mubr.bf16.gmra.mrb[0].mxu0 %v2608
        %v2748 = vpop.f32.mrb[0].mxu0
        %v2749 = vadd.f32 0.0, %v2748
        %v2750 = vpop.f32.mrb[0].mxu0
        %v2751 = vpop.f32.mrb[0].mxu0
        %v2752 = vadd.f32 0.0, %v2751
        %v2753 = vpop.f32.mrb[0].mxu0
        %2754 = vmatprep.mubr.bf16.mxu0 0
        %2755 = vmatmul.mubr.bf16.gmra.mrb[0].mxu0 %v2611
        %v2756 = vpop.f32.mrb[0].mxu0
        %v2757 = vadd.f32 0.0, %v2756
        %v2758 = vpop.f32.mrb[0].mxu0
        %v2759 = vpop.f32.mrb[0].mxu0
        %v2760 = vadd.f32 0.0, %v2759
        %v2761 = vpop.f32.mrb[0].mxu0
        %2762 = vmatprep.mubr.bf16.mxu0 0
        %2763 = vmatmul.mubr.bf16.gmra.mrb[0].mxu0 %v2614
        %v2764 = vpop.f32.mrb[0].mxu0
        %v2765 = vadd.f32 0.0, %v2764
        %v2766 = vpop.f32.mrb[0].mxu0
        %v2767 = vpop.f32.mrb[0].mxu0
        %v2768 = vadd.f32 0.0, %v2767
        %v2769 = vpop.f32.mrb[0].mxu0
        %2770 = vmatprep.mubr.bf16.mxu0 0
        %2771 = vmatmul.mubr.bf16.gmra.mrb[0].mxu0 %v2617
        %v2772 = vpop.f32.mrb[0].mxu0
        %v2773 = vadd.f32 0.0, %v2772
        %v2774 = vpop.f32.mrb[0].mxu0
        %v2775 = vpop.f32.mrb[0].mxu0
        %v2776 = vadd.f32 0.0, %v2775
        %v2777 = vpop.f32.mrb[0].mxu0
        %2778 = vmatprep.mubr.bf16.mxu0 0
        %2779 = vmatmul.mubr.bf16.gmra.mrb[0].mxu0 %v2620
        %v2780 = vpop.f32.mrb[0].mxu0
        %v2781 = vadd.f32 0.0, %v2780
        %v2782 = vpop.f32.mrb[0].mxu0
        %v2783 = vpop.f32.mrb[0].mxu0
        %v2784 = vadd.f32 0.0, %v2783
        %v2785 = vpop.f32.mrb[0].mxu0
        %2786 = vmatprep.mubr.bf16.mxu0 0
        %2787 = vmatmul.mubr.bf16.gmra.mrb[0].mxu0 %v2623
        %v2788 = vpop.f32.mrb[0].mxu0
        %v2789 = vadd.f32 0.0, %v2788
        %v2790 = vpop.f32.mrb[0].mxu0
        %v2791 = vpop.f32.mrb[0].mxu0
        %v2792 = vadd.f32 0.0, %v2791
        %v2793 = vpop.f32.mrb[0].mxu0
        %2794 = vmatprep.mubr.bf16.mxu0 0
        %2795 = vmatmul.mubr.bf16.gmra.mrb[0].mxu0 %v2626
        %v2796 = vpop.f32.mrb[0].mxu0
        %v2797 = vadd.f32 0.0, %v2796
        %v2798 = vpop.f32.mrb[0].mxu0
        %v2799 = vpop.f32.mrb[0].mxu0
        %v2800 = vadd.f32 0.0, %v2799
        %v2801 = vpop.f32.mrb[0].mxu0
        %2802 = vmatprep.mubr.bf16.mxu0 0
        %2803 = vmatmul.mubr.bf16.gmra.mrb[0].mxu0 %v2629
        %v2804 = vpop.f32.mrb[0].mxu0
        %v2805 = vadd.f32 0.0, %v2804
        %v2806 = vpop.f32.mrb[0].mxu0
        %v2807 = vpop.f32.mrb[0].mxu0
        %v2808 = vadd.f32 0.0, %v2807
        %v2809 = vpop.f32.mrb[0].mxu0
        %2810 = vmatprep.mubr.bf16.mxu0 0
        %2811 = vmatmul.mubr.bf16.gmra.mrb[0].mxu0 %v2632
        %v2812 = vpop.f32.mrb[0].mxu0
        %v2813 = vadd.f32 0.0, %v2812
        %v2814 = vpop.f32.mrb[0].mxu0
        %v2815 = vpop.f32.mrb[0].mxu0
        %v2816 = vadd.f32 0.0, %v2815
        %v2817 = vpop.f32.mrb[0].mxu0
        %2818 = vmatprep.mubr.bf16.mxu0 0
        %2819 = vmatmul.mubr.bf16.gmra.mrb[0].mxu0 %v2635
        %v2820 = vpop.f32.mrb[0].mxu0
        %v2821 = vadd.f32 0.0, %v2820
        %v2822 = vpop.f32.mrb[0].mxu0
        %v2823 = vpop.f32.mrb[0].mxu0
        %v2824 = vadd.f32 0.0, %v2823
        %v2825 = vpop.f32.mrb[0].mxu0
        %2826 = vmatprep.mubr.bf16.mxu0 0
        %2827 = vmatmul.mubr.bf16.gmra.mrb[0].mxu0 %v2638
        %v2828 = vpop.f32.mrb[0].mxu0
        %v2829 = vadd.f32 0.0, %v2828
        %v2830 = vpop.f32.mrb[0].mxu0
        %v2831 = vpop.f32.mrb[0].mxu0
        %v2832 = vadd.f32 0.0, %v2831
        %v2833 = vpop.f32.mrb[0].mxu0
        %2834 = vmatprep.mubr.bf16.mxu0 0
        %2835 = vmatmul.mubr.bf16.gmra.mrb[0].mxu0 %v2641
        %v2836 = vpop.f32.mrb[0].mxu0
        %v2837 = vadd.f32 0.0, %v2836
        %v2838 = vpop.f32.mrb[0].mxu0
        %v2839 = vpop.f32.mrb[0].mxu0
        %v2840 = vadd.f32 0.0, %v2839
        %v2841 = vpop.f32.mrb[0].mxu0
        %2842 = vmatprep.mubr.bf16.mxu0 0
        %2843 = vmatmul.mubr.bf16.gmra.mrb[0].mxu0 %v2644
        %v2844 = vpop.f32.mrb[0].mxu0
        %v2845 = vadd.f32 0.0, %v2844
        %v2846 = vpop.f32.mrb[0].mxu0
        %v2847 = vpop.f32.mrb[0].mxu0
        %v2848 = vadd.f32 0.0, %v2847
        %v2849 = vpop.f32.mrb[0].mxu0
        %2850 = vmatprep.mubr.bf16.mxu0 0
        %2851 = vmatmul.mubr.bf16.gmra.mrb[0].mxu0 %v2647
        %v2852 = vpop.f32.mrb[0].mxu0
        %v2853 = vadd.f32 0.0, %v2852
        %v2854 = vpop.f32.mrb[0].mxu0
        %v2855 = vpop.f32.mrb[0].mxu0
        %v2856 = vadd.f32 0.0, %v2855
        %v2857 = vpop.f32.mrb[0].mxu0
        %2858 = vmatprep.mubr.bf16.mxu0 0
        %2859 = vmatmul.mubr.bf16.gmra.mrb[0].mxu0 %v2650
        %v2860 = vpop.f32.mrb[0].mxu0
        %v2861 = vadd.f32 0.0, %v2860
        %v2862 = vpop.f32.mrb[0].mxu0
        %v2863 = vpop.f32.mrb[0].mxu0
        %v2864 = vadd.f32 0.0, %v2863
        %v2865 = vpop.f32.mrb[0].mxu0
        %2866 = vmatprep.mubr.bf16.mxu0 0
        %2867 = vmatmul.mubr.bf16.gmra.mrb[0].mxu0 %v2653
        %v2868 = vpop.f32.mrb[0].mxu0
        %v2869 = vadd.f32 0.0, %v2868
        %v2870 = vpop.f32.mrb[0].mxu0
        %v2871 = vpop.f32.mrb[0].mxu0
        %v2872 = vadd.f32 0.0, %v2871
        %v2873 = vpop.f32.mrb[0].mxu0
        %2874 = vmatprep.mubr.bf16.mxu0 0
        %2875 = vmatmul.mubr.bf16.gmra.mrb[0].mxu0 %v2656
        %v2876 = vpop.f32.mrb[0].mxu0
        %v2877 = vadd.f32 0.0, %v2876
        %v2878 = vpop.f32.mrb[0].mxu0
        %v2879 = vpop.f32.mrb[0].mxu0
        %v2880 = vadd.f32 0.0, %v2879
        %v2881 = vpop.f32.mrb[0].mxu0
        %2882 = vdwg.mxu0
        %v2883 = vadd.f32 %v2138, %v2693
        %v2884 = vadd.f32 %v2139, %v2696
        %v2885 = vadd.f32 %v2140, %v2701
        %v2886 = vadd.f32 %v2141, %v2704
        %v2887 = vadd.f32 %v2142, %v2709
        %v2888 = vadd.f32 %v2143, %v2712
        %v2889 = vadd.f32 %v2144, %v2717
        %v2890 = vadd.f32 %v2145, %v2720
        %v2891 = vadd.f32 %v2146, %v2725
        %v2892 = vadd.f32 %v2147, %v2728
        %v2893 = vadd.f32 %v2148, %v2733
        %v2894 = vadd.f32 %v2149, %v2736
        %v2895 = vadd.f32 %v2150, %v2741
        %v2896 = vadd.f32 %v2151, %v2744
        %v2897 = vadd.f32 %v2152, %v2749
        %v2898 = vadd.f32 %v2153, %v2752
        %v2899 = vadd.f32 %v2154, %v2757
        %v2900 = vadd.f32 %v2155, %v2760
        %v2901 = vadd.f32 %v2156, %v2765
        %v2902 = vadd.f32 %v2157, %v2768
        %v2903 = vadd.f32 %v2158, %v2773
        %v2904 = vadd.f32 %v2159, %v2776
        %v2905 = vadd.f32 %v2160, %v2781
        %v2906 = vadd.f32 %v2161, %v2784
        %v2907 = vadd.f32 %v2162, %v2789
        %v2908 = vadd.f32 %v2163, %v2792
        %v2909 = vadd.f32 %v2164, %v2797
        %v2910 = vadd.f32 %v2165, %v2800
        %v2911 = vadd.f32 %v2166, %v2805
        %v2912 = vadd.f32 %v2167, %v2808
        %v2913 = vadd.f32 %v2168, %v2813
        %v2914 = vadd.f32 %v2169, %v2816
        %v2915 = vadd.f32 %v2170, %v2821
        %v2916 = vadd.f32 %v2171, %v2824
        %v2917 = vadd.f32 %v2172, %v2829
        %v2918 = vadd.f32 %v2173, %v2832
        %v2919 = vadd.f32 %v2174, %v2837
        %v2920 = vadd.f32 %v2175, %v2840
        %v2921 = vadd.f32 %v2176, %v2845
        %v2922 = vadd.f32 %v2177, %v2848
        %v2923 = vadd.f32 %v2178, %v2853
        %v2924 = vadd.f32 %v2179, %v2856
        %v2925 = vadd.f32 %v2180, %v2861
        %v2926 = vadd.f32 %v2181, %v2864
        %v2927 = vadd.f32 %v2182, %v2869
        %v2928 = vadd.f32 %v2183, %v2872
        %v2929 = vadd.f32 %v2184, %v2877
        %v2930 = vadd.f32 %v2185, %v2880
        %v2931 = vld [vmem:[%s178 + $0xc] sm:$0xe]
        %v2932 = vld [vmem:[#allocation6 + $0xa0] sm:$0xf]
        %v2933 = vld [vmem:[#allocation6 + $0xa4] sm:$0xf]
        %v2934 = vld [vmem:[#allocation6 + $0xa8] sm:$0xf]
        %v2935 = vld [vmem:[#allocation6 + $0xac] sm:$0xf]
        %v2936 = vld [vmem:[#allocation6 + $0xb0] sm:$0xf]
        %v2937 = vld [vmem:[#allocation6 + $0xb4] sm:$0xf]
        %v2938 = vld [vmem:[#allocation6 + $0xb8] sm:$0xf]
        %v2939 = vld [vmem:[#allocation6 + $0xbc] sm:$0xf]
        %v2941 = vunpack.c.l.b16 %v2931
        %v2942 = vpack.c.b16 %v2293, %v2941
        %v2943 = vrot.slane %v2942, 1
        %v2944 = vrot.slane %v2342, 1
        %v2945 = vsel %vm1222, %v2943, %v2944
        %v2946 = vrot.slane %v2343, 1
        %v2947 = vsel %vm1222, %v2944, %v2946
        %v2948 = vrot.slane %v2344, 1
        %v2949 = vsel %vm1222, %v2946, %v2948
        %v2950 = vrot.slane %v2345, 1
        %v2951 = vsel %vm1222, %v2948, %v2950
        %v2952 = vrot.slane %v2346, 1
        %v2953 = vsel %vm1222, %v2950, %v2952
        %v2954 = vrot.slane %v2347, 1
        %v2955 = vsel %vm1222, %v2952, %v2954
        %v2956 = vrot.slane %v2348, 1
        %v2957 = vsel %vm1222, %v2954, %v2956
        %v2958 = vrot.slane %v2349, 1
        %v2959 = vsel %vm1222, %v2956, %v2958
        %v2960 = vrot.slane %v2350, 1
        %v2961 = vsel %vm1222, %v2958, %v2960
        %v2962 = vrot.slane %v2351, 1
        %v2963 = vsel %vm1222, %v2960, %v2962
        %v2964 = vrot.slane %v2352, 1
        %v2965 = vsel %vm1222, %v2962, %v2964
        %v2966 = vrot.slane %v2353, 1
        %v2967 = vsel %vm1222, %v2964, %v2966
        %v2968 = vrot.slane %v2354, 1
        %v2969 = vsel %vm1222, %v2966, %v2968
        %v2970 = vrot.slane %v2355, 1
        %v2971 = vsel %vm1222, %v2968, %v2970
        %v2972 = vrot.slane %v2356, 1
        %v2973 = vsel %vm1222, %v2970, %v2972
        %v2974 = vrot.slane %v2357, 1
        %v2975 = vsel %vm1222, %v2972, %v2974
        %v2976 = vrot.slane %v2358, 1
        %v2977 = vsel %vm1222, %v2974, %v2976
        %v2978 = vrot.slane %v2359, 1
        %v2979 = vsel %vm1222, %v2976, %v2978
        %v2980 = vrot.slane %v2360, 1
        %v2981 = vsel %vm1222, %v2978, %v2980
        %v2982 = vrot.slane %v2361, 1
        %v2983 = vsel %vm1222, %v2980, %v2982
        %v2984 = vrot.slane %v2362, 1
        %v2985 = vsel %vm1222, %v2982, %v2984
        %v2986 = vrot.slane %v2363, 1
        %v2987 = vsel %vm1222, %v2984, %v2986
        %v2988 = vrot.slane %v2364, 1
        %v2989 = vsel %vm1222, %v2986, %v2988
        %v2990 = vrot.slane %v2365, 1
        %v2991 = vsel %vm1222, %v2988, %v2990
        %v3000 = vunpack.c.l.b16 %v2932
        %v3001 = vunpack.c.l.b16 %v2933
        %v3002 = vunpack.c.l.b16 %v2934
        %v3003 = vunpack.c.l.b16 %v2935
        %v3004 = vunpack.c.l.b16 %v2936
        %v3005 = vunpack.c.l.b16 %v2937
        %v3006 = vunpack.c.l.b16 %v2938
        %v3007 = vunpack.c.l.b16 %v2939
        %v3008 = vpack.c.b16 %v3001, %v3000
        %v3009 = vpack.c.b16 %v3003, %v3002
        %v3010 = vpack.c.b16 %v3005, %v3004
        %v3011 = vpack.c.b16 %v3007, %v3006
        %v3017 = vsel %vm615, %v2945, 0
        %v3020 = vsel %vm615, %v2947, 0
        %v3023 = vsel %vm615, %v2949, 0
        %v3026 = vsel %vm615, %v2951, 0
        %v3029 = vsel %vm615, %v2953, 0
        %v3032 = vsel %vm615, %v2955, 0
        %v3035 = vsel %vm615, %v2957, 0
        %v3038 = vsel %vm615, %v2959, 0
        %v3041 = vsel %vm615, %v2961, 0
        %v3044 = vsel %vm615, %v2963, 0
        %v3047 = vsel %vm615, %v2965, 0
        %v3050 = vsel %vm615, %v2967, 0
        %v3053 = vsel %vm615, %v2969, 0
        %v3056 = vsel %vm615, %v2971, 0
        %v3059 = vsel %vm615, %v2973, 0
        %v3062 = vsel %vm615, %v2975, 0
        %v3065 = vsel %vm615, %v2977, 0
        %v3068 = vsel %vm615, %v2979, 0
        %v3071 = vsel %vm615, %v2981, 0
        %v3074 = vsel %vm615, %v2983, 0
        %v3077 = vsel %vm615, %v2985, 0
        %v3080 = vsel %vm615, %v2987, 0
        %v3083 = vsel %vm615, %v2989, 0
        %v3086 = vsel %vm615, %v2991, 0
        %3088 = vmatprep.subr.bf16.mxu0 0
        %3089 = vmatpush1.bf16.msra.mxu0 %v3008
        %3090 = vmatprep.subr.bf16.mxu0 0
        %3091 = vmatpush1.bf16.msra.mxu0 %v3009
        %3092 = vmatprep.subr.bf16.mxu0 0
        %3093 = vmatpush1.bf16.msra.mxu0 %v3010
        %3094 = vmatprep.subr.bf16.mxu0 0
        %3095 = vmatpush1.bf16.msra.mxu0 %v3011
        %3096 = vmatprep.subr.bf16.mxu0 0
        %3097 = vmatpush1.bf16.msra.mxu0 0
        %3098 = vmatprep.subr.bf16.mxu0 0
        %3099 = vmatpush1.bf16.msra.mxu0 0
        %3100 = vmatprep.subr.bf16.mxu0 0
        %3101 = vmatpush1.bf16.msra.mxu0 0
        %3102 = vmatprep.subr.bf16.mxu0 0
        %3103 = vmatpush1.bf16.msra.mxu0 0
        %3104 = vmatprep.subr.bf16.mxu0 0
        %3105 = vmatpush1.bf16.msra.mxu0 0
        %3106 = vmatprep.subr.bf16.mxu0 0
        %3107 = vmatpush1.bf16.msra.mxu0 0
        %3108 = vmatprep.subr.bf16.mxu0 0
        %3109 = vmatpush1.bf16.msra.mxu0 0
        %3110 = vmatprep.subr.bf16.mxu0 0
        %3111 = vmatpush1.bf16.msra.mxu0 0
        %3112 = vmatprep.subr.bf16.mxu0 0
        %3113 = vmatpush1.bf16.msra.mxu0 0
        %3114 = vmatprep.subr.bf16.mxu0 0
        %3115 = vmatpush1.bf16.msra.mxu0 0
        %3116 = vmatprep.subr.bf16.mxu0 0
        %3117 = vmatpush1.bf16.msra.mxu0 0
        %3118 = vmatprep.subr.bf16.mxu0 0
        %3119 = vmatpush1.bf16.msra.mxu0 0
        %3120 = vmatprep.mubr.bf16.mxu0 0
        %3121 = vmatmul.mubr.bf16.gmra.mrb[0].mxu0 %v3017
        %v3122 = vpop.f32.mrb[0].mxu0
        %v3123 = vadd.f32 0.0, %v3122
        %v3124 = vpop.f32.mrb[0].mxu0
        %v3125 = vpop.f32.mrb[0].mxu0
        %v3126 = vadd.f32 0.0, %v3125
        %v3127 = vpop.f32.mrb[0].mxu0
        %3128 = vmatprep.mubr.bf16.mxu0 0
        %3129 = vmatmul.mubr.bf16.gmra.mrb[0].mxu0 %v3020
        %v3130 = vpop.f32.mrb[0].mxu0
        %v3131 = vadd.f32 0.0, %v3130
        %v3132 = vpop.f32.mrb[0].mxu0
        %v3133 = vpop.f32.mrb[0].mxu0
        %v3134 = vadd.f32 0.0, %v3133
        %v3135 = vpop.f32.mrb[0].mxu0
        %3136 = vmatprep.mubr.bf16.mxu0 0
        %3137 = vmatmul.mubr.bf16.gmra.mrb[0].mxu0 %v3023
        %v3138 = vpop.f32.mrb[0].mxu0
        %v3139 = vadd.f32 0.0, %v3138
        %v3140 = vpop.f32.mrb[0].mxu0
        %v3141 = vpop.f32.mrb[0].mxu0
        %v3142 = vadd.f32 0.0, %v3141
        %v3143 = vpop.f32.mrb[0].mxu0
        %3144 = vmatprep.mubr.bf16.mxu0 0
        %3145 = vmatmul.mubr.bf16.gmra.mrb[0].mxu0 %v3026
        %v3146 = vpop.f32.mrb[0].mxu0
        %v3147 = vadd.f32 0.0, %v3146
        %v3148 = vpop.f32.mrb[0].mxu0
        %v3149 = vpop.f32.mrb[0].mxu0
        %v3150 = vadd.f32 0.0, %v3149
        %v3151 = vpop.f32.mrb[0].mxu0
        %3152 = vmatprep.mubr.bf16.mxu0 0
        %3153 = vmatmul.mubr.bf16.gmra.mrb[0].mxu0 %v3029
        %v3154 = vpop.f32.mrb[0].mxu0
        %v3155 = vadd.f32 0.0, %v3154
        %v3156 = vpop.f32.mrb[0].mxu0
        %v3157 = vpop.f32.mrb[0].mxu0
        %v3158 = vadd.f32 0.0, %v3157
        %v3159 = vpop.f32.mrb[0].mxu0
        %3160 = vmatprep.mubr.bf16.mxu0 0
        %3161 = vmatmul.mubr.bf16.gmra.mrb[0].mxu0 %v3032
        %v3162 = vpop.f32.mrb[0].mxu0
        %v3163 = vadd.f32 0.0, %v3162
        %v3164 = vpop.f32.mrb[0].mxu0
        %v3165 = vpop.f32.mrb[0].mxu0
        %v3166 = vadd.f32 0.0, %v3165
        %v3167 = vpop.f32.mrb[0].mxu0
        %3168 = vmatprep.mubr.bf16.mxu0 0
        %3169 = vmatmul.mubr.bf16.gmra.mrb[0].mxu0 %v3035
        %v3170 = vpop.f32.mrb[0].mxu0
        %v3171 = vadd.f32 0.0, %v3170
        %v3172 = vpop.f32.mrb[0].mxu0
        %v3173 = vpop.f32.mrb[0].mxu0
        %v3174 = vadd.f32 0.0, %v3173
        %v3175 = vpop.f32.mrb[0].mxu0
        %3176 = vmatprep.mubr.bf16.mxu0 0
        %3177 = vmatmul.mubr.bf16.gmra.mrb[0].mxu0 %v3038
        %v3178 = vpop.f32.mrb[0].mxu0
        %v3179 = vadd.f32 0.0, %v3178
        %v3180 = vpop.f32.mrb[0].mxu0
        %v3181 = vpop.f32.mrb[0].mxu0
        %v3182 = vadd.f32 0.0, %v3181
        %v3183 = vpop.f32.mrb[0].mxu0
        %3184 = vmatprep.mubr.bf16.mxu0 0
        %3185 = vmatmul.mubr.bf16.gmra.mrb[0].mxu0 %v3041
        %v3186 = vpop.f32.mrb[0].mxu0
        %v3187 = vadd.f32 0.0, %v3186
        %v3188 = vpop.f32.mrb[0].mxu0
        %v3189 = vpop.f32.mrb[0].mxu0
        %v3190 = vadd.f32 0.0, %v3189
        %v3191 = vpop.f32.mrb[0].mxu0
        %3192 = vmatprep.mubr.bf16.mxu0 0
        %3193 = vmatmul.mubr.bf16.gmra.mrb[0].mxu0 %v3044
        %v3194 = vpop.f32.mrb[0].mxu0
        %v3195 = vadd.f32 0.0, %v3194
        %v3196 = vpop.f32.mrb[0].mxu0
        %v3197 = vpop.f32.mrb[0].mxu0
        %v3198 = vadd.f32 0.0, %v3197
        %v3199 = vpop.f32.mrb[0].mxu0
        %3200 = vmatprep.mubr.bf16.mxu0 0
        %3201 = vmatmul.mubr.bf16.gmra.mrb[0].mxu0 %v3047
        %v3202 = vpop.f32.mrb[0].mxu0
        %v3203 = vadd.f32 0.0, %v3202
        %v3204 = vpop.f32.mrb[0].mxu0
        %v3205 = vpop.f32.mrb[0].mxu0
        %v3206 = vadd.f32 0.0, %v3205
        %v3207 = vpop.f32.mrb[0].mxu0
        %3208 = vmatprep.mubr.bf16.mxu0 0
        %3209 = vmatmul.mubr.bf16.gmra.mrb[0].mxu0 %v3050
        %v3210 = vpop.f32.mrb[0].mxu0
        %v3211 = vadd.f32 0.0, %v3210
        %v3212 = vpop.f32.mrb[0].mxu0
        %v3213 = vpop.f32.mrb[0].mxu0
        %v3214 = vadd.f32 0.0, %v3213
        %v3215 = vpop.f32.mrb[0].mxu0
        %3216 = vmatprep.mubr.bf16.mxu0 0
        %3217 = vmatmul.mubr.bf16.gmra.mrb[0].mxu0 %v3053
        %v3218 = vpop.f32.mrb[0].mxu0
        %v3219 = vadd.f32 0.0, %v3218
        %v3220 = vpop.f32.mrb[0].mxu0
        %v3221 = vpop.f32.mrb[0].mxu0
        %v3222 = vadd.f32 0.0, %v3221
        %v3223 = vpop.f32.mrb[0].mxu0
        %3224 = vmatprep.mubr.bf16.mxu0 0
        %3225 = vmatmul.mubr.bf16.gmra.mrb[0].mxu0 %v3056
        %v3226 = vpop.f32.mrb[0].mxu0
        %v3227 = vadd.f32 0.0, %v3226
        %v3228 = vpop.f32.mrb[0].mxu0
        %v3229 = vpop.f32.mrb[0].mxu0
        %v3230 = vadd.f32 0.0, %v3229
        %v3231 = vpop.f32.mrb[0].mxu0
        %3232 = vmatprep.mubr.bf16.mxu0 0
        %3233 = vmatmul.mubr.bf16.gmra.mrb[0].mxu0 %v3059
        %v3234 = vpop.f32.mrb[0].mxu0
        %v3235 = vadd.f32 0.0, %v3234
        %v3236 = vpop.f32.mrb[0].mxu0
        %v3237 = vpop.f32.mrb[0].mxu0
        %v3238 = vadd.f32 0.0, %v3237
        %v3239 = vpop.f32.mrb[0].mxu0
        %3240 = vmatprep.mubr.bf16.mxu0 0
        %3241 = vmatmul.mubr.bf16.gmra.mrb[0].mxu0 %v3062
        %v3242 = vpop.f32.mrb[0].mxu0
        %v3243 = vadd.f32 0.0, %v3242
        %v3244 = vpop.f32.mrb[0].mxu0
        %v3245 = vpop.f32.mrb[0].mxu0
        %v3246 = vadd.f32 0.0, %v3245
        %v3247 = vpop.f32.mrb[0].mxu0
        %3248 = vmatprep.mubr.bf16.mxu0 0
        %3249 = vmatmul.mubr.bf16.gmra.mrb[0].mxu0 %v3065
        %v3250 = vpop.f32.mrb[0].mxu0
        %v3251 = vadd.f32 0.0, %v3250
        %v3252 = vpop.f32.mrb[0].mxu0
        %v3253 = vpop.f32.mrb[0].mxu0
        %v3254 = vadd.f32 0.0, %v3253
        %v3255 = vpop.f32.mrb[0].mxu0
        %3256 = vmatprep.mubr.bf16.mxu0 0
        %3257 = vmatmul.mubr.bf16.gmra.mrb[0].mxu0 %v3068
        %v3258 = vpop.f32.mrb[0].mxu0
        %v3259 = vadd.f32 0.0, %v3258
        %v3260 = vpop.f32.mrb[0].mxu0
        %v3261 = vpop.f32.mrb[0].mxu0
        %v3262 = vadd.f32 0.0, %v3261
        %v3263 = vpop.f32.mrb[0].mxu0
        %3264 = vmatprep.mubr.bf16.mxu0 0
        %3265 = vmatmul.mubr.bf16.gmra.mrb[0].mxu0 %v3071
        %v3266 = vpop.f32.mrb[0].mxu0
        %v3267 = vadd.f32 0.0, %v3266
        %v3268 = vpop.f32.mrb[0].mxu0
        %v3269 = vpop.f32.mrb[0].mxu0
        %v3270 = vadd.f32 0.0, %v3269
        %v3271 = vpop.f32.mrb[0].mxu0
        %3272 = vmatprep.mubr.bf16.mxu0 0
        %3273 = vmatmul.mubr.bf16.gmra.mrb[0].mxu0 %v3074
        %v3274 = vpop.f32.mrb[0].mxu0
        %v3275 = vadd.f32 0.0, %v3274
        %v3276 = vpop.f32.mrb[0].mxu0
        %v3277 = vpop.f32.mrb[0].mxu0
        %v3278 = vadd.f32 0.0, %v3277
        %v3279 = vpop.f32.mrb[0].mxu0
        %3280 = vmatprep.mubr.bf16.mxu0 0
        %3281 = vmatmul.mubr.bf16.gmra.mrb[0].mxu0 %v3077
        %v3282 = vpop.f32.mrb[0].mxu0
        %v3283 = vadd.f32 0.0, %v3282
        %v3284 = vpop.f32.mrb[0].mxu0
        %v3285 = vpop.f32.mrb[0].mxu0
        %v3286 = vadd.f32 0.0, %v3285
        %v3287 = vpop.f32.mrb[0].mxu0
        %3288 = vmatprep.mubr.bf16.mxu0 0
        %3289 = vmatmul.mubr.bf16.gmra.mrb[0].mxu0 %v3080
        %v3290 = vpop.f32.mrb[0].mxu0
        %v3291 = vadd.f32 0.0, %v3290
        %v3292 = vpop.f32.mrb[0].mxu0
        %v3293 = vpop.f32.mrb[0].mxu0
        %v3294 = vadd.f32 0.0, %v3293
        %v3295 = vpop.f32.mrb[0].mxu0
        %3296 = vmatprep.mubr.bf16.mxu0 0
        %3297 = vmatmul.mubr.bf16.gmra.mrb[0].mxu0 %v3083
        %v3298 = vpop.f32.mrb[0].mxu0
        %v3299 = vadd.f32 0.0, %v3298
        %v3300 = vpop.f32.mrb[0].mxu0
        %v3301 = vpop.f32.mrb[0].mxu0
        %v3302 = vadd.f32 0.0, %v3301
        %v3303 = vpop.f32.mrb[0].mxu0
        %3304 = vmatprep.mubr.bf16.mxu0 0
        %3305 = vmatmul.mubr.bf16.gmra.mrb[0].mxu0 %v3086
        %v3306 = vpop.f32.mrb[0].mxu0
        %v3307 = vadd.f32 0.0, %v3306
        %v3308 = vpop.f32.mrb[0].mxu0
        %v3309 = vpop.f32.mrb[0].mxu0
        %v3310 = vadd.f32 0.0, %v3309
        %v3311 = vpop.f32.mrb[0].mxu0
        %3312 = vdwg.mxu0
        %v3313 = vadd.f32 %v2883, %v3123
        %v3314 = vadd.f32 %v2884, %v3126
        %v3315 = vadd.f32 %v2885, %v3131
        %v3316 = vadd.f32 %v2886, %v3134
        %v3317 = vadd.f32 %v2887, %v3139
        %v3318 = vadd.f32 %v2888, %v3142
        %v3319 = vadd.f32 %v2889, %v3147
        %v3320 = vadd.f32 %v2890, %v3150
        %v3321 = vadd.f32 %v2891, %v3155
        %v3322 = vadd.f32 %v2892, %v3158
        %v3323 = vadd.f32 %v2893, %v3163
        %v3324 = vadd.f32 %v2894, %v3166
        %v3325 = vadd.f32 %v2895, %v3171
        %v3326 = vadd.f32 %v2896, %v3174
        %v3327 = vadd.f32 %v2897, %v3179
        %v3328 = vadd.f32 %v2898, %v3182
        %v3329 = vadd.f32 %v2899, %v3187
        %v3330 = vadd.f32 %v2900, %v3190
        %v3331 = vadd.f32 %v2901, %v3195
        %v3332 = vadd.f32 %v2902, %v3198
        %v3333 = vadd.f32 %v2903, %v3203
        %v3334 = vadd.f32 %v2904, %v3206
        %v3335 = vadd.f32 %v2905, %v3211
        %v3336 = vadd.f32 %v2906, %v3214
        %v3337 = vadd.f32 %v2907, %v3219
        %v3338 = vadd.f32 %v2908, %v3222
        %v3339 = vadd.f32 %v2909, %v3227
        %v3340 = vadd.f32 %v2910, %v3230
        %v3341 = vadd.f32 %v2911, %v3235
        %v3342 = vadd.f32 %v2912, %v3238
        %v3343 = vadd.f32 %v2913, %v3243
        %v3344 = vadd.f32 %v2914, %v3246
        %v3345 = vadd.f32 %v2915, %v3251
        %v3346 = vadd.f32 %v2916, %v3254
        %v3347 = vadd.f32 %v2917, %v3259
        %v3348 = vadd.f32 %v2918, %v3262
        %v3349 = vadd.f32 %v2919, %v3267
        %v3350 = vadd.f32 %v2920, %v3270
        %v3351 = vadd.f32 %v2921, %v3275
        %v3352 = vadd.f32 %v2922, %v3278
        %v3353 = vadd.f32 %v2923, %v3283
        %v3354 = vadd.f32 %v2924, %v3286
        %v3355 = vadd.f32 %v2925, %v3291
        %v3356 = vadd.f32 %v2926, %v3294
        %v3357 = vadd.f32 %v2927, %v3299
        %v3358 = vadd.f32 %v2928, %v3302
        %v3359 = vadd.f32 %v2929, %v3307
        %v3360 = vadd.f32 %v2930, %v3310
        %v3361 = vld [vmem:[%s178 + $0x18] sm:$0xf]
        %v3362 = vld [vmem:[%s178 + $0x1c] sm:$0xf]
        %v3363 = vld [vmem:[%s178 + $0x20] sm:$0xf]
        %v3364 = vld [vmem:[%s178 + $0x24] sm:$0xf]
        %v3365 = vld [vmem:[%s178 + $0x28] sm:$0xf]
        %v3366 = vld [vmem:[%s178 + $0x2c] sm:$0xf]
        %v3367 = vld [vmem:[%s178 + $0x30] sm:$0xf]
        %v3368 = vld [vmem:[%s178 + $0x34] sm:$0xf]
        %v3369 = vld [vmem:[%s178 + $0x38] sm:$0xf]
        %v3370 = vld [vmem:[%s178 + $0x3c] sm:$0xf]
        %v3371 = vld [vmem:[%s178 + $0x40] sm:$0xf]
        %v3372 = vld [vmem:[%s178 + $0x44] sm:$0xf]
        %v3373 = vld [vmem:[%s178 + $0x48] sm:$0xf]
        %v3374 = vld [vmem:[%s178 + $0x4c] sm:$0xf]
        %v3375 = vld [vmem:[%s178 + $0x50] sm:$0xf]
        %v3376 = vld [vmem:[%s178 + $0x54] sm:$0xf]
        %v3377 = vld [vmem:[%s178 + $0x58] sm:$0xf]
        %v3378 = vld [vmem:[%s178 + $0x5c] sm:$0xf]
        %v3379 = vld [vmem:[%s178 + $0x60] sm:$0xf]
        %v3380 = vld [vmem:[%s178 + $0x64] sm:$0xf]
        %v3381 = vld [vmem:[%s178 + $0x68] sm:$0xf]
        %v3382 = vld [vmem:[%s178 + $0x6c] sm:$0xf]
        %v3383 = vld [vmem:[%s178 + $0x70] sm:$0xf]
        %v3384 = vld [vmem:[%s178 + $0x74] sm:$0xf]
        %v3385 = vld [vmem:[%s178 + $0x78] sm:$0xf]
        %v3386 = vld [vmem:[%s178 + $0x7c] sm:$0xf]
        %v3387 = vld [vmem:[%s178 + $0x80] sm:$0xf]
        %v3388 = vld [vmem:[%s178 + $0x84] sm:$0xf]
        %v3389 = vld [vmem:[%s178 + $0x88] sm:$0xf]
        %v3390 = vld [vmem:[%s178 + $0x8c] sm:$0xf]
        %v3391 = vld [vmem:[%s178 + $0x90] sm:$0xf]
        %v3392 = vld [vmem:[%s178 + $0x94] sm:$0xf]
        %v3393 = vld [vmem:[%s178 + $0x98] sm:$0xf]
        %v3394 = vld [vmem:[%s178 + $0x9c] sm:$0xf]
        %v3395 = vld [vmem:[%s178 + $0xa0] sm:$0xf]
        %v3396 = vld [vmem:[%s178 + $0xa4] sm:$0xf]
        %v3397 = vld [vmem:[%s178 + $0xa8] sm:$0xf]
        %v3398 = vld [vmem:[%s178 + $0xac] sm:$0xf]
        %v3399 = vld [vmem:[%s178 + $0xb0] sm:$0xf]
        %v3400 = vld [vmem:[%s178 + $0xb4] sm:$0xf]
        %v3401 = vld [vmem:[%s178 + $0xb8] sm:$0xf]
        %v3402 = vld [vmem:[%s178 + $0xbc] sm:$0xf]
        %v3403 = vld [vmem:[%s178 + $0xc0] sm:$0xf]
        %v3404 = vld [vmem:[%s178 + $0xc4] sm:$0xf]
        %v3405 = vld [vmem:[%s178 + $0xc8] sm:$0xf]
        %v3406 = vld [vmem:[%s178 + $0xcc] sm:$0xf]
        %v3407 = vld [vmem:[%s178 + $0xd0] sm:$0xf]
        %v3408 = vld [vmem:[%s178 + $0xd4] sm:$0xf]
        %v3409 = vld [vmem:[#allocation6 + $0xc0] sm:$0xf]
        %v3410 = vld [vmem:[#allocation6 + $0xc4] sm:$0xf]
        %v3411 = vld [vmem:[#allocation6 + $0xc8] sm:$0xf]
        %v3412 = vld [vmem:[#allocation6 + $0xcc] sm:$0xf]
        %v3413 = vld [vmem:[#allocation6 + $0xd0] sm:$0xf]
        %v3414 = vld [vmem:[#allocation6 + $0xd4] sm:$0xf]
        %v3415 = vld [vmem:[#allocation6 + $0xd8] sm:$0xf]
        %v3416 = vld [vmem:[#allocation6 + $0xdc] sm:$0xf]
        %v3465 = vunpack.c.l.b16 %v3361
        %v3466 = vunpack.c.l.b16 %v3362
        %v3467 = vunpack.c.l.b16 %v3363
        %v3468 = vunpack.c.l.b16 %v3364
        %v3469 = vunpack.c.l.b16 %v3365
        %v3470 = vunpack.c.l.b16 %v3366
        %v3471 = vunpack.c.l.b16 %v3367
        %v3472 = vunpack.c.l.b16 %v3368
        %v3473 = vunpack.c.l.b16 %v3369
        %v3474 = vunpack.c.l.b16 %v3370
        %v3475 = vunpack.c.l.b16 %v3371
        %v3476 = vunpack.c.l.b16 %v3372
        %v3477 = vunpack.c.l.b16 %v3373
        %v3478 = vunpack.c.l.b16 %v3374
        %v3479 = vunpack.c.l.b16 %v3375
        %v3480 = vunpack.c.l.b16 %v3376
        %v3481 = vunpack.c.l.b16 %v3377
        %v3482 = vunpack.c.l.b16 %v3378
        %v3483 = vunpack.c.l.b16 %v3379
        %v3484 = vunpack.c.l.b16 %v3380
        %v3485 = vunpack.c.l.b16 %v3381
        %v3486 = vunpack.c.l.b16 %v3382
        %v3487 = vunpack.c.l.b16 %v3383
        %v3488 = vunpack.c.l.b16 %v3384
        %v3489 = vunpack.c.l.b16 %v3385
        %v3490 = vunpack.c.l.b16 %v3386
        %v3491 = vunpack.c.l.b16 %v3387
        %v3492 = vunpack.c.l.b16 %v3388
        %v3493 = vunpack.c.l.b16 %v3389
        %v3494 = vunpack.c.l.b16 %v3390
        %v3495 = vunpack.c.l.b16 %v3391
        %v3496 = vunpack.c.l.b16 %v3392
        %v3497 = vunpack.c.l.b16 %v3393
        %v3498 = vunpack.c.l.b16 %v3394
        %v3499 = vunpack.c.l.b16 %v3395
        %v3500 = vunpack.c.l.b16 %v3396
        %v3501 = vunpack.c.l.b16 %v3397
        %v3502 = vunpack.c.l.b16 %v3398
        %v3503 = vunpack.c.l.b16 %v3399
        %v3504 = vunpack.c.l.b16 %v3400
        %v3505 = vunpack.c.l.b16 %v3401
        %v3506 = vunpack.c.l.b16 %v3402
        %v3507 = vunpack.c.l.b16 %v3403
        %v3508 = vunpack.c.l.b16 %v3404
        %v3509 = vunpack.c.l.b16 %v3405
        %v3510 = vunpack.c.l.b16 %v3406
        %v3511 = vunpack.c.l.b16 %v3407
        %v3512 = vunpack.c.l.b16 %v3408
        %v3513 = vpack.c.b16 %v3466, %v3465
        %v3514 = vpack.c.b16 %v3468, %v3467
        %v3515 = vpack.c.b16 %v3470, %v3469
        %v3516 = vpack.c.b16 %v3472, %v3471
        %v3517 = vpack.c.b16 %v3474, %v3473
        %v3518 = vpack.c.b16 %v3476, %v3475
        %v3519 = vpack.c.b16 %v3478, %v3477
        %v3520 = vpack.c.b16 %v3480, %v3479
        %v3521 = vpack.c.b16 %v3482, %v3481
        %v3522 = vpack.c.b16 %v3484, %v3483
        %v3523 = vpack.c.b16 %v3486, %v3485
        %v3524 = vpack.c.b16 %v3488, %v3487
        %v3525 = vpack.c.b16 %v3490, %v3489
        %v3526 = vpack.c.b16 %v3492, %v3491
        %v3527 = vpack.c.b16 %v3494, %v3493
        %v3528 = vpack.c.b16 %v3496, %v3495
        %v3529 = vpack.c.b16 %v3498, %v3497
        %v3530 = vpack.c.b16 %v3500, %v3499
        %v3531 = vpack.c.b16 %v3502, %v3501
        %v3532 = vpack.c.b16 %v3504, %v3503
        %v3533 = vpack.c.b16 %v3506, %v3505
        %v3534 = vpack.c.b16 %v3508, %v3507
        %v3535 = vpack.c.b16 %v3510, %v3509
        %v3536 = vpack.c.b16 %v3512, %v3511
        %v3545 = vunpack.c.l.b16 %v3409
        %v3546 = vunpack.c.l.b16 %v3410
        %v3547 = vunpack.c.l.b16 %v3411
        %v3548 = vunpack.c.l.b16 %v3412
        %v3549 = vunpack.c.l.b16 %v3413
        %v3550 = vunpack.c.l.b16 %v3414
        %v3551 = vunpack.c.l.b16 %v3415
        %v3552 = vunpack.c.l.b16 %v3416
        %v3553 = vpack.c.b16 %v3546, %v3545
        %v3554 = vpack.c.b16 %v3548, %v3547
        %v3555 = vpack.c.b16 %v3550, %v3549
        %v3556 = vpack.c.b16 %v3552, %v3551
        %v3562 = vsel %vm615, %v3513, 0
        %v3565 = vsel %vm615, %v3514, 0
        %v3568 = vsel %vm615, %v3515, 0
        %v3571 = vsel %vm615, %v3516, 0
        %v3574 = vsel %vm615, %v3517, 0
        %v3577 = vsel %vm615, %v3518, 0
        %v3580 = vsel %vm615, %v3519, 0
        %v3583 = vsel %vm615, %v3520, 0
        %v3586 = vsel %vm615, %v3521, 0
        %v3589 = vsel %vm615, %v3522, 0
        %v3592 = vsel %vm615, %v3523, 0
        %v3595 = vsel %vm615, %v3524, 0
        %v3598 = vsel %vm615, %v3525, 0
        %v3601 = vsel %vm615, %v3526, 0
        %v3604 = vsel %vm615, %v3527, 0
        %v3607 = vsel %vm615, %v3528, 0
        %v3610 = vsel %vm615, %v3529, 0
        %v3613 = vsel %vm615, %v3530, 0
        %v3616 = vsel %vm615, %v3531, 0
        %v3619 = vsel %vm615, %v3532, 0
        %v3622 = vsel %vm615, %v3533, 0
        %v3625 = vsel %vm615, %v3534, 0
        %v3628 = vsel %vm615, %v3535, 0
        %v3631 = vsel %vm615, %v3536, 0
        %3633 = vmatprep.subr.bf16.mxu0 0
        %3634 = vmatpush1.bf16.msra.mxu0 %v3553
        %3635 = vmatprep.subr.bf16.mxu0 0
        %3636 = vmatpush1.bf16.msra.mxu0 %v3554
        %3637 = vmatprep.subr.bf16.mxu0 0
        %3638 = vmatpush1.bf16.msra.mxu0 %v3555
        %3639 = vmatprep.subr.bf16.mxu0 0
        %3640 = vmatpush1.bf16.msra.mxu0 %v3556
        %3641 = vmatprep.subr.bf16.mxu0 0
        %3642 = vmatpush1.bf16.msra.mxu0 0
        %3643 = vmatprep.subr.bf16.mxu0 0
        %3644 = vmatpush1.bf16.msra.mxu0 0
        %3645 = vmatprep.subr.bf16.mxu0 0
        %3646 = vmatpush1.bf16.msra.mxu0 0
        %3647 = vmatprep.subr.bf16.mxu0 0
        %3648 = vmatpush1.bf16.msra.mxu0 0
        %3649 = vmatprep.subr.bf16.mxu0 0
        %3650 = vmatpush1.bf16.msra.mxu0 0
        %3651 = vmatprep.subr.bf16.mxu0 0
        %3652 = vmatpush1.bf16.msra.mxu0 0
        %3653 = vmatprep.subr.bf16.mxu0 0
        %3654 = vmatpush1.bf16.msra.mxu0 0
        %3655 = vmatprep.subr.bf16.mxu0 0
        %3656 = vmatpush1.bf16.msra.mxu0 0
        %3657 = vmatprep.subr.bf16.mxu0 0
        %3658 = vmatpush1.bf16.msra.mxu0 0
        %3659 = vmatprep.subr.bf16.mxu0 0
        %3660 = vmatpush1.bf16.msra.mxu0 0
        %3661 = vmatprep.subr.bf16.mxu0 0
        %3662 = vmatpush1.bf16.msra.mxu0 0
        %3663 = vmatprep.subr.bf16.mxu0 0
        %3664 = vmatpush1.bf16.msra.mxu0 0
        %3665 = vmatprep.mubr.bf16.mxu0 0
        %3666 = vmatmul.mubr.bf16.gmra.mrb[0].mxu0 %v3562
        %v3667 = vpop.f32.mrb[0].mxu0
        %v3668 = vadd.f32 0.0, %v3667
        %v3669 = vpop.f32.mrb[0].mxu0
        %v3670 = vpop.f32.mrb[0].mxu0
        %v3671 = vadd.f32 0.0, %v3670
        %v3672 = vpop.f32.mrb[0].mxu0
        %3673 = vmatprep.mubr.bf16.mxu0 0
        %3674 = vmatmul.mubr.bf16.gmra.mrb[0].mxu0 %v3565
        %v3675 = vpop.f32.mrb[0].mxu0
        %v3676 = vadd.f32 0.0, %v3675
        %v3677 = vpop.f32.mrb[0].mxu0
        %v3678 = vpop.f32.mrb[0].mxu0
        %v3679 = vadd.f32 0.0, %v3678
        %v3680 = vpop.f32.mrb[0].mxu0
        %3681 = vmatprep.mubr.bf16.mxu0 0
        %3682 = vmatmul.mubr.bf16.gmra.mrb[0].mxu0 %v3568
        %v3683 = vpop.f32.mrb[0].mxu0
        %v3684 = vadd.f32 0.0, %v3683
        %v3685 = vpop.f32.mrb[0].mxu0
        %v3686 = vpop.f32.mrb[0].mxu0
        %v3687 = vadd.f32 0.0, %v3686
        %v3688 = vpop.f32.mrb[0].mxu0
        %3689 = vmatprep.mubr.bf16.mxu0 0
        %3690 = vmatmul.mubr.bf16.gmra.mrb[0].mxu0 %v3571
        %v3691 = vpop.f32.mrb[0].mxu0
        %v3692 = vadd.f32 0.0, %v3691
        %v3693 = vpop.f32.mrb[0].mxu0
        %v3694 = vpop.f32.mrb[0].mxu0
        %v3695 = vadd.f32 0.0, %v3694
        %v3696 = vpop.f32.mrb[0].mxu0
        %3697 = vmatprep.mubr.bf16.mxu0 0
        %3698 = vmatmul.mubr.bf16.gmra.mrb[0].mxu0 %v3574
        %v3699 = vpop.f32.mrb[0].mxu0
        %v3700 = vadd.f32 0.0, %v3699
        %v3701 = vpop.f32.mrb[0].mxu0
        %v3702 = vpop.f32.mrb[0].mxu0
        %v3703 = vadd.f32 0.0, %v3702
        %v3704 = vpop.f32.mrb[0].mxu0
        %3705 = vmatprep.mubr.bf16.mxu0 0
        %3706 = vmatmul.mubr.bf16.gmra.mrb[0].mxu0 %v3577
        %v3707 = vpop.f32.mrb[0].mxu0
        %v3708 = vadd.f32 0.0, %v3707
        %v3709 = vpop.f32.mrb[0].mxu0
        %v3710 = vpop.f32.mrb[0].mxu0
        %v3711 = vadd.f32 0.0, %v3710
        %v3712 = vpop.f32.mrb[0].mxu0
        %3713 = vmatprep.mubr.bf16.mxu0 0
        %3714 = vmatmul.mubr.bf16.gmra.mrb[0].mxu0 %v3580
        %v3715 = vpop.f32.mrb[0].mxu0
        %v3716 = vadd.f32 0.0, %v3715
        %v3717 = vpop.f32.mrb[0].mxu0
        %v3718 = vpop.f32.mrb[0].mxu0
        %v3719 = vadd.f32 0.0, %v3718
        %v3720 = vpop.f32.mrb[0].mxu0
        %3721 = vmatprep.mubr.bf16.mxu0 0
        %3722 = vmatmul.mubr.bf16.gmra.mrb[0].mxu0 %v3583
        %v3723 = vpop.f32.mrb[0].mxu0
        %v3724 = vadd.f32 0.0, %v3723
        %v3725 = vpop.f32.mrb[0].mxu0
        %v3726 = vpop.f32.mrb[0].mxu0
        %v3727 = vadd.f32 0.0, %v3726
        %v3728 = vpop.f32.mrb[0].mxu0
        %3729 = vmatprep.mubr.bf16.mxu0 0
        %3730 = vmatmul.mubr.bf16.gmra.mrb[0].mxu0 %v3586
        %v3731 = vpop.f32.mrb[0].mxu0
        %v3732 = vadd.f32 0.0, %v3731
        %v3733 = vpop.f32.mrb[0].mxu0
        %v3734 = vpop.f32.mrb[0].mxu0
        %v3735 = vadd.f32 0.0, %v3734
        %v3736 = vpop.f32.mrb[0].mxu0
        %3737 = vmatprep.mubr.bf16.mxu0 0
        %3738 = vmatmul.mubr.bf16.gmra.mrb[0].mxu0 %v3589
        %v3739 = vpop.f32.mrb[0].mxu0
        %v3740 = vadd.f32 0.0, %v3739
        %v3741 = vpop.f32.mrb[0].mxu0
        %v3742 = vpop.f32.mrb[0].mxu0
        %v3743 = vadd.f32 0.0, %v3742
        %v3744 = vpop.f32.mrb[0].mxu0
        %3745 = vmatprep.mubr.bf16.mxu0 0
        %3746 = vmatmul.mubr.bf16.gmra.mrb[0].mxu0 %v3592
        %v3747 = vpop.f32.mrb[0].mxu0
        %v3748 = vadd.f32 0.0, %v3747
        %v3749 = vpop.f32.mrb[0].mxu0
        %v3750 = vpop.f32.mrb[0].mxu0
        %v3751 = vadd.f32 0.0, %v3750
        %v3752 = vpop.f32.mrb[0].mxu0
        %3753 = vmatprep.mubr.bf16.mxu0 0
        %3754 = vmatmul.mubr.bf16.gmra.mrb[0].mxu0 %v3595
        %v3755 = vpop.f32.mrb[0].mxu0
        %v3756 = vadd.f32 0.0, %v3755
        %v3757 = vpop.f32.mrb[0].mxu0
        %v3758 = vpop.f32.mrb[0].mxu0
        %v3759 = vadd.f32 0.0, %v3758
        %v3760 = vpop.f32.mrb[0].mxu0
        %3761 = vmatprep.mubr.bf16.mxu0 0
        %3762 = vmatmul.mubr.bf16.gmra.mrb[0].mxu0 %v3598
        %v3763 = vpop.f32.mrb[0].mxu0
        %v3764 = vadd.f32 0.0, %v3763
        %v3765 = vpop.f32.mrb[0].mxu0
        %v3766 = vpop.f32.mrb[0].mxu0
        %v3767 = vadd.f32 0.0, %v3766
        %v3768 = vpop.f32.mrb[0].mxu0
        %3769 = vmatprep.mubr.bf16.mxu0 0
        %3770 = vmatmul.mubr.bf16.gmra.mrb[0].mxu0 %v3601
        %v3771 = vpop.f32.mrb[0].mxu0
        %v3772 = vadd.f32 0.0, %v3771
        %v3773 = vpop.f32.mrb[0].mxu0
        %v3774 = vpop.f32.mrb[0].mxu0
        %v3775 = vadd.f32 0.0, %v3774
        %v3776 = vpop.f32.mrb[0].mxu0
        %3777 = vmatprep.mubr.bf16.mxu0 0
        %3778 = vmatmul.mubr.bf16.gmra.mrb[0].mxu0 %v3604
        %v3779 = vpop.f32.mrb[0].mxu0
        %v3780 = vadd.f32 0.0, %v3779
        %v3781 = vpop.f32.mrb[0].mxu0
        %v3782 = vpop.f32.mrb[0].mxu0
        %v3783 = vadd.f32 0.0, %v3782
        %v3784 = vpop.f32.mrb[0].mxu0
        %3785 = vmatprep.mubr.bf16.mxu0 0
        %3786 = vmatmul.mubr.bf16.gmra.mrb[0].mxu0 %v3607
        %v3787 = vpop.f32.mrb[0].mxu0
        %v3788 = vadd.f32 0.0, %v3787
        %v3789 = vpop.f32.mrb[0].mxu0
        %v3790 = vpop.f32.mrb[0].mxu0
        %v3791 = vadd.f32 0.0, %v3790
        %v3792 = vpop.f32.mrb[0].mxu0
        %3793 = vmatprep.mubr.bf16.mxu0 0
        %3794 = vmatmul.mubr.bf16.gmra.mrb[0].mxu0 %v3610
        %v3795 = vpop.f32.mrb[0].mxu0
        %v3796 = vadd.f32 0.0, %v3795
        %v3797 = vpop.f32.mrb[0].mxu0
        %v3798 = vpop.f32.mrb[0].mxu0
        %v3799 = vadd.f32 0.0, %v3798
        %v3800 = vpop.f32.mrb[0].mxu0
        %3801 = vmatprep.mubr.bf16.mxu0 0
        %3802 = vmatmul.mubr.bf16.gmra.mrb[0].mxu0 %v3613
        %v3803 = vpop.f32.mrb[0].mxu0
        %v3804 = vadd.f32 0.0, %v3803
        %v3805 = vpop.f32.mrb[0].mxu0
        %v3806 = vpop.f32.mrb[0].mxu0
        %v3807 = vadd.f32 0.0, %v3806
        %v3808 = vpop.f32.mrb[0].mxu0
        %3809 = vmatprep.mubr.bf16.mxu0 0
        %3810 = vmatmul.mubr.bf16.gmra.mrb[0].mxu0 %v3616
        %v3811 = vpop.f32.mrb[0].mxu0
        %v3812 = vadd.f32 0.0, %v3811
        %v3813 = vpop.f32.mrb[0].mxu0
        %v3814 = vpop.f32.mrb[0].mxu0
        %v3815 = vadd.f32 0.0, %v3814
        %v3816 = vpop.f32.mrb[0].mxu0
        %3817 = vmatprep.mubr.bf16.mxu0 0
        %3818 = vmatmul.mubr.bf16.gmra.mrb[0].mxu0 %v3619
        %v3819 = vpop.f32.mrb[0].mxu0
        %v3820 = vadd.f32 0.0, %v3819
        %v3821 = vpop.f32.mrb[0].mxu0
        %v3822 = vpop.f32.mrb[0].mxu0
        %v3823 = vadd.f32 0.0, %v3822
        %v3824 = vpop.f32.mrb[0].mxu0
        %3825 = vmatprep.mubr.bf16.mxu0 0
        %3826 = vmatmul.mubr.bf16.gmra.mrb[0].mxu0 %v3622
        %v3827 = vpop.f32.mrb[0].mxu0
        %v3828 = vadd.f32 0.0, %v3827
        %v3829 = vpop.f32.mrb[0].mxu0
        %v3830 = vpop.f32.mrb[0].mxu0
        %v3831 = vadd.f32 0.0, %v3830
        %v3832 = vpop.f32.mrb[0].mxu0
        %3833 = vmatprep.mubr.bf16.mxu0 0
        %3834 = vmatmul.mubr.bf16.gmra.mrb[0].mxu0 %v3625
        %v3835 = vpop.f32.mrb[0].mxu0
        %v3836 = vadd.f32 0.0, %v3835
        %v3837 = vpop.f32.mrb[0].mxu0
        %v3838 = vpop.f32.mrb[0].mxu0
        %v3839 = vadd.f32 0.0, %v3838
        %v3840 = vpop.f32.mrb[0].mxu0
        %3841 = vmatprep.mubr.bf16.mxu0 0
        %3842 = vmatmul.mubr.bf16.gmra.mrb[0].mxu0 %v3628
        %v3843 = vpop.f32.mrb[0].mxu0
        %v3844 = vadd.f32 0.0, %v3843
        %v3845 = vpop.f32.mrb[0].mxu0
        %v3846 = vpop.f32.mrb[0].mxu0
        %v3847 = vadd.f32 0.0, %v3846
        %v3848 = vpop.f32.mrb[0].mxu0
        %3849 = vmatprep.mubr.bf16.mxu0 0
        %3850 = vmatmul.mubr.bf16.gmra.mrb[0].mxu0 %v3631
        %v3851 = vpop.f32.mrb[0].mxu0
        %v3852 = vadd.f32 0.0, %v3851
        %v3853 = vpop.f32.mrb[0].mxu0
        %v3854 = vpop.f32.mrb[0].mxu0
        %v3855 = vadd.f32 0.0, %v3854
        %v3856 = vpop.f32.mrb[0].mxu0
        %3857 = vdwg.mxu0
        %v3858 = vadd.f32 %v3313, %v3668
        %v3859 = vadd.f32 %v3314, %v3671
        %v3860 = vadd.f32 %v3315, %v3676
        %v3861 = vadd.f32 %v3316, %v3679
        %v3862 = vadd.f32 %v3317, %v3684
        %v3863 = vadd.f32 %v3318, %v3687
        %v3864 = vadd.f32 %v3319, %v3692
        %v3865 = vadd.f32 %v3320, %v3695
        %v3866 = vadd.f32 %v3321, %v3700
        %v3867 = vadd.f32 %v3322, %v3703
        %v3868 = vadd.f32 %v3323, %v3708
        %v3869 = vadd.f32 %v3324, %v3711
        %v3870 = vadd.f32 %v3325, %v3716
        %v3871 = vadd.f32 %v3326, %v3719
        %v3872 = vadd.f32 %v3327, %v3724
        %v3873 = vadd.f32 %v3328, %v3727
        %v3874 = vadd.f32 %v3329, %v3732
        %v3875 = vadd.f32 %v3330, %v3735
        %v3876 = vadd.f32 %v3331, %v3740
        %v3877 = vadd.f32 %v3332, %v3743
        %v3878 = vadd.f32 %v3333, %v3748
        %v3879 = vadd.f32 %v3334, %v3751
        %v3880 = vadd.f32 %v3335, %v3756
        %v3881 = vadd.f32 %v3336, %v3759
        %v3882 = vadd.f32 %v3337, %v3764
        %v3883 = vadd.f32 %v3338, %v3767
        %v3884 = vadd.f32 %v3339, %v3772
        %v3885 = vadd.f32 %v3340, %v3775
        %v3886 = vadd.f32 %v3341, %v3780
        %v3887 = vadd.f32 %v3342, %v3783
        %v3888 = vadd.f32 %v3343, %v3788
        %v3889 = vadd.f32 %v3344, %v3791
        %v3890 = vadd.f32 %v3345, %v3796
        %v3891 = vadd.f32 %v3346, %v3799
        %v3892 = vadd.f32 %v3347, %v3804
        %v3893 = vadd.f32 %v3348, %v3807
        %v3894 = vadd.f32 %v3349, %v3812
        %v3895 = vadd.f32 %v3350, %v3815
        %v3896 = vadd.f32 %v3351, %v3820
        %v3897 = vadd.f32 %v3352, %v3823
        %v3898 = vadd.f32 %v3353, %v3828
        %v3899 = vadd.f32 %v3354, %v3831
        %v3900 = vadd.f32 %v3355, %v3836
        %v3901 = vadd.f32 %v3356, %v3839
        %v3902 = vadd.f32 %v3357, %v3844
        %v3903 = vadd.f32 %v3358, %v3847
        %v3904 = vadd.f32 %v3359, %v3852
        %v3905 = vadd.f32 %v3360, %v3855
        %v3906 = vld [vmem:[%s178 + $0x18] sm:$0xf]
        %v3907 = vld [vmem:[%s178 + $0x1c] sm:$0xf]
        %v3908 = vld [vmem:[%s178 + $0x20] sm:$0xf]
        %v3909 = vld [vmem:[%s178 + $0x24] sm:$0xf]
        %v3910 = vld [vmem:[%s178 + $0x28] sm:$0xf]
        %v3911 = vld [vmem:[%s178 + $0x2c] sm:$0xf]
        %v3912 = vld [vmem:[%s178 + $0x30] sm:$0xf]
        %v3913 = vld [vmem:[%s178 + $0x34] sm:$0xf]
        %v3914 = vld [vmem:[%s178 + $0x38] sm:$0xf]
        %v3915 = vld [vmem:[%s178 + $0x3c] sm:$0xf]
        %v3916 = vld [vmem:[%s178 + $0x40] sm:$0xf]
        %v3917 = vld [vmem:[%s178 + $0x44] sm:$0xf]
        %v3918 = vld [vmem:[%s178 + $0x48] sm:$0xf]
        %v3919 = vld [vmem:[%s178 + $0x4c] sm:$0xf]
        %v3920 = vld [vmem:[%s178 + $0x50] sm:$0xf]
        %v3921 = vld [vmem:[%s178 + $0x54] sm:$0xf]
        %v3922 = vld [vmem:[%s178 + $0x58] sm:$0xf]
        %v3923 = vld [vmem:[%s178 + $0x5c] sm:$0xf]
        %v3924 = vld [vmem:[%s178 + $0x60] sm:$0xf]
        %v3925 = vld [vmem:[%s178 + $0x64] sm:$0xf]
        %v3926 = vld [vmem:[%s178 + $0x68] sm:$0xf]
        %v3927 = vld [vmem:[%s178 + $0x6c] sm:$0xf]
        %v3928 = vld [vmem:[%s178 + $0x70] sm:$0xf]
        %v3929 = vld [vmem:[%s178 + $0x74] sm:$0xf]
        %v3930 = vld [vmem:[%s178 + $0x78] sm:$0xf]
        %v3931 = vld [vmem:[%s178 + $0x7c] sm:$0xf]
        %v3932 = vld [vmem:[%s178 + $0x80] sm:$0xf]
        %v3933 = vld [vmem:[%s178 + $0x84] sm:$0xf]
        %v3934 = vld [vmem:[%s178 + $0x88] sm:$0xf]
        %v3935 = vld [vmem:[%s178 + $0x8c] sm:$0xf]
        %v3936 = vld [vmem:[%s178 + $0x90] sm:$0xf]
        %v3937 = vld [vmem:[%s178 + $0x94] sm:$0xf]
        %v3938 = vld [vmem:[%s178 + $0x98] sm:$0xf]
        %v3939 = vld [vmem:[%s178 + $0x9c] sm:$0xf]
        %v3940 = vld [vmem:[%s178 + $0xa0] sm:$0xf]
        %v3941 = vld [vmem:[%s178 + $0xa4] sm:$0xf]
        %v3942 = vld [vmem:[%s178 + $0xa8] sm:$0xf]
        %v3943 = vld [vmem:[%s178 + $0xac] sm:$0xf]
        %v3944 = vld [vmem:[%s178 + $0xb0] sm:$0xf]
        %v3945 = vld [vmem:[%s178 + $0xb4] sm:$0xf]
        %v3946 = vld [vmem:[%s178 + $0xb8] sm:$0xf]
        %v3947 = vld [vmem:[%s178 + $0xbc] sm:$0xf]
        %v3948 = vld [vmem:[%s178 + $0xc0] sm:$0xf]
        %v3949 = vld [vmem:[%s178 + $0xc4] sm:$0xf]
        %v3950 = vld [vmem:[%s178 + $0xc8] sm:$0xf]
        %v3951 = vld [vmem:[%s178 + $0xcc] sm:$0xf]
        %v3952 = vld [vmem:[%s178 + $0xd0] sm:$0xf]
        %v3953 = vld [vmem:[%s178 + $0xd4] sm:$0xf]
        %v3954 = vld [vmem:[%s178 + $0xd8] sm:$0x1]
        %v3955 = vld [vmem:[#allocation6 + $0xe0] sm:$0xf]
        %v3956 = vld [vmem:[#allocation6 + $0xe4] sm:$0xf]
        %v3957 = vld [vmem:[#allocation6 + $0xe8] sm:$0xf]
        %v3958 = vld [vmem:[#allocation6 + $0xec] sm:$0xf]
        %v3959 = vld [vmem:[#allocation6 + $0xf0] sm:$0xf]
        %v3960 = vld [vmem:[#allocation6 + $0xf4] sm:$0xf]
        %v3961 = vld [vmem:[#allocation6 + $0xf8] sm:$0xf]
        %v3962 = vld [vmem:[#allocation6 + $0xfc] sm:$0xf]
        %v4012 = vunpack.c.l.b16 %v3906
        %v4013 = vunpack.c.l.b16 %v3907
        %v4014 = vunpack.c.l.b16 %v3908
        %v4015 = vunpack.c.l.b16 %v3909
        %v4016 = vunpack.c.l.b16 %v3910
        %v4017 = vunpack.c.l.b16 %v3911
        %v4018 = vunpack.c.l.b16 %v3912
        %v4019 = vunpack.c.l.b16 %v3913
        %v4020 = vunpack.c.l.b16 %v3914
        %v4021 = vunpack.c.l.b16 %v3915
        %v4022 = vunpack.c.l.b16 %v3916
        %v4023 = vunpack.c.l.b16 %v3917
        %v4024 = vunpack.c.l.b16 %v3918
        %v4025 = vunpack.c.l.b16 %v3919
        %v4026 = vunpack.c.l.b16 %v3920
        %v4027 = vunpack.c.l.b16 %v3921
        %v4028 = vunpack.c.l.b16 %v3922
        %v4029 = vunpack.c.l.b16 %v3923
        %v4030 = vunpack.c.l.b16 %v3924
        %v4031 = vunpack.c.l.b16 %v3925
        %v4032 = vunpack.c.l.b16 %v3926
        %v4033 = vunpack.c.l.b16 %v3927
        %v4034 = vunpack.c.l.b16 %v3928
        %v4035 = vunpack.c.l.b16 %v3929
        %v4036 = vunpack.c.l.b16 %v3930
        %v4037 = vunpack.c.l.b16 %v3931
        %v4038 = vunpack.c.l.b16 %v3932
        %v4039 = vunpack.c.l.b16 %v3933
        %v4040 = vunpack.c.l.b16 %v3934
        %v4041 = vunpack.c.l.b16 %v3935
        %v4042 = vunpack.c.l.b16 %v3936
        %v4043 = vunpack.c.l.b16 %v3937
        %v4044 = vunpack.c.l.b16 %v3938
        %v4045 = vunpack.c.l.b16 %v3939
        %v4046 = vunpack.c.l.b16 %v3940
        %v4047 = vunpack.c.l.b16 %v3941
        %v4048 = vunpack.c.l.b16 %v3942
        %v4049 = vunpack.c.l.b16 %v3943
        %v4050 = vunpack.c.l.b16 %v3944
        %v4051 = vunpack.c.l.b16 %v3945
        %v4052 = vunpack.c.l.b16 %v3946
        %v4053 = vunpack.c.l.b16 %v3947
        %v4054 = vunpack.c.l.b16 %v3948
        %v4055 = vunpack.c.l.b16 %v3949
        %v4056 = vunpack.c.l.b16 %v3950
        %v4057 = vunpack.c.l.b16 %v3951
        %v4058 = vunpack.c.l.b16 %v3952
        %v4059 = vunpack.c.l.b16 %v3953
        %v4060 = vunpack.c.l.b16 %v3954
        %v4061 = vpack.c.b16 %v4013, %v4012
        %v4062 = vpack.c.b16 %v4015, %v4014
        %v4063 = vpack.c.b16 %v4017, %v4016
        %v4064 = vpack.c.b16 %v4019, %v4018
        %v4065 = vpack.c.b16 %v4021, %v4020
        %v4066 = vpack.c.b16 %v4023, %v4022
        %v4067 = vpack.c.b16 %v4025, %v4024
        %v4068 = vpack.c.b16 %v4027, %v4026
        %v4069 = vpack.c.b16 %v4029, %v4028
        %v4070 = vpack.c.b16 %v4031, %v4030
        %v4071 = vpack.c.b16 %v4033, %v4032
        %v4072 = vpack.c.b16 %v4035, %v4034
        %v4073 = vpack.c.b16 %v4037, %v4036
        %v4074 = vpack.c.b16 %v4039, %v4038
        %v4075 = vpack.c.b16 %v4041, %v4040
        %v4076 = vpack.c.b16 %v4043, %v4042
        %v4077 = vpack.c.b16 %v4045, %v4044
        %v4078 = vpack.c.b16 %v4047, %v4046
        %v4079 = vpack.c.b16 %v4049, %v4048
        %v4080 = vpack.c.b16 %v4051, %v4050
        %v4081 = vpack.c.b16 %v4053, %v4052
        %v4082 = vpack.c.b16 %v4055, %v4054
        %v4083 = vpack.c.b16 %v4057, %v4056
        %v4084 = vpack.c.b16 %v4059, %v4058
        %v4085 = vpack.c.b16 %v4060, %v4060
        %v4087 = vshrl.u32 %v4061, 16
        %v4089 = vshll.u32 %v4061, 16
        %v4091 = vrot.slane %v4089, 1
        %v4092 = vor.u32 %v4087, %v4091
        %v4094 = vshll.u32 %v4062, 16
        %v4096 = vrot.slane %v4094, 1
        %v4097 = vsel %vm394, %v4092, %v4096
        %v4098 = vshrl.u32 %v4062, 16
        %v4100 = vor.u32 %v4098, %v4096
        %v4102 = vshll.u32 %v4063, 16
        %v4104 = vrot.slane %v4102, 1
        %v4105 = vsel %vm394, %v4100, %v4104
        %v4106 = vshrl.u32 %v4063, 16
        %v4108 = vor.u32 %v4106, %v4104
        %v4110 = vshll.u32 %v4064, 16
        %v4112 = vrot.slane %v4110, 1
        %v4113 = vsel %vm394, %v4108, %v4112
        %v4114 = vshrl.u32 %v4064, 16
        %v4116 = vor.u32 %v4114, %v4112
        %v4118 = vshll.u32 %v4065, 16
        %v4120 = vrot.slane %v4118, 1
        %v4121 = vsel %vm394, %v4116, %v4120
        %v4122 = vshrl.u32 %v4065, 16
        %v4124 = vor.u32 %v4122, %v4120
        %v4126 = vshll.u32 %v4066, 16
        %v4128 = vrot.slane %v4126, 1
        %v4129 = vsel %vm394, %v4124, %v4128
        %v4130 = vshrl.u32 %v4066, 16
        %v4132 = vor.u32 %v4130, %v4128
        %v4134 = vshll.u32 %v4067, 16
        %v4136 = vrot.slane %v4134, 1
        %v4137 = vsel %vm394, %v4132, %v4136
        %v4138 = vshrl.u32 %v4067, 16
        %v4140 = vor.u32 %v4138, %v4136
        %v4142 = vshll.u32 %v4068, 16
        %v4144 = vrot.slane %v4142, 1
        %v4145 = vsel %vm394, %v4140, %v4144
        %v4146 = vshrl.u32 %v4068, 16
        %v4148 = vor.u32 %v4146, %v4144
        %v4150 = vshll.u32 %v4069, 16
        %v4152 = vrot.slane %v4150, 1
        %v4153 = vsel %vm394, %v4148, %v4152
        %v4154 = vshrl.u32 %v4069, 16
        %v4156 = vor.u32 %v4154, %v4152
        %v4158 = vshll.u32 %v4070, 16
        %v4160 = vrot.slane %v4158, 1
        %v4161 = vsel %vm394, %v4156, %v4160
        %v4162 = vshrl.u32 %v4070, 16
        %v4164 = vor.u32 %v4162, %v4160
        %v4166 = vshll.u32 %v4071, 16
        %v4168 = vrot.slane %v4166, 1
        %v4169 = vsel %vm394, %v4164, %v4168
        %v4170 = vshrl.u32 %v4071, 16
        %v4172 = vor.u32 %v4170, %v4168
        %v4174 = vshll.u32 %v4072, 16
        %v4176 = vrot.slane %v4174, 1
        %v4177 = vsel %vm394, %v4172, %v4176
        %v4178 = vshrl.u32 %v4072, 16
        %v4180 = vor.u32 %v4178, %v4176
        %v4182 = vshll.u32 %v4073, 16
        %v4184 = vrot.slane %v4182, 1
        %v4185 = vsel %vm394, %v4180, %v4184
        %v4186 = vshrl.u32 %v4073, 16
        %v4188 = vor.u32 %v4186, %v4184
        %v4190 = vshll.u32 %v4074, 16
        %v4192 = vrot.slane %v4190, 1
        %v4193 = vsel %vm394, %v4188, %v4192
        %v4194 = vshrl.u32 %v4074, 16
        %v4196 = vor.u32 %v4194, %v4192
        %v4198 = vshll.u32 %v4075, 16
        %v4200 = vrot.slane %v4198, 1
        %v4201 = vsel %vm394, %v4196, %v4200
        %v4202 = vshrl.u32 %v4075, 16
        %v4204 = vor.u32 %v4202, %v4200
        %v4206 = vshll.u32 %v4076, 16
        %v4208 = vrot.slane %v4206, 1
        %v4209 = vsel %vm394, %v4204, %v4208
        %v4210 = vshrl.u32 %v4076, 16
        %v4212 = vor.u32 %v4210, %v4208
        %v4214 = vshll.u32 %v4077, 16
        %v4216 = vrot.slane %v4214, 1
        %v4217 = vsel %vm394, %v4212, %v4216
        %v4218 = vshrl.u32 %v4077, 16
        %v4220 = vor.u32 %v4218, %v4216
        %v4222 = vshll.u32 %v4078, 16
        %v4224 = vrot.slane %v4222, 1
        %v4225 = vsel %vm394, %v4220, %v4224
        %v4226 = vshrl.u32 %v4078, 16
        %v4228 = vor.u32 %v4226, %v4224
        %v4230 = vshll.u32 %v4079, 16
        %v4232 = vrot.slane %v4230, 1
        %v4233 = vsel %vm394, %v4228, %v4232
        %v4234 = vshrl.u32 %v4079, 16
        %v4236 = vor.u32 %v4234, %v4232
        %v4238 = vshll.u32 %v4080, 16
        %v4240 = vrot.slane %v4238, 1
        %v4241 = vsel %vm394, %v4236, %v4240
        %v4242 = vshrl.u32 %v4080, 16
        %v4244 = vor.u32 %v4242, %v4240
        %v4246 = vshll.u32 %v4081, 16
        %v4248 = vrot.slane %v4246, 1
        %v4249 = vsel %vm394, %v4244, %v4248
        %v4250 = vshrl.u32 %v4081, 16
        %v4252 = vor.u32 %v4250, %v4248
        %v4254 = vshll.u32 %v4082, 16
        %v4256 = vrot.slane %v4254, 1
        %v4257 = vsel %vm394, %v4252, %v4256
        %v4258 = vshrl.u32 %v4082, 16
        %v4260 = vor.u32 %v4258, %v4256
        %v4262 = vshll.u32 %v4083, 16
        %v4264 = vrot.slane %v4262, 1
        %v4265 = vsel %vm394, %v4260, %v4264
        %v4266 = vshrl.u32 %v4083, 16
        %v4268 = vor.u32 %v4266, %v4264
        %v4270 = vshll.u32 %v4084, 16
        %v4272 = vrot.slane %v4270, 1
        %v4273 = vsel %vm394, %v4268, %v4272
        %v4274 = vshrl.u32 %v4084, 16
        %v4276 = vor.u32 %v4274, %v4272
        %v4278 = vshll.u32 %v4085, 16
        %v4280 = vrot.slane %v4278, 1
        %v4281 = vsel %vm394, %v4276, %v4280
        %v4290 = vunpack.c.l.b16 %v3955
        %v4291 = vunpack.c.l.b16 %v3956
        %v4292 = vunpack.c.l.b16 %v3957
        %v4293 = vunpack.c.l.b16 %v3958
        %v4294 = vunpack.c.l.b16 %v3959
        %v4295 = vunpack.c.l.b16 %v3960
        %v4296 = vunpack.c.l.b16 %v3961
        %v4297 = vunpack.c.l.b16 %v3962
        %v4298 = vpack.c.b16 %v4291, %v4290
        %v4299 = vpack.c.b16 %v4293, %v4292
        %v4300 = vpack.c.b16 %v4295, %v4294
        %v4301 = vpack.c.b16 %v4297, %v4296
        %v4307 = vsel %vm615, %v4097, 0
        %v4310 = vsel %vm615, %v4105, 0
        %v4313 = vsel %vm615, %v4113, 0
        %v4316 = vsel %vm615, %v4121, 0
        %v4319 = vsel %vm615, %v4129, 0
        %v4322 = vsel %vm615, %v4137, 0
        %v4325 = vsel %vm615, %v4145, 0
        %v4328 = vsel %vm615, %v4153, 0
        %v4331 = vsel %vm615, %v4161, 0
        %v4334 = vsel %vm615, %v4169, 0
        %v4337 = vsel %vm615, %v4177, 0
        %v4340 = vsel %vm615, %v4185, 0
        %v4343 = vsel %vm615, %v4193, 0
        %v4346 = vsel %vm615, %v4201, 0
        %v4349 = vsel %vm615, %v4209, 0
        %v4352 = vsel %vm615, %v4217, 0
        %v4355 = vsel %vm615, %v4225, 0
        %v4358 = vsel %vm615, %v4233, 0
        %v4361 = vsel %vm615, %v4241, 0
        %v4364 = vsel %vm615, %v4249, 0
        %v4367 = vsel %vm615, %v4257, 0
        %v4370 = vsel %vm615, %v4265, 0
        %v4373 = vsel %vm615, %v4273, 0
        %v4376 = vsel %vm615, %v4281, 0
        %4378 = vmatprep.subr.bf16.mxu0 0
        %4379 = vmatpush1.bf16.msra.mxu0 %v4298
        %4380 = vmatprep.subr.bf16.mxu0 0
        %4381 = vmatpush1.bf16.msra.mxu0 %v4299
        %4382 = vmatprep.subr.bf16.mxu0 0
        %4383 = vmatpush1.bf16.msra.mxu0 %v4300
        %4384 = vmatprep.subr.bf16.mxu0 0
        %4385 = vmatpush1.bf16.msra.mxu0 %v4301
        %4386 = vmatprep.subr.bf16.mxu0 0
        %4387 = vmatpush1.bf16.msra.mxu0 0
        %4388 = vmatprep.subr.bf16.mxu0 0
        %4389 = vmatpush1.bf16.msra.mxu0 0
        %4390 = vmatprep.subr.bf16.mxu0 0
        %4391 = vmatpush1.bf16.msra.mxu0 0
        %4392 = vmatprep.subr.bf16.mxu0 0
        %4393 = vmatpush1.bf16.msra.mxu0 0
        %4394 = vmatprep.subr.bf16.mxu0 0
        %4395 = vmatpush1.bf16.msra.mxu0 0
        %4396 = vmatprep.subr.bf16.mxu0 0
        %4397 = vmatpush1.bf16.msra.mxu0 0
        %4398 = vmatprep.subr.bf16.mxu0 0
        %4399 = vmatpush1.bf16.msra.mxu0 0
        %4400 = vmatprep.subr.bf16.mxu0 0
        %4401 = vmatpush1.bf16.msra.mxu0 0
        %4402 = vmatprep.subr.bf16.mxu0 0
        %4403 = vmatpush1.bf16.msra.mxu0 0
        %4404 = vmatprep.subr.bf16.mxu0 0
        %4405 = vmatpush1.bf16.msra.mxu0 0
        %4406 = vmatprep.subr.bf16.mxu0 0
        %4407 = vmatpush1.bf16.msra.mxu0 0
        %4408 = vmatprep.subr.bf16.mxu0 0
        %4409 = vmatpush1.bf16.msra.mxu0 0
        %4410 = vmatprep.mubr.bf16.mxu0 0
        %4411 = vmatmul.mubr.bf16.gmra.mrb[0].mxu0 %v4307
        %v4412 = vpop.f32.mrb[0].mxu0
        %v4413 = vadd.f32 0.0, %v4412
        %v4414 = vpop.f32.mrb[0].mxu0
        %v4415 = vpop.f32.mrb[0].mxu0
        %v4416 = vadd.f32 0.0, %v4415
        %v4417 = vpop.f32.mrb[0].mxu0
        %4418 = vmatprep.mubr.bf16.mxu0 0
        %4419 = vmatmul.mubr.bf16.gmra.mrb[0].mxu0 %v4310
        %v4420 = vpop.f32.mrb[0].mxu0
        %v4421 = vadd.f32 0.0, %v4420
        %v4422 = vpop.f32.mrb[0].mxu0
        %v4423 = vpop.f32.mrb[0].mxu0
        %v4424 = vadd.f32 0.0, %v4423
        %v4425 = vpop.f32.mrb[0].mxu0
        %4426 = vmatprep.mubr.bf16.mxu0 0
        %4427 = vmatmul.mubr.bf16.gmra.mrb[0].mxu0 %v4313
        %v4428 = vpop.f32.mrb[0].mxu0
        %v4429 = vadd.f32 0.0, %v4428
        %v4430 = vpop.f32.mrb[0].mxu0
        %v4431 = vpop.f32.mrb[0].mxu0
        %v4432 = vadd.f32 0.0, %v4431
        %v4433 = vpop.f32.mrb[0].mxu0
        %4434 = vmatprep.mubr.bf16.mxu0 0
        %4435 = vmatmul.mubr.bf16.gmra.mrb[0].mxu0 %v4316
        %v4436 = vpop.f32.mrb[0].mxu0
        %v4437 = vadd.f32 0.0, %v4436
        %v4438 = vpop.f32.mrb[0].mxu0
        %v4439 = vpop.f32.mrb[0].mxu0
        %v4440 = vadd.f32 0.0, %v4439
        %v4441 = vpop.f32.mrb[0].mxu0
        %4442 = vmatprep.mubr.bf16.mxu0 0
        %4443 = vmatmul.mubr.bf16.gmra.mrb[0].mxu0 %v4319
        %v4444 = vpop.f32.mrb[0].mxu0
        %v4445 = vadd.f32 0.0, %v4444
        %v4446 = vpop.f32.mrb[0].mxu0
        %v4447 = vpop.f32.mrb[0].mxu0
        %v4448 = vadd.f32 0.0, %v4447
        %v4449 = vpop.f32.mrb[0].mxu0
        %4450 = vmatprep.mubr.bf16.mxu0 0
        %4451 = vmatmul.mubr.bf16.gmra.mrb[0].mxu0 %v4322
        %v4452 = vpop.f32.mrb[0].mxu0
        %v4453 = vadd.f32 0.0, %v4452
        %v4454 = vpop.f32.mrb[0].mxu0
        %v4455 = vpop.f32.mrb[0].mxu0
        %v4456 = vadd.f32 0.0, %v4455
        %v4457 = vpop.f32.mrb[0].mxu0
        %4458 = vmatprep.mubr.bf16.mxu0 0
        %4459 = vmatmul.mubr.bf16.gmra.mrb[0].mxu0 %v4325
        %v4460 = vpop.f32.mrb[0].mxu0
        %v4461 = vadd.f32 0.0, %v4460
        %v4462 = vpop.f32.mrb[0].mxu0
        %v4463 = vpop.f32.mrb[0].mxu0
        %v4464 = vadd.f32 0.0, %v4463
        %v4465 = vpop.f32.mrb[0].mxu0
        %4466 = vmatprep.mubr.bf16.mxu0 0
        %4467 = vmatmul.mubr.bf16.gmra.mrb[0].mxu0 %v4328
        %v4468 = vpop.f32.mrb[0].mxu0
        %v4469 = vadd.f32 0.0, %v4468
        %v4470 = vpop.f32.mrb[0].mxu0
        %v4471 = vpop.f32.mrb[0].mxu0
        %v4472 = vadd.f32 0.0, %v4471
        %v4473 = vpop.f32.mrb[0].mxu0
        %4474 = vmatprep.mubr.bf16.mxu0 0
        %4475 = vmatmul.mubr.bf16.gmra.mrb[0].mxu0 %v4331
        %v4476 = vpop.f32.mrb[0].mxu0
        %v4477 = vadd.f32 0.0, %v4476
        %v4478 = vpop.f32.mrb[0].mxu0
        %v4479 = vpop.f32.mrb[0].mxu0
        %v4480 = vadd.f32 0.0, %v4479
        %v4481 = vpop.f32.mrb[0].mxu0
        %4482 = vmatprep.mubr.bf16.mxu0 0
        %4483 = vmatmul.mubr.bf16.gmra.mrb[0].mxu0 %v4334
        %v4484 = vpop.f32.mrb[0].mxu0
        %v4485 = vadd.f32 0.0, %v4484
        %v4486 = vpop.f32.mrb[0].mxu0
        %v4487 = vpop.f32.mrb[0].mxu0
        %v4488 = vadd.f32 0.0, %v4487
        %v4489 = vpop.f32.mrb[0].mxu0
        %4490 = vmatprep.mubr.bf16.mxu0 0
        %4491 = vmatmul.mubr.bf16.gmra.mrb[0].mxu0 %v4337
        %v4492 = vpop.f32.mrb[0].mxu0
        %v4493 = vadd.f32 0.0, %v4492
        %v4494 = vpop.f32.mrb[0].mxu0
        %v4495 = vpop.f32.mrb[0].mxu0
        %v4496 = vadd.f32 0.0, %v4495
        %v4497 = vpop.f32.mrb[0].mxu0
        %4498 = vmatprep.mubr.bf16.mxu0 0
        %4499 = vmatmul.mubr.bf16.gmra.mrb[0].mxu0 %v4340
        %v4500 = vpop.f32.mrb[0].mxu0
        %v4501 = vadd.f32 0.0, %v4500
        %v4502 = vpop.f32.mrb[0].mxu0
        %v4503 = vpop.f32.mrb[0].mxu0
        %v4504 = vadd.f32 0.0, %v4503
        %v4505 = vpop.f32.mrb[0].mxu0
        %4506 = vmatprep.mubr.bf16.mxu0 0
        %4507 = vmatmul.mubr.bf16.gmra.mrb[0].mxu0 %v4343
        %v4508 = vpop.f32.mrb[0].mxu0
        %v4509 = vadd.f32 0.0, %v4508
        %v4510 = vpop.f32.mrb[0].mxu0
        %v4511 = vpop.f32.mrb[0].mxu0
        %v4512 = vadd.f32 0.0, %v4511
        %v4513 = vpop.f32.mrb[0].mxu0
        %4514 = vmatprep.mubr.bf16.mxu0 0
        %4515 = vmatmul.mubr.bf16.gmra.mrb[0].mxu0 %v4346
        %v4516 = vpop.f32.mrb[0].mxu0
        %v4517 = vadd.f32 0.0, %v4516
        %v4518 = vpop.f32.mrb[0].mxu0
        %v4519 = vpop.f32.mrb[0].mxu0
        %v4520 = vadd.f32 0.0, %v4519
        %v4521 = vpop.f32.mrb[0].mxu0
        %4522 = vmatprep.mubr.bf16.mxu0 0
        %4523 = vmatmul.mubr.bf16.gmra.mrb[0].mxu0 %v4349
        %v4524 = vpop.f32.mrb[0].mxu0
        %v4525 = vadd.f32 0.0, %v4524
        %v4526 = vpop.f32.mrb[0].mxu0
        %v4527 = vpop.f32.mrb[0].mxu0
        %v4528 = vadd.f32 0.0, %v4527
        %v4529 = vpop.f32.mrb[0].mxu0
        %4530 = vmatprep.mubr.bf16.mxu0 0
        %4531 = vmatmul.mubr.bf16.gmra.mrb[0].mxu0 %v4352
        %v4532 = vpop.f32.mrb[0].mxu0
        %v4533 = vadd.f32 0.0, %v4532
        %v4534 = vpop.f32.mrb[0].mxu0
        %v4535 = vpop.f32.mrb[0].mxu0
        %v4536 = vadd.f32 0.0, %v4535
        %v4537 = vpop.f32.mrb[0].mxu0
        %4538 = vmatprep.mubr.bf16.mxu0 0
        %4539 = vmatmul.mubr.bf16.gmra.mrb[0].mxu0 %v4355
        %v4540 = vpop.f32.mrb[0].mxu0
        %v4541 = vadd.f32 0.0, %v4540
        %v4542 = vpop.f32.mrb[0].mxu0
        %v4543 = vpop.f32.mrb[0].mxu0
        %v4544 = vadd.f32 0.0, %v4543
        %v4545 = vpop.f32.mrb[0].mxu0
        %4546 = vmatprep.mubr.bf16.mxu0 0
        %4547 = vmatmul.mubr.bf16.gmra.mrb[0].mxu0 %v4358
        %v4548 = vpop.f32.mrb[0].mxu0
        %v4549 = vadd.f32 0.0, %v4548
        %v4550 = vpop.f32.mrb[0].mxu0
        %v4551 = vpop.f32.mrb[0].mxu0
        %v4552 = vadd.f32 0.0, %v4551
        %v4553 = vpop.f32.mrb[0].mxu0
        %4554 = vmatprep.mubr.bf16.mxu0 0
        %4555 = vmatmul.mubr.bf16.gmra.mrb[0].mxu0 %v4361
        %v4556 = vpop.f32.mrb[0].mxu0
        %v4557 = vadd.f32 0.0, %v4556
        %v4558 = vpop.f32.mrb[0].mxu0
        %v4559 = vpop.f32.mrb[0].mxu0
        %v4560 = vadd.f32 0.0, %v4559
        %v4561 = vpop.f32.mrb[0].mxu0
        %4562 = vmatprep.mubr.bf16.mxu0 0
        %4563 = vmatmul.mubr.bf16.gmra.mrb[0].mxu0 %v4364
        %v4564 = vpop.f32.mrb[0].mxu0
        %v4565 = vadd.f32 0.0, %v4564
        %v4566 = vpop.f32.mrb[0].mxu0
        %v4567 = vpop.f32.mrb[0].mxu0
        %v4568 = vadd.f32 0.0, %v4567
        %v4569 = vpop.f32.mrb[0].mxu0
        %4570 = vmatprep.mubr.bf16.mxu0 0
        %4571 = vmatmul.mubr.bf16.gmra.mrb[0].mxu0 %v4367
        %v4572 = vpop.f32.mrb[0].mxu0
        %v4573 = vadd.f32 0.0, %v4572
        %v4574 = vpop.f32.mrb[0].mxu0
        %v4575 = vpop.f32.mrb[0].mxu0
        %v4576 = vadd.f32 0.0, %v4575
        %v4577 = vpop.f32.mrb[0].mxu0
        %4578 = vmatprep.mubr.bf16.mxu0 0
        %4579 = vmatmul.mubr.bf16.gmra.mrb[0].mxu0 %v4370
        %v4580 = vpop.f32.mrb[0].mxu0
        %v4581 = vadd.f32 0.0, %v4580
        %v4582 = vpop.f32.mrb[0].mxu0
        %v4583 = vpop.f32.mrb[0].mxu0
        %v4584 = vadd.f32 0.0, %v4583
        %v4585 = vpop.f32.mrb[0].mxu0
        %4586 = vmatprep.mubr.bf16.mxu0 0
        %4587 = vmatmul.mubr.bf16.gmra.mrb[0].mxu0 %v4373
        %v4588 = vpop.f32.mrb[0].mxu0
        %v4589 = vadd.f32 0.0, %v4588
        %v4590 = vpop.f32.mrb[0].mxu0
        %v4591 = vpop.f32.mrb[0].mxu0
        %v4592 = vadd.f32 0.0, %v4591
        %v4593 = vpop.f32.mrb[0].mxu0
        %4594 = vmatprep.mubr.bf16.mxu0 0
        %4595 = vmatmul.mubr.bf16.gmra.mrb[0].mxu0 %v4376
        %v4596 = vpop.f32.mrb[0].mxu0
        %v4597 = vadd.f32 0.0, %v4596
        %v4598 = vpop.f32.mrb[0].mxu0
        %v4599 = vpop.f32.mrb[0].mxu0
        %v4600 = vadd.f32 0.0, %v4599
        %v4601 = vpop.f32.mrb[0].mxu0
        %4602 = vdwg.mxu0
        %v4603 = vadd.f32 %v3858, %v4413
        %v4604 = vadd.f32 %v3859, %v4416
        %v4605 = vadd.f32 %v3860, %v4421
        %v4606 = vadd.f32 %v3861, %v4424
        %v4607 = vadd.f32 %v3862, %v4429
        %v4608 = vadd.f32 %v3863, %v4432
        %v4609 = vadd.f32 %v3864, %v4437
        %v4610 = vadd.f32 %v3865, %v4440
        %v4611 = vadd.f32 %v3866, %v4445
        %v4612 = vadd.f32 %v3867, %v4448
        %v4613 = vadd.f32 %v3868, %v4453
        %v4614 = vadd.f32 %v3869, %v4456
        %v4615 = vadd.f32 %v3870, %v4461
        %v4616 = vadd.f32 %v3871, %v4464
        %v4617 = vadd.f32 %v3872, %v4469
        %v4618 = vadd.f32 %v3873, %v4472
        %v4619 = vadd.f32 %v3874, %v4477
        %v4620 = vadd.f32 %v3875, %v4480
        %v4621 = vadd.f32 %v3876, %v4485
        %v4622 = vadd.f32 %v3877, %v4488
        %v4623 = vadd.f32 %v3878, %v4493
        %v4624 = vadd.f32 %v3879, %v4496
        %v4625 = vadd.f32 %v3880, %v4501
        %v4626 = vadd.f32 %v3881, %v4504
        %v4627 = vadd.f32 %v3882, %v4509
        %v4628 = vadd.f32 %v3883, %v4512
        %v4629 = vadd.f32 %v3884, %v4517
        %v4630 = vadd.f32 %v3885, %v4520
        %v4631 = vadd.f32 %v3886, %v4525
        %v4632 = vadd.f32 %v3887, %v4528
        %v4633 = vadd.f32 %v3888, %v4533
        %v4634 = vadd.f32 %v3889, %v4536
        %v4635 = vadd.f32 %v3890, %v4541
        %v4636 = vadd.f32 %v3891, %v4544
        %v4637 = vadd.f32 %v3892, %v4549
        %v4638 = vadd.f32 %v3893, %v4552
        %v4639 = vadd.f32 %v3894, %v4557
        %v4640 = vadd.f32 %v3895, %v4560
        %v4641 = vadd.f32 %v3896, %v4565
        %v4642 = vadd.f32 %v3897, %v4568
        %v4643 = vadd.f32 %v3898, %v4573
        %v4644 = vadd.f32 %v3899, %v4576
        %v4645 = vadd.f32 %v3900, %v4581
        %v4646 = vadd.f32 %v3901, %v4584
        %v4647 = vadd.f32 %v3902, %v4589
        %v4648 = vadd.f32 %v3903, %v4592
        %v4649 = vadd.f32 %v3904, %v4597
        %v4650 = vadd.f32 %v3905, %v4600
        %v4651 = vld [vmem:[%s178 + $0x18] sm:$0xe]
        %v4652 = vld [vmem:[#allocation6 + $0x100] sm:$0xf]
        %v4653 = vld [vmem:[#allocation6 + $0x104] sm:$0xf]
        %v4654 = vld [vmem:[#allocation6 + $0x108] sm:$0xf]
        %v4655 = vld [vmem:[#allocation6 + $0x10c] sm:$0xf]
        %v4656 = vld [vmem:[#allocation6 + $0x110] sm:$0xf]
        %v4657 = vld [vmem:[#allocation6 + $0x114] sm:$0xf]
        %v4658 = vld [vmem:[#allocation6 + $0x118] sm:$0xf]
        %v4659 = vld [vmem:[#allocation6 + $0x11c] sm:$0xf]
        %v4661 = vunpack.c.l.b16 %v4651
        %v4662 = vpack.c.b16 %v4013, %v4661
        %v4663 = vrot.slane %v4662, 1
        %v4664 = vrot.slane %v4062, 1
        %v4665 = vsel %vm1222, %v4663, %v4664
        %v4666 = vrot.slane %v4063, 1
        %v4667 = vsel %vm1222, %v4664, %v4666
        %v4668 = vrot.slane %v4064, 1
        %v4669 = vsel %vm1222, %v4666, %v4668
        %v4670 = vrot.slane %v4065, 1
        %v4671 = vsel %vm1222, %v4668, %v4670
        %v4672 = vrot.slane %v4066, 1
        %v4673 = vsel %vm1222, %v4670, %v4672
        %v4674 = vrot.slane %v4067, 1
        %v4675 = vsel %vm1222, %v4672, %v4674
        %v4676 = vrot.slane %v4068, 1
        %v4677 = vsel %vm1222, %v4674, %v4676
        %v4678 = vrot.slane %v4069, 1
        %v4679 = vsel %vm1222, %v4676, %v4678
        %v4680 = vrot.slane %v4070, 1
        %v4681 = vsel %vm1222, %v4678, %v4680
        %v4682 = vrot.slane %v4071, 1
        %v4683 = vsel %vm1222, %v4680, %v4682
        %v4684 = vrot.slane %v4072, 1
        %v4685 = vsel %vm1222, %v4682, %v4684
        %v4686 = vrot.slane %v4073, 1
        %v4687 = vsel %vm1222, %v4684, %v4686
        %v4688 = vrot.slane %v4074, 1
        %v4689 = vsel %vm1222, %v4686, %v4688
        %v4690 = vrot.slane %v4075, 1
        %v4691 = vsel %vm1222, %v4688, %v4690
        %v4692 = vrot.slane %v4076, 1
        %v4693 = vsel %vm1222, %v4690, %v4692
        %v4694 = vrot.slane %v4077, 1
        %v4695 = vsel %vm1222, %v4692, %v4694
        %v4696 = vrot.slane %v4078, 1
        %v4697 = vsel %vm1222, %v4694, %v4696
        %v4698 = vrot.slane %v4079, 1
        %v4699 = vsel %vm1222, %v4696, %v4698
        %v4700 = vrot.slane %v4080, 1
        %v4701 = vsel %vm1222, %v4698, %v4700
        %v4702 = vrot.slane %v4081, 1
        %v4703 = vsel %vm1222, %v4700, %v4702
        %v4704 = vrot.slane %v4082, 1
        %v4705 = vsel %vm1222, %v4702, %v4704
        %v4706 = vrot.slane %v4083, 1
        %v4707 = vsel %vm1222, %v4704, %v4706
        %v4708 = vrot.slane %v4084, 1
        %v4709 = vsel %vm1222, %v4706, %v4708
        %v4710 = vrot.slane %v4085, 1
        %v4711 = vsel %vm1222, %v4708, %v4710
        %v4720 = vunpack.c.l.b16 %v4652
        %v4721 = vunpack.c.l.b16 %v4653
        %v4722 = vunpack.c.l.b16 %v4654
        %v4723 = vunpack.c.l.b16 %v4655
        %v4724 = vunpack.c.l.b16 %v4656
        %v4725 = vunpack.c.l.b16 %v4657
        %v4726 = vunpack.c.l.b16 %v4658
        %v4727 = vunpack.c.l.b16 %v4659
        %v4728 = vpack.c.b16 %v4721, %v4720
        %v4729 = vpack.c.b16 %v4723, %v4722
        %v4730 = vpack.c.b16 %v4725, %v4724
        %v4731 = vpack.c.b16 %v4727, %v4726
        %v4737 = vsel %vm615, %v4665, 0
        %v4740 = vsel %vm615, %v4667, 0
        %v4743 = vsel %vm615, %v4669, 0
        %v4746 = vsel %vm615, %v4671, 0
        %v4749 = vsel %vm615, %v4673, 0
        %v4752 = vsel %vm615, %v4675, 0
        %v4755 = vsel %vm615, %v4677, 0
        %v4758 = vsel %vm615, %v4679, 0
        %v4761 = vsel %vm615, %v4681, 0
        %v4764 = vsel %vm615, %v4683, 0
        %v4767 = vsel %vm615, %v4685, 0
        %v4770 = vsel %vm615, %v4687, 0
        %v4773 = vsel %vm615, %v4689, 0
        %v4776 = vsel %vm615, %v4691, 0
        %v4779 = vsel %vm615, %v4693, 0
        %v4782 = vsel %vm615, %v4695, 0
        %v4785 = vsel %vm615, %v4697, 0
        %v4788 = vsel %vm615, %v4699, 0
        %v4791 = vsel %vm615, %v4701, 0
        %v4794 = vsel %vm615, %v4703, 0
        %v4797 = vsel %vm615, %v4705, 0
        %v4800 = vsel %vm615, %v4707, 0
        %v4803 = vsel %vm615, %v4709, 0
        %v4806 = vsel %vm615, %v4711, 0
        %4808 = vmatprep.subr.bf16.mxu0 0
        %4809 = vmatpush1.bf16.msra.mxu0 %v4728
        %4810 = vmatprep.subr.bf16.mxu0 0
        %4811 = vmatpush1.bf16.msra.mxu0 %v4729
        %4812 = vmatprep.subr.bf16.mxu0 0
        %4813 = vmatpush1.bf16.msra.mxu0 %v4730
        %4814 = vmatprep.subr.bf16.mxu0 0
        %4815 = vmatpush1.bf16.msra.mxu0 %v4731
        %4816 = vmatprep.subr.bf16.mxu0 0
        %4817 = vmatpush1.bf16.msra.mxu0 0
        %4818 = vmatprep.subr.bf16.mxu0 0
        %4819 = vmatpush1.bf16.msra.mxu0 0
        %4820 = vmatprep.subr.bf16.mxu0 0
        %4821 = vmatpush1.bf16.msra.mxu0 0
        %4822 = vmatprep.subr.bf16.mxu0 0
        %4823 = vmatpush1.bf16.msra.mxu0 0
        %4824 = vmatprep.subr.bf16.mxu0 0
        %4825 = vmatpush1.bf16.msra.mxu0 0
        %4826 = vmatprep.subr.bf16.mxu0 0
        %4827 = vmatpush1.bf16.msra.mxu0 0
        %4828 = vmatprep.subr.bf16.mxu0 0
        %4829 = vmatpush1.bf16.msra.mxu0 0
        %4830 = vmatprep.subr.bf16.mxu0 0
        %4831 = vmatpush1.bf16.msra.mxu0 0
        %4832 = vmatprep.subr.bf16.mxu0 0
        %4833 = vmatpush1.bf16.msra.mxu0 0
        %4834 = vmatprep.subr.bf16.mxu0 0
        %4835 = vmatpush1.bf16.msra.mxu0 0
        %4836 = vmatprep.subr.bf16.mxu0 0
        %4837 = vmatpush1.bf16.msra.mxu0 0
        %4838 = vmatprep.subr.bf16.mxu0 0
        %4839 = vmatpush1.bf16.msra.mxu0 0
        %4840 = vmatprep.mubr.bf16.mxu0 0
        %4841 = vmatmul.mubr.bf16.gmra.mrb[0].mxu0 %v4737
        %v4842 = vpop.f32.mrb[0].mxu0
        %v4843 = vadd.f32 0.0, %v4842
        %v4844 = vpop.f32.mrb[0].mxu0
        %v4845 = vpop.f32.mrb[0].mxu0
        %v4846 = vadd.f32 0.0, %v4845
        %v4847 = vpop.f32.mrb[0].mxu0
        %4848 = vmatprep.mubr.bf16.mxu0 0
        %4849 = vmatmul.mubr.bf16.gmra.mrb[0].mxu0 %v4740
        %v4850 = vpop.f32.mrb[0].mxu0
        %v4851 = vadd.f32 0.0, %v4850
        %v4852 = vpop.f32.mrb[0].mxu0
        %v4853 = vpop.f32.mrb[0].mxu0
        %v4854 = vadd.f32 0.0, %v4853
        %v4855 = vpop.f32.mrb[0].mxu0
        %4856 = vmatprep.mubr.bf16.mxu0 0
        %4857 = vmatmul.mubr.bf16.gmra.mrb[0].mxu0 %v4743
        %v4858 = vpop.f32.mrb[0].mxu0
        %v4859 = vadd.f32 0.0, %v4858
        %v4860 = vpop.f32.mrb[0].mxu0
        %v4861 = vpop.f32.mrb[0].mxu0
        %v4862 = vadd.f32 0.0, %v4861
        %v4863 = vpop.f32.mrb[0].mxu0
        %4864 = vmatprep.mubr.bf16.mxu0 0
        %4865 = vmatmul.mubr.bf16.gmra.mrb[0].mxu0 %v4746
        %v4866 = vpop.f32.mrb[0].mxu0
        %v4867 = vadd.f32 0.0, %v4866
        %v4868 = vpop.f32.mrb[0].mxu0
        %v4869 = vpop.f32.mrb[0].mxu0
        %v4870 = vadd.f32 0.0, %v4869
        %v4871 = vpop.f32.mrb[0].mxu0
        %4872 = vmatprep.mubr.bf16.mxu0 0
        %4873 = vmatmul.mubr.bf16.gmra.mrb[0].mxu0 %v4749
        %v4874 = vpop.f32.mrb[0].mxu0
        %v4875 = vadd.f32 0.0, %v4874
        %v4876 = vpop.f32.mrb[0].mxu0
        %v4877 = vpop.f32.mrb[0].mxu0
        %v4878 = vadd.f32 0.0, %v4877
        %v4879 = vpop.f32.mrb[0].mxu0
        %4880 = vmatprep.mubr.bf16.mxu0 0
        %4881 = vmatmul.mubr.bf16.gmra.mrb[0].mxu0 %v4752
        %v4882 = vpop.f32.mrb[0].mxu0
        %v4883 = vadd.f32 0.0, %v4882
        %v4884 = vpop.f32.mrb[0].mxu0
        %v4885 = vpop.f32.mrb[0].mxu0
        %v4886 = vadd.f32 0.0, %v4885
        %v4887 = vpop.f32.mrb[0].mxu0
        %4888 = vmatprep.mubr.bf16.mxu0 0
        %4889 = vmatmul.mubr.bf16.gmra.mrb[0].mxu0 %v4755
        %v4890 = vpop.f32.mrb[0].mxu0
        %v4891 = vadd.f32 0.0, %v4890
        %v4892 = vpop.f32.mrb[0].mxu0
        %v4893 = vpop.f32.mrb[0].mxu0
        %v4894 = vadd.f32 0.0, %v4893
        %v4895 = vpop.f32.mrb[0].mxu0
        %4896 = vmatprep.mubr.bf16.mxu0 0
        %4897 = vmatmul.mubr.bf16.gmra.mrb[0].mxu0 %v4758
        %v4898 = vpop.f32.mrb[0].mxu0
        %v4899 = vadd.f32 0.0, %v4898
        %v4900 = vpop.f32.mrb[0].mxu0
        %v4901 = vpop.f32.mrb[0].mxu0
        %v4902 = vadd.f32 0.0, %v4901
        %v4903 = vpop.f32.mrb[0].mxu0
        %4904 = vmatprep.mubr.bf16.mxu0 0
        %4905 = vmatmul.mubr.bf16.gmra.mrb[0].mxu0 %v4761
        %v4906 = vpop.f32.mrb[0].mxu0
        %v4907 = vadd.f32 0.0, %v4906
        %v4908 = vpop.f32.mrb[0].mxu0
        %v4909 = vpop.f32.mrb[0].mxu0
        %v4910 = vadd.f32 0.0, %v4909
        %v4911 = vpop.f32.mrb[0].mxu0
        %4912 = vmatprep.mubr.bf16.mxu0 0
        %4913 = vmatmul.mubr.bf16.gmra.mrb[0].mxu0 %v4764
        %v4914 = vpop.f32.mrb[0].mxu0
        %v4915 = vadd.f32 0.0, %v4914
        %v4916 = vpop.f32.mrb[0].mxu0
        %v4917 = vpop.f32.mrb[0].mxu0
        %v4918 = vadd.f32 0.0, %v4917
        %v4919 = vpop.f32.mrb[0].mxu0
        %4920 = vmatprep.mubr.bf16.mxu0 0
        %4921 = vmatmul.mubr.bf16.gmra.mrb[0].mxu0 %v4767
        %v4922 = vpop.f32.mrb[0].mxu0
        %v4923 = vadd.f32 0.0, %v4922
        %v4924 = vpop.f32.mrb[0].mxu0
        %v4925 = vpop.f32.mrb[0].mxu0
        %v4926 = vadd.f32 0.0, %v4925
        %v4927 = vpop.f32.mrb[0].mxu0
        %4928 = vmatprep.mubr.bf16.mxu0 0
        %4929 = vmatmul.mubr.bf16.gmra.mrb[0].mxu0 %v4770
        %v4930 = vpop.f32.mrb[0].mxu0
        %v4931 = vadd.f32 0.0, %v4930
        %v4932 = vpop.f32.mrb[0].mxu0
        %v4933 = vpop.f32.mrb[0].mxu0
        %v4934 = vadd.f32 0.0, %v4933
        %v4935 = vpop.f32.mrb[0].mxu0
        %4936 = vmatprep.mubr.bf16.mxu0 0
        %4937 = vmatmul.mubr.bf16.gmra.mrb[0].mxu0 %v4773
        %v4938 = vpop.f32.mrb[0].mxu0
        %v4939 = vadd.f32 0.0, %v4938
        %v4940 = vpop.f32.mrb[0].mxu0
        %v4941 = vpop.f32.mrb[0].mxu0
        %v4942 = vadd.f32 0.0, %v4941
        %v4943 = vpop.f32.mrb[0].mxu0
        %4944 = vmatprep.mubr.bf16.mxu0 0
        %4945 = vmatmul.mubr.bf16.gmra.mrb[0].mxu0 %v4776
        %v4946 = vpop.f32.mrb[0].mxu0
        %v4947 = vadd.f32 0.0, %v4946
        %v4948 = vpop.f32.mrb[0].mxu0
        %v4949 = vpop.f32.mrb[0].mxu0
        %v4950 = vadd.f32 0.0, %v4949
        %v4951 = vpop.f32.mrb[0].mxu0
        %4952 = vmatprep.mubr.bf16.mxu0 0
        %4953 = vmatmul.mubr.bf16.gmra.mrb[0].mxu0 %v4779
        %v4954 = vpop.f32.mrb[0].mxu0
        %v4955 = vadd.f32 0.0, %v4954
        %v4956 = vpop.f32.mrb[0].mxu0
        %v4957 = vpop.f32.mrb[0].mxu0
        %v4958 = vadd.f32 0.0, %v4957
        %v4959 = vpop.f32.mrb[0].mxu0
        %4960 = vmatprep.mubr.bf16.mxu0 0
        %4961 = vmatmul.mubr.bf16.gmra.mrb[0].mxu0 %v4782
        %v4962 = vpop.f32.mrb[0].mxu0
        %v4963 = vadd.f32 0.0, %v4962
        %v4964 = vpop.f32.mrb[0].mxu0
        %v4965 = vpop.f32.mrb[0].mxu0
        %v4966 = vadd.f32 0.0, %v4965
        %v4967 = vpop.f32.mrb[0].mxu0
        %4968 = vmatprep.mubr.bf16.mxu0 0
        %4969 = vmatmul.mubr.bf16.gmra.mrb[0].mxu0 %v4785
        %v4970 = vpop.f32.mrb[0].mxu0
        %v4971 = vadd.f32 0.0, %v4970
        %v4972 = vpop.f32.mrb[0].mxu0
        %v4973 = vpop.f32.mrb[0].mxu0
        %v4974 = vadd.f32 0.0, %v4973
        %v4975 = vpop.f32.mrb[0].mxu0
        %4976 = vmatprep.mubr.bf16.mxu0 0
        %4977 = vmatmul.mubr.bf16.gmra.mrb[0].mxu0 %v4788
        %v4978 = vpop.f32.mrb[0].mxu0
        %v4979 = vadd.f32 0.0, %v4978
        %v4980 = vpop.f32.mrb[0].mxu0
        %v4981 = vpop.f32.mrb[0].mxu0
        %v4982 = vadd.f32 0.0, %v4981
        %v4983 = vpop.f32.mrb[0].mxu0
        %4984 = vmatprep.mubr.bf16.mxu0 0
        %4985 = vmatmul.mubr.bf16.gmra.mrb[0].mxu0 %v4791
        %v4986 = vpop.f32.mrb[0].mxu0
        %v4987 = vadd.f32 0.0, %v4986
        %v4988 = vpop.f32.mrb[0].mxu0
        %v4989 = vpop.f32.mrb[0].mxu0
        %v4990 = vadd.f32 0.0, %v4989
        %v4991 = vpop.f32.mrb[0].mxu0
        %4992 = vmatprep.mubr.bf16.mxu0 0
        %4993 = vmatmul.mubr.bf16.gmra.mrb[0].mxu0 %v4794
        %v4994 = vpop.f32.mrb[0].mxu0
        %v4995 = vadd.f32 0.0, %v4994
        %v4996 = vpop.f32.mrb[0].mxu0
        %v4997 = vpop.f32.mrb[0].mxu0
        %v4998 = vadd.f32 0.0, %v4997
        %v4999 = vpop.f32.mrb[0].mxu0
        %5000 = vmatprep.mubr.bf16.mxu0 0
        %5001 = vmatmul.mubr.bf16.gmra.mrb[0].mxu0 %v4797
        %v5002 = vpop.f32.mrb[0].mxu0
        %v5003 = vadd.f32 0.0, %v5002
        %v5004 = vpop.f32.mrb[0].mxu0
        %v5005 = vpop.f32.mrb[0].mxu0
        %v5006 = vadd.f32 0.0, %v5005
        %v5007 = vpop.f32.mrb[0].mxu0
        %5008 = vmatprep.mubr.bf16.mxu0 0
        %5009 = vmatmul.mubr.bf16.gmra.mrb[0].mxu0 %v4800
        %v5010 = vpop.f32.mrb[0].mxu0
        %v5011 = vadd.f32 0.0, %v5010
        %v5012 = vpop.f32.mrb[0].mxu0
        %v5013 = vpop.f32.mrb[0].mxu0
        %v5014 = vadd.f32 0.0, %v5013
        %v5015 = vpop.f32.mrb[0].mxu0
        %5016 = vmatprep.mubr.bf16.mxu0 0
        %5017 = vmatmul.mubr.bf16.gmra.mrb[0].mxu0 %v4803
        %v5018 = vpop.f32.mrb[0].mxu0
        %v5019 = vadd.f32 0.0, %v5018
        %v5020 = vpop.f32.mrb[0].mxu0
        %v5021 = vpop.f32.mrb[0].mxu0
        %v5022 = vadd.f32 0.0, %v5021
        %v5023 = vpop.f32.mrb[0].mxu0
        %5024 = vmatprep.mubr.bf16.mxu0 0
        %5025 = vmatmul.mubr.bf16.gmra.mrb[0].mxu0 %v4806
        %v5026 = vpop.f32.mrb[0].mxu0
        %v5027 = vadd.f32 0.0, %v5026
        %v5028 = vpop.f32.mrb[0].mxu0
        %v5029 = vpop.f32.mrb[0].mxu0
        %v5030 = vadd.f32 0.0, %v5029
        %v5031 = vpop.f32.mrb[0].mxu0
        %5032 = vdwg.mxu0
        %v5033 = vadd.f32 %v4603, %v4843
        %v5034 = vadd.f32 %v4604, %v4846
        %v5035 = vadd.f32 %v4605, %v4851
        %v5036 = vadd.f32 %v4606, %v4854
        %v5037 = vadd.f32 %v4607, %v4859
        %v5038 = vadd.f32 %v4608, %v4862
        %v5039 = vadd.f32 %v4609, %v4867
        %v5040 = vadd.f32 %v4610, %v4870
        %v5041 = vadd.f32 %v4611, %v4875
        %v5042 = vadd.f32 %v4612, %v4878
        %v5043 = vadd.f32 %v4613, %v4883
        %v5044 = vadd.f32 %v4614, %v4886
        %v5045 = vadd.f32 %v4615, %v4891
        %v5046 = vadd.f32 %v4616, %v4894
        %v5047 = vadd.f32 %v4617, %v4899
        %v5048 = vadd.f32 %v4618, %v4902
        %v5049 = vadd.f32 %v4619, %v4907
        %v5050 = vadd.f32 %v4620, %v4910
        %v5051 = vadd.f32 %v4621, %v4915
        %v5052 = vadd.f32 %v4622, %v4918
        %v5053 = vadd.f32 %v4623, %v4923
        %v5054 = vadd.f32 %v4624, %v4926
        %v5055 = vadd.f32 %v4625, %v4931
        %v5056 = vadd.f32 %v4626, %v4934
        %v5057 = vadd.f32 %v4627, %v4939
        %v5058 = vadd.f32 %v4628, %v4942
        %v5059 = vadd.f32 %v4629, %v4947
        %v5060 = vadd.f32 %v4630, %v4950
        %v5061 = vadd.f32 %v4631, %v4955
        %v5062 = vadd.f32 %v4632, %v4958
        %v5063 = vadd.f32 %v4633, %v4963
        %v5064 = vadd.f32 %v4634, %v4966
        %v5065 = vadd.f32 %v4635, %v4971
        %v5066 = vadd.f32 %v4636, %v4974
        %v5067 = vadd.f32 %v4637, %v4979
        %v5068 = vadd.f32 %v4638, %v4982
        %v5069 = vadd.f32 %v4639, %v4987
        %v5070 = vadd.f32 %v4640, %v4990
        %v5071 = vadd.f32 %v4641, %v4995
        %v5072 = vadd.f32 %v4642, %v4998
        %v5073 = vadd.f32 %v4643, %v5003
        %v5074 = vadd.f32 %v4644, %v5006
        %v5075 = vadd.f32 %v4645, %v5011
        %v5076 = vadd.f32 %v4646, %v5014
        %v5077 = vadd.f32 %v4647, %v5019
        %v5078 = vadd.f32 %v4648, %v5022
        %v5079 = vadd.f32 %v4649, %v5027
        %v5080 = vadd.f32 %v4650, %v5030
        %v5081 = vlaneseq
        %v5082 = vshrl.u32 %v5081, 7
        %v5083 = vadd.s32 %v5082, 8
        %v5084 = vadd.s32 %v5082, 16
        %v5085 = vadd.s32 %v5082, 24
        %v5086 = vadd.s32 %v5082, 32
        %v5087 = vadd.s32 %v5082, 40
        %v5088 = vadd.s32 %v5082, 48
        %v5089 = vadd.s32 %v5082, 56
        %v5090 = vadd.s32 %v5082, 64
        %v5091 = vadd.s32 %v5082, 72
        %v5092 = vadd.s32 %v5082, 80
        %v5093 = vadd.s32 %v5082, 88
        %v5094 = vadd.s32 %v5082, 96
        %v5095 = vadd.s32 %v5082, 104
        %v5096 = vadd.s32 %v5082, 112
        %v5097 = vadd.s32 %v5082, 120
        %v5098 = vadd.s32 %v5082, 128
        %v5099 = vadd.s32 %v5082, 136
        %v5100 = vadd.s32 %v5082, 144
        %v5101 = vadd.s32 %v5082, 152
        %v5102 = vadd.s32 %v5082, 160
        %v5103 = vadd.s32 %v5082, 168
        %v5104 = vadd.s32 %v5082, 176
        %v5105 = vadd.s32 %v5082, 184
        %v5106 = vadd.s32 %v5082, 192
        %v5107 = vadd.s32 %v5082, 200
        %v5108 = vadd.s32 %v5082, 208
        %v5109 = vadd.s32 %v5082, 216
        %v5110 = vadd.s32 %v5082, 224
        %v5111 = vadd.s32 %v5082, 232
        %v5112 = vadd.s32 %v5082, 240
        %v5113 = vadd.s32 %v5082, 248
        %v5114 = vadd.s32 %v5082, 256
        %v5115 = vadd.s32 %v5082, 264
        %v5116 = vadd.s32 %v5082, 272
        %v5117 = vadd.s32 %v5082, 280
        %v5118 = vadd.s32 %v5082, 288
        %v5119 = vadd.s32 %v5082, 296
        %v5120 = vadd.s32 %v5082, 304
        %v5121 = vadd.s32 %v5082, 312
        %v5122 = vadd.s32 %v5082, 320
        %v5123 = vadd.s32 %v5082, 328
        %v5124 = vadd.s32 %v5082, 336
        %v5125 = vadd.s32 %v5082, 344
        %v5126 = vadd.s32 %v5082, 352
        %v5127 = vadd.s32 %v5082, 360
        %v5128 = vadd.s32 %v5082, 368
        %v5129 = vadd.s32 %v5082, 376
        %vm5130 = vcmp.lt.s32.totalorder %v5082, 0
        %v5131 = vsub.s32 0, %v5082
        %v5132 = vsel %vm5130, %v5131, %v5082
        %v5133 = vmul.u32.u64.compose %v5132, 2863311531
        %v5134 = vextract.low.u32 %v5133
        %v5135 = vextract.high.u32 %v5133
        %v5136 = vshrl.u32 %v5135, 4
        %v5137 = vmul.u32 %v5136, 24
        %v5138 = vsub.s32 %v5132, %v5137
        %v5139 = vsub.s32 0, %v5138
        %v5140 = vsel %vm5130, %v5139, %v5138
        %vm5141 = vcmp.lt.s32.totalorder %v5083, 0
        %v5142 = vsub.s32 0, %v5083
        %v5143 = vsel %vm5141, %v5142, %v5083
        %v5144 = vmul.u32.u64.compose %v5143, 2863311531
        %v5145 = vextract.low.u32 %v5144
        %v5146 = vextract.high.u32 %v5144
        %v5147 = vshrl.u32 %v5146, 4
        %v5148 = vmul.u32 %v5147, 24
        %v5149 = vsub.s32 %v5143, %v5148
        %v5150 = vsub.s32 0, %v5149
        %v5151 = vsel %vm5141, %v5150, %v5149
        %vm5152 = vcmp.lt.s32.totalorder %v5084, 0
        %v5153 = vsub.s32 0, %v5084
        %v5154 = vsel %vm5152, %v5153, %v5084
        %v5155 = vmul.u32.u64.compose %v5154, 2863311531
        %v5156 = vextract.low.u32 %v5155
        %v5157 = vextract.high.u32 %v5155
        %v5158 = vshrl.u32 %v5157, 4
        %v5159 = vmul.u32 %v5158, 24
        %v5160 = vsub.s32 %v5154, %v5159
        %v5161 = vsub.s32 0, %v5160
        %v5162 = vsel %vm5152, %v5161, %v5160
        %vm5163 = vcmp.lt.s32.totalorder %v5085, 0
        %v5164 = vsub.s32 0, %v5085
        %v5165 = vsel %vm5163, %v5164, %v5085
        %v5166 = vmul.u32.u64.compose %v5165, 2863311531
        %v5167 = vextract.low.u32 %v5166
        %v5168 = vextract.high.u32 %v5166
        %v5169 = vshrl.u32 %v5168, 4
        %v5170 = vmul.u32 %v5169, 24
        %v5171 = vsub.s32 %v5165, %v5170
        %v5172 = vsub.s32 0, %v5171
        %v5173 = vsel %vm5163, %v5172, %v5171
        %vm5174 = vcmp.lt.s32.totalorder %v5086, 0
        %v5175 = vsub.s32 0, %v5086
        %v5176 = vsel %vm5174, %v5175, %v5086
        %v5177 = vmul.u32.u64.compose %v5176, 2863311531
        %v5178 = vextract.low.u32 %v5177
        %v5179 = vextract.high.u32 %v5177
        %v5180 = vshrl.u32 %v5179, 4
        %v5181 = vmul.u32 %v5180, 24
        %v5182 = vsub.s32 %v5176, %v5181
        %v5183 = vsub.s32 0, %v5182
        %v5184 = vsel %vm5174, %v5183, %v5182
        %vm5185 = vcmp.lt.s32.totalorder %v5087, 0
        %v5186 = vsub.s32 0, %v5087
        %v5187 = vsel %vm5185, %v5186, %v5087
        %v5188 = vmul.u32.u64.compose %v5187, 2863311531
        %v5189 = vextract.low.u32 %v5188
        %v5190 = vextract.high.u32 %v5188
        %v5191 = vshrl.u32 %v5190, 4
        %v5192 = vmul.u32 %v5191, 24
        %v5193 = vsub.s32 %v5187, %v5192
        %v5194 = vsub.s32 0, %v5193
        %v5195 = vsel %vm5185, %v5194, %v5193
        %vm5196 = vcmp.lt.s32.totalorder %v5088, 0
        %v5197 = vsub.s32 0, %v5088
        %v5198 = vsel %vm5196, %v5197, %v5088
        %v5199 = vmul.u32.u64.compose %v5198, 2863311531
        %v5200 = vextract.low.u32 %v5199
        %v5201 = vextract.high.u32 %v5199
        %v5202 = vshrl.u32 %v5201, 4
        %v5203 = vmul.u32 %v5202, 24
        %v5204 = vsub.s32 %v5198, %v5203
        %v5205 = vsub.s32 0, %v5204
        %v5206 = vsel %vm5196, %v5205, %v5204
        %vm5207 = vcmp.lt.s32.totalorder %v5089, 0
        %v5208 = vsub.s32 0, %v5089
        %v5209 = vsel %vm5207, %v5208, %v5089
        %v5210 = vmul.u32.u64.compose %v5209, 2863311531
        %v5211 = vextract.low.u32 %v5210
        %v5212 = vextract.high.u32 %v5210
        %v5213 = vshrl.u32 %v5212, 4
        %v5214 = vmul.u32 %v5213, 24
        %v5215 = vsub.s32 %v5209, %v5214
        %v5216 = vsub.s32 0, %v5215
        %v5217 = vsel %vm5207, %v5216, %v5215
        %vm5218 = vcmp.lt.s32.totalorder %v5090, 0
        %v5219 = vsub.s32 0, %v5090
        %v5220 = vsel %vm5218, %v5219, %v5090
        %v5221 = vmul.u32.u64.compose %v5220, 2863311531
        %v5222 = vextract.low.u32 %v5221
        %v5223 = vextract.high.u32 %v5221
        %v5224 = vshrl.u32 %v5223, 4
        %v5225 = vmul.u32 %v5224, 24
        %v5226 = vsub.s32 %v5220, %v5225
        %v5227 = vsub.s32 0, %v5226
        %v5228 = vsel %vm5218, %v5227, %v5226
        %vm5229 = vcmp.lt.s32.totalorder %v5091, 0
        %v5230 = vsub.s32 0, %v5091
        %v5231 = vsel %vm5229, %v5230, %v5091
        %v5232 = vmul.u32.u64.compose %v5231, 2863311531
        %v5233 = vextract.low.u32 %v5232
        %v5234 = vextract.high.u32 %v5232
        %v5235 = vshrl.u32 %v5234, 4
        %v5236 = vmul.u32 %v5235, 24
        %v5237 = vsub.s32 %v5231, %v5236
        %v5238 = vsub.s32 0, %v5237
        %v5239 = vsel %vm5229, %v5238, %v5237
        %vm5240 = vcmp.lt.s32.totalorder %v5092, 0
        %v5241 = vsub.s32 0, %v5092
        %v5242 = vsel %vm5240, %v5241, %v5092
        %v5243 = vmul.u32.u64.compose %v5242, 2863311531
        %v5244 = vextract.low.u32 %v5243
        %v5245 = vextract.high.u32 %v5243
        %v5246 = vshrl.u32 %v5245, 4
        %v5247 = vmul.u32 %v5246, 24
        %v5248 = vsub.s32 %v5242, %v5247
        %v5249 = vsub.s32 0, %v5248
        %v5250 = vsel %vm5240, %v5249, %v5248
        %vm5251 = vcmp.lt.s32.totalorder %v5093, 0
        %v5252 = vsub.s32 0, %v5093
        %v5253 = vsel %vm5251, %v5252, %v5093
        %v5254 = vmul.u32.u64.compose %v5253, 2863311531
        %v5255 = vextract.low.u32 %v5254
        %v5256 = vextract.high.u32 %v5254
        %v5257 = vshrl.u32 %v5256, 4
        %v5258 = vmul.u32 %v5257, 24
        %v5259 = vsub.s32 %v5253, %v5258
        %v5260 = vsub.s32 0, %v5259
        %v5261 = vsel %vm5251, %v5260, %v5259
        %vm5262 = vcmp.lt.s32.totalorder %v5094, 0
        %v5263 = vsub.s32 0, %v5094
        %v5264 = vsel %vm5262, %v5263, %v5094
        %v5265 = vmul.u32.u64.compose %v5264, 2863311531
        %v5266 = vextract.low.u32 %v5265
        %v5267 = vextract.high.u32 %v5265
        %v5268 = vshrl.u32 %v5267, 4
        %v5269 = vmul.u32 %v5268, 24
        %v5270 = vsub.s32 %v5264, %v5269
        %v5271 = vsub.s32 0, %v5270
        %v5272 = vsel %vm5262, %v5271, %v5270
        %vm5273 = vcmp.lt.s32.totalorder %v5095, 0
        %v5274 = vsub.s32 0, %v5095
        %v5275 = vsel %vm5273, %v5274, %v5095
        %v5276 = vmul.u32.u64.compose %v5275, 2863311531
        %v5277 = vextract.low.u32 %v5276
        %v5278 = vextract.high.u32 %v5276
        %v5279 = vshrl.u32 %v5278, 4
        %v5280 = vmul.u32 %v5279, 24
        %v5281 = vsub.s32 %v5275, %v5280
        %v5282 = vsub.s32 0, %v5281
        %v5283 = vsel %vm5273, %v5282, %v5281
        %vm5284 = vcmp.lt.s32.totalorder %v5096, 0
        %v5285 = vsub.s32 0, %v5096
        %v5286 = vsel %vm5284, %v5285, %v5096
        %v5287 = vmul.u32.u64.compose %v5286, 2863311531
        %v5288 = vextract.low.u32 %v5287
        %v5289 = vextract.high.u32 %v5287
        %v5290 = vshrl.u32 %v5289, 4
        %v5291 = vmul.u32 %v5290, 24
        %v5292 = vsub.s32 %v5286, %v5291
        %v5293 = vsub.s32 0, %v5292
        %v5294 = vsel %vm5284, %v5293, %v5292
        %vm5295 = vcmp.lt.s32.totalorder %v5097, 0
        %v5296 = vsub.s32 0, %v5097
        %v5297 = vsel %vm5295, %v5296, %v5097
        %v5298 = vmul.u32.u64.compose %v5297, 2863311531
        %v5299 = vextract.low.u32 %v5298
        %v5300 = vextract.high.u32 %v5298
        %v5301 = vshrl.u32 %v5300, 4
        %v5302 = vmul.u32 %v5301, 24
        %v5303 = vsub.s32 %v5297, %v5302
        %v5304 = vsub.s32 0, %v5303
        %v5305 = vsel %vm5295, %v5304, %v5303
        %vm5306 = vcmp.lt.s32.totalorder %v5098, 0
        %v5307 = vsub.s32 0, %v5098
        %v5308 = vsel %vm5306, %v5307, %v5098
        %v5309 = vmul.u32.u64.compose %v5308, 2863311531
        %v5310 = vextract.low.u32 %v5309
        %v5311 = vextract.high.u32 %v5309
        %v5312 = vshrl.u32 %v5311, 4
        %v5313 = vmul.u32 %v5312, 24
        %v5314 = vsub.s32 %v5308, %v5313
        %v5315 = vsub.s32 0, %v5314
        %v5316 = vsel %vm5306, %v5315, %v5314
        %vm5317 = vcmp.lt.s32.totalorder %v5099, 0
        %v5318 = vsub.s32 0, %v5099
        %v5319 = vsel %vm5317, %v5318, %v5099
        %v5320 = vmul.u32.u64.compose %v5319, 2863311531
        %v5321 = vextract.low.u32 %v5320
        %v5322 = vextract.high.u32 %v5320
        %v5323 = vshrl.u32 %v5322, 4
        %v5324 = vmul.u32 %v5323, 24
        %v5325 = vsub.s32 %v5319, %v5324
        %v5326 = vsub.s32 0, %v5325
        %v5327 = vsel %vm5317, %v5326, %v5325
        %vm5328 = vcmp.lt.s32.totalorder %v5100, 0
        %v5329 = vsub.s32 0, %v5100
        %v5330 = vsel %vm5328, %v5329, %v5100
        %v5331 = vmul.u32.u64.compose %v5330, 2863311531
        %v5332 = vextract.low.u32 %v5331
        %v5333 = vextract.high.u32 %v5331
        %v5334 = vshrl.u32 %v5333, 4
        %v5335 = vmul.u32 %v5334, 24
        %v5336 = vsub.s32 %v5330, %v5335
        %v5337 = vsub.s32 0, %v5336
        %v5338 = vsel %vm5328, %v5337, %v5336
        %vm5339 = vcmp.lt.s32.totalorder %v5101, 0
        %v5340 = vsub.s32 0, %v5101
        %v5341 = vsel %vm5339, %v5340, %v5101
        %v5342 = vmul.u32.u64.compose %v5341, 2863311531
        %v5343 = vextract.low.u32 %v5342
        %v5344 = vextract.high.u32 %v5342
        %v5345 = vshrl.u32 %v5344, 4
        %v5346 = vmul.u32 %v5345, 24
        %v5347 = vsub.s32 %v5341, %v5346
        %v5348 = vsub.s32 0, %v5347
        %v5349 = vsel %vm5339, %v5348, %v5347
        %vm5350 = vcmp.lt.s32.totalorder %v5102, 0
        %v5351 = vsub.s32 0, %v5102
        %v5352 = vsel %vm5350, %v5351, %v5102
        %v5353 = vmul.u32.u64.compose %v5352, 2863311531
        %v5354 = vextract.low.u32 %v5353
        %v5355 = vextract.high.u32 %v5353
        %v5356 = vshrl.u32 %v5355, 4
        %v5357 = vmul.u32 %v5356, 24
        %v5358 = vsub.s32 %v5352, %v5357
        %v5359 = vsub.s32 0, %v5358
        %v5360 = vsel %vm5350, %v5359, %v5358
        %vm5361 = vcmp.lt.s32.totalorder %v5103, 0
        %v5362 = vsub.s32 0, %v5103
        %v5363 = vsel %vm5361, %v5362, %v5103
        %v5364 = vmul.u32.u64.compose %v5363, 2863311531
        %v5365 = vextract.low.u32 %v5364
        %v5366 = vextract.high.u32 %v5364
        %v5367 = vshrl.u32 %v5366, 4
        %v5368 = vmul.u32 %v5367, 24
        %v5369 = vsub.s32 %v5363, %v5368
        %v5370 = vsub.s32 0, %v5369
        %v5371 = vsel %vm5361, %v5370, %v5369
        %vm5372 = vcmp.lt.s32.totalorder %v5104, 0
        %v5373 = vsub.s32 0, %v5104
        %v5374 = vsel %vm5372, %v5373, %v5104
        %v5375 = vmul.u32.u64.compose %v5374, 2863311531
        %v5376 = vextract.low.u32 %v5375
        %v5377 = vextract.high.u32 %v5375
        %v5378 = vshrl.u32 %v5377, 4
        %v5379 = vmul.u32 %v5378, 24
        %v5380 = vsub.s32 %v5374, %v5379
        %v5381 = vsub.s32 0, %v5380
        %v5382 = vsel %vm5372, %v5381, %v5380
        %vm5383 = vcmp.lt.s32.totalorder %v5105, 0
        %v5384 = vsub.s32 0, %v5105
        %v5385 = vsel %vm5383, %v5384, %v5105
        %v5386 = vmul.u32.u64.compose %v5385, 2863311531
        %v5387 = vextract.low.u32 %v5386
        %v5388 = vextract.high.u32 %v5386
        %v5389 = vshrl.u32 %v5388, 4
        %v5390 = vmul.u32 %v5389, 24
        %v5391 = vsub.s32 %v5385, %v5390
        %v5392 = vsub.s32 0, %v5391
        %v5393 = vsel %vm5383, %v5392, %v5391
        %vm5394 = vcmp.lt.s32.totalorder %v5106, 0
        %v5395 = vsub.s32 0, %v5106
        %v5396 = vsel %vm5394, %v5395, %v5106
        %v5397 = vmul.u32.u64.compose %v5396, 2863311531
        %v5398 = vextract.low.u32 %v5397
        %v5399 = vextract.high.u32 %v5397
        %v5400 = vshrl.u32 %v5399, 4
        %v5401 = vmul.u32 %v5400, 24
        %v5402 = vsub.s32 %v5396, %v5401
        %v5403 = vsub.s32 0, %v5402
        %v5404 = vsel %vm5394, %v5403, %v5402
        %vm5405 = vcmp.lt.s32.totalorder %v5107, 0
        %v5406 = vsub.s32 0, %v5107
        %v5407 = vsel %vm5405, %v5406, %v5107
        %v5408 = vmul.u32.u64.compose %v5407, 2863311531
        %v5409 = vextract.low.u32 %v5408
        %v5410 = vextract.high.u32 %v5408
        %v5411 = vshrl.u32 %v5410, 4
        %v5412 = vmul.u32 %v5411, 24
        %v5413 = vsub.s32 %v5407, %v5412
        %v5414 = vsub.s32 0, %v5413
        %v5415 = vsel %vm5405, %v5414, %v5413
        %vm5416 = vcmp.lt.s32.totalorder %v5108, 0
        %v5417 = vsub.s32 0, %v5108
        %v5418 = vsel %vm5416, %v5417, %v5108
        %v5419 = vmul.u32.u64.compose %v5418, 2863311531
        %v5420 = vextract.low.u32 %v5419
        %v5421 = vextract.high.u32 %v5419
        %v5422 = vshrl.u32 %v5421, 4
        %v5423 = vmul.u32 %v5422, 24
        %v5424 = vsub.s32 %v5418, %v5423
        %v5425 = vsub.s32 0, %v5424
        %v5426 = vsel %vm5416, %v5425, %v5424
        %vm5427 = vcmp.lt.s32.totalorder %v5109, 0
        %v5428 = vsub.s32 0, %v5109
        %v5429 = vsel %vm5427, %v5428, %v5109
        %v5430 = vmul.u32.u64.compose %v5429, 2863311531
        %v5431 = vextract.low.u32 %v5430
        %v5432 = vextract.high.u32 %v5430
        %v5433 = vshrl.u32 %v5432, 4
        %v5434 = vmul.u32 %v5433, 24
        %v5435 = vsub.s32 %v5429, %v5434
        %v5436 = vsub.s32 0, %v5435
        %v5437 = vsel %vm5427, %v5436, %v5435
        %vm5438 = vcmp.lt.s32.totalorder %v5110, 0
        %v5439 = vsub.s32 0, %v5110
        %v5440 = vsel %vm5438, %v5439, %v5110
        %v5441 = vmul.u32.u64.compose %v5440, 2863311531
        %v5442 = vextract.low.u32 %v5441
        %v5443 = vextract.high.u32 %v5441
        %v5444 = vshrl.u32 %v5443, 4
        %v5445 = vmul.u32 %v5444, 24
        %v5446 = vsub.s32 %v5440, %v5445
        %v5447 = vsub.s32 0, %v5446
        %v5448 = vsel %vm5438, %v5447, %v5446
        %vm5449 = vcmp.lt.s32.totalorder %v5111, 0
        %v5450 = vsub.s32 0, %v5111
        %v5451 = vsel %vm5449, %v5450, %v5111
        %v5452 = vmul.u32.u64.compose %v5451, 2863311531
        %v5453 = vextract.low.u32 %v5452
        %v5454 = vextract.high.u32 %v5452
        %v5455 = vshrl.u32 %v5454, 4
        %v5456 = vmul.u32 %v5455, 24
        %v5457 = vsub.s32 %v5451, %v5456
        %v5458 = vsub.s32 0, %v5457
        %v5459 = vsel %vm5449, %v5458, %v5457
        %vm5460 = vcmp.lt.s32.totalorder %v5112, 0
        %v5461 = vsub.s32 0, %v5112
        %v5462 = vsel %vm5460, %v5461, %v5112
        %v5463 = vmul.u32.u64.compose %v5462, 2863311531
        %v5464 = vextract.low.u32 %v5463
        %v5465 = vextract.high.u32 %v5463
        %v5466 = vshrl.u32 %v5465, 4
        %v5467 = vmul.u32 %v5466, 24
        %v5468 = vsub.s32 %v5462, %v5467
        %v5469 = vsub.s32 0, %v5468
        %v5470 = vsel %vm5460, %v5469, %v5468
        %vm5471 = vcmp.lt.s32.totalorder %v5113, 0
        %v5472 = vsub.s32 0, %v5113
        %v5473 = vsel %vm5471, %v5472, %v5113
        %v5474 = vmul.u32.u64.compose %v5473, 2863311531
        %v5475 = vextract.low.u32 %v5474
        %v5476 = vextract.high.u32 %v5474
        %v5477 = vshrl.u32 %v5476, 4
        %v5478 = vmul.u32 %v5477, 24
        %v5479 = vsub.s32 %v5473, %v5478
        %v5480 = vsub.s32 0, %v5479
        %v5481 = vsel %vm5471, %v5480, %v5479
        %vm5482 = vcmp.lt.s32.totalorder %v5114, 0
        %v5483 = vsub.s32 0, %v5114
        %v5484 = vsel %vm5482, %v5483, %v5114
        %v5485 = vmul.u32.u64.compose %v5484, 2863311531
        %v5486 = vextract.low.u32 %v5485
        %v5487 = vextract.high.u32 %v5485
        %v5488 = vshrl.u32 %v5487, 4
        %v5489 = vmul.u32 %v5488, 24
        %v5490 = vsub.s32 %v5484, %v5489
        %v5491 = vsub.s32 0, %v5490
        %v5492 = vsel %vm5482, %v5491, %v5490
        %vm5493 = vcmp.lt.s32.totalorder %v5115, 0
        %v5494 = vsub.s32 0, %v5115
        %v5495 = vsel %vm5493, %v5494, %v5115
        %v5496 = vmul.u32.u64.compose %v5495, 2863311531
        %v5497 = vextract.low.u32 %v5496
        %v5498 = vextract.high.u32 %v5496
        %v5499 = vshrl.u32 %v5498, 4
        %v5500 = vmul.u32 %v5499, 24
        %v5501 = vsub.s32 %v5495, %v5500
        %v5502 = vsub.s32 0, %v5501
        %v5503 = vsel %vm5493, %v5502, %v5501
        %vm5504 = vcmp.lt.s32.totalorder %v5116, 0
        %v5505 = vsub.s32 0, %v5116
        %v5506 = vsel %vm5504, %v5505, %v5116
        %v5507 = vmul.u32.u64.compose %v5506, 2863311531
        %v5508 = vextract.low.u32 %v5507
        %v5509 = vextract.high.u32 %v5507
        %v5510 = vshrl.u32 %v5509, 4
        %v5511 = vmul.u32 %v5510, 24
        %v5512 = vsub.s32 %v5506, %v5511
        %v5513 = vsub.s32 0, %v5512
        %v5514 = vsel %vm5504, %v5513, %v5512
        %vm5515 = vcmp.lt.s32.totalorder %v5117, 0
        %v5516 = vsub.s32 0, %v5117
        %v5517 = vsel %vm5515, %v5516, %v5117
        %v5518 = vmul.u32.u64.compose %v5517, 2863311531
        %v5519 = vextract.low.u32 %v5518
        %v5520 = vextract.high.u32 %v5518
        %v5521 = vshrl.u32 %v5520, 4
        %v5522 = vmul.u32 %v5521, 24
        %v5523 = vsub.s32 %v5517, %v5522
        %v5524 = vsub.s32 0, %v5523
        %v5525 = vsel %vm5515, %v5524, %v5523
        %vm5526 = vcmp.lt.s32.totalorder %v5118, 0
        %v5527 = vsub.s32 0, %v5118
        %v5528 = vsel %vm5526, %v5527, %v5118
        %v5529 = vmul.u32.u64.compose %v5528, 2863311531
        %v5530 = vextract.low.u32 %v5529
        %v5531 = vextract.high.u32 %v5529
        %v5532 = vshrl.u32 %v5531, 4
        %v5533 = vmul.u32 %v5532, 24
        %v5534 = vsub.s32 %v5528, %v5533
        %v5535 = vsub.s32 0, %v5534
        %v5536 = vsel %vm5526, %v5535, %v5534
        %vm5537 = vcmp.lt.s32.totalorder %v5119, 0
        %v5538 = vsub.s32 0, %v5119
        %v5539 = vsel %vm5537, %v5538, %v5119
        %v5540 = vmul.u32.u64.compose %v5539, 2863311531
        %v5541 = vextract.low.u32 %v5540
        %v5542 = vextract.high.u32 %v5540
        %v5543 = vshrl.u32 %v5542, 4
        %v5544 = vmul.u32 %v5543, 24
        %v5545 = vsub.s32 %v5539, %v5544
        %v5546 = vsub.s32 0, %v5545
        %v5547 = vsel %vm5537, %v5546, %v5545
        %vm5548 = vcmp.lt.s32.totalorder %v5120, 0
        %v5549 = vsub.s32 0, %v5120
        %v5550 = vsel %vm5548, %v5549, %v5120
        %v5551 = vmul.u32.u64.compose %v5550, 2863311531
        %v5552 = vextract.low.u32 %v5551
        %v5553 = vextract.high.u32 %v5551
        %v5554 = vshrl.u32 %v5553, 4
        %v5555 = vmul.u32 %v5554, 24
        %v5556 = vsub.s32 %v5550, %v5555
        %v5557 = vsub.s32 0, %v5556
        %v5558 = vsel %vm5548, %v5557, %v5556
        %vm5559 = vcmp.lt.s32.totalorder %v5121, 0
        %v5560 = vsub.s32 0, %v5121
        %v5561 = vsel %vm5559, %v5560, %v5121
        %v5562 = vmul.u32.u64.compose %v5561, 2863311531
        %v5563 = vextract.low.u32 %v5562
        %v5564 = vextract.high.u32 %v5562
        %v5565 = vshrl.u32 %v5564, 4
        %v5566 = vmul.u32 %v5565, 24
        %v5567 = vsub.s32 %v5561, %v5566
        %v5568 = vsub.s32 0, %v5567
        %v5569 = vsel %vm5559, %v5568, %v5567
        %vm5570 = vcmp.lt.s32.totalorder %v5122, 0
        %v5571 = vsub.s32 0, %v5122
        %v5572 = vsel %vm5570, %v5571, %v5122
        %v5573 = vmul.u32.u64.compose %v5572, 2863311531
        %v5574 = vextract.low.u32 %v5573
        %v5575 = vextract.high.u32 %v5573
        %v5576 = vshrl.u32 %v5575, 4
        %v5577 = vmul.u32 %v5576, 24
        %v5578 = vsub.s32 %v5572, %v5577
        %v5579 = vsub.s32 0, %v5578
        %v5580 = vsel %vm5570, %v5579, %v5578
        %vm5581 = vcmp.lt.s32.totalorder %v5123, 0
        %v5582 = vsub.s32 0, %v5123
        %v5583 = vsel %vm5581, %v5582, %v5123
        %v5584 = vmul.u32.u64.compose %v5583, 2863311531
        %v5585 = vextract.low.u32 %v5584
        %v5586 = vextract.high.u32 %v5584
        %v5587 = vshrl.u32 %v5586, 4
        %v5588 = vmul.u32 %v5587, 24
        %v5589 = vsub.s32 %v5583, %v5588
        %v5590 = vsub.s32 0, %v5589
        %v5591 = vsel %vm5581, %v5590, %v5589
        %vm5592 = vcmp.lt.s32.totalorder %v5124, 0
        %v5593 = vsub.s32 0, %v5124
        %v5594 = vsel %vm5592, %v5593, %v5124
        %v5595 = vmul.u32.u64.compose %v5594, 2863311531
        %v5596 = vextract.low.u32 %v5595
        %v5597 = vextract.high.u32 %v5595
        %v5598 = vshrl.u32 %v5597, 4
        %v5599 = vmul.u32 %v5598, 24
        %v5600 = vsub.s32 %v5594, %v5599
        %v5601 = vsub.s32 0, %v5600
        %v5602 = vsel %vm5592, %v5601, %v5600
        %vm5603 = vcmp.lt.s32.totalorder %v5125, 0
        %v5604 = vsub.s32 0, %v5125
        %v5605 = vsel %vm5603, %v5604, %v5125
        %v5606 = vmul.u32.u64.compose %v5605, 2863311531
        %v5607 = vextract.low.u32 %v5606
        %v5608 = vextract.high.u32 %v5606
        %v5609 = vshrl.u32 %v5608, 4
        %v5610 = vmul.u32 %v5609, 24
        %v5611 = vsub.s32 %v5605, %v5610
        %v5612 = vsub.s32 0, %v5611
        %v5613 = vsel %vm5603, %v5612, %v5611
        %vm5614 = vcmp.lt.s32.totalorder %v5126, 0
        %v5615 = vsub.s32 0, %v5126
        %v5616 = vsel %vm5614, %v5615, %v5126
        %v5617 = vmul.u32.u64.compose %v5616, 2863311531
        %v5618 = vextract.low.u32 %v5617
        %v5619 = vextract.high.u32 %v5617
        %v5620 = vshrl.u32 %v5619, 4
        %v5621 = vmul.u32 %v5620, 24
        %v5622 = vsub.s32 %v5616, %v5621
        %v5623 = vsub.s32 0, %v5622
        %v5624 = vsel %vm5614, %v5623, %v5622
        %vm5625 = vcmp.lt.s32.totalorder %v5127, 0
        %v5626 = vsub.s32 0, %v5127
        %v5627 = vsel %vm5625, %v5626, %v5127
        %v5628 = vmul.u32.u64.compose %v5627, 2863311531
        %v5629 = vextract.low.u32 %v5628
        %v5630 = vextract.high.u32 %v5628
        %v5631 = vshrl.u32 %v5630, 4
        %v5632 = vmul.u32 %v5631, 24
        %v5633 = vsub.s32 %v5627, %v5632
        %v5634 = vsub.s32 0, %v5633
        %v5635 = vsel %vm5625, %v5634, %v5633
        %vm5636 = vcmp.lt.s32.totalorder %v5128, 0
        %v5637 = vsub.s32 0, %v5128
        %v5638 = vsel %vm5636, %v5637, %v5128
        %v5639 = vmul.u32.u64.compose %v5638, 2863311531
        %v5640 = vextract.low.u32 %v5639
        %v5641 = vextract.high.u32 %v5639
        %v5642 = vshrl.u32 %v5641, 4
        %v5643 = vmul.u32 %v5642, 24
        %v5644 = vsub.s32 %v5638, %v5643
        %v5645 = vsub.s32 0, %v5644
        %v5646 = vsel %vm5636, %v5645, %v5644
        %vm5647 = vcmp.lt.s32.totalorder %v5129, 0
        %v5648 = vsub.s32 0, %v5129
        %v5649 = vsel %vm5647, %v5648, %v5129
        %v5650 = vmul.u32.u64.compose %v5649, 2863311531
        %v5651 = vextract.low.u32 %v5650
        %v5652 = vextract.high.u32 %v5650
        %v5653 = vshrl.u32 %v5652, 4
        %v5654 = vmul.u32 %v5653, 24
        %v5655 = vsub.s32 %v5649, %v5654
        %v5656 = vsub.s32 0, %v5655
        %v5657 = vsel %vm5647, %v5656, %v5655
        %vm5658 = vcmp.ne.s32.totalorder %v5140, 0
        %vm5659 = vcmp.ne.s32.totalorder %v5151, 0
        %vm5660 = vcmp.ne.s32.totalorder %v5162, 0
        %vm5661 = vcmp.ne.s32.totalorder %v5173, 0
        %vm5662 = vcmp.ne.s32.totalorder %v5184, 0
        %vm5663 = vcmp.ne.s32.totalorder %v5195, 0
        %vm5664 = vcmp.ne.s32.totalorder %v5206, 0
        %vm5665 = vcmp.ne.s32.totalorder %v5217, 0
        %vm5666 = vcmp.ne.s32.totalorder %v5228, 0
        %vm5667 = vcmp.ne.s32.totalorder %v5239, 0
        %vm5668 = vcmp.ne.s32.totalorder %v5250, 0
        %vm5669 = vcmp.ne.s32.totalorder %v5261, 0
        %vm5670 = vcmp.ne.s32.totalorder %v5272, 0
        %vm5671 = vcmp.ne.s32.totalorder %v5283, 0
        %vm5672 = vcmp.ne.s32.totalorder %v5294, 0
        %vm5673 = vcmp.ne.s32.totalorder %v5305, 0
        %vm5674 = vcmp.ne.s32.totalorder %v5316, 0
        %vm5675 = vcmp.ne.s32.totalorder %v5327, 0
        %vm5676 = vcmp.ne.s32.totalorder %v5338, 0
        %vm5677 = vcmp.ne.s32.totalorder %v5349, 0
        %vm5678 = vcmp.ne.s32.totalorder %v5360, 0
        %vm5679 = vcmp.ne.s32.totalorder %v5371, 0
        %vm5680 = vcmp.ne.s32.totalorder %v5382, 0
        %vm5681 = vcmp.ne.s32.totalorder %v5393, 0
        %vm5682 = vcmp.ne.s32.totalorder %v5404, 0
        %vm5683 = vcmp.ne.s32.totalorder %v5415, 0
        %vm5684 = vcmp.ne.s32.totalorder %v5426, 0
        %vm5685 = vcmp.ne.s32.totalorder %v5437, 0
        %vm5686 = vcmp.ne.s32.totalorder %v5448, 0
        %vm5687 = vcmp.ne.s32.totalorder %v5459, 0
        %vm5688 = vcmp.ne.s32.totalorder %v5470, 0
        %vm5689 = vcmp.ne.s32.totalorder %v5481, 0
        %vm5690 = vcmp.ne.s32.totalorder %v5492, 0
        %vm5691 = vcmp.ne.s32.totalorder %v5503, 0
        %vm5692 = vcmp.ne.s32.totalorder %v5514, 0
        %vm5693 = vcmp.ne.s32.totalorder %v5525, 0
        %vm5694 = vcmp.ne.s32.totalorder %v5536, 0
        %vm5695 = vcmp.ne.s32.totalorder %v5547, 0
        %vm5696 = vcmp.ne.s32.totalorder %v5558, 0
        %vm5697 = vcmp.ne.s32.totalorder %v5569, 0
        %vm5698 = vcmp.ne.s32.totalorder %v5580, 0
        %vm5699 = vcmp.ne.s32.totalorder %v5591, 0
        %vm5700 = vcmp.ne.s32.totalorder %v5602, 0
        %vm5701 = vcmp.ne.s32.totalorder %v5613, 0
        %vm5702 = vcmp.ne.s32.totalorder %v5624, 0
        %vm5703 = vcmp.ne.s32.totalorder %v5635, 0
        %vm5704 = vcmp.ne.s32.totalorder %v5646, 0
        %vm5705 = vcmp.ne.s32.totalorder %v5657, 0
        %vm5706 = vcmp.lt.s32.totalorder %v5140, 0
        %vm5707 = vcmp.lt.s32.totalorder %v5151, 0
        %vm5708 = vcmp.lt.s32.totalorder %v5162, 0
        %vm5709 = vcmp.lt.s32.totalorder %v5173, 0
        %vm5710 = vcmp.lt.s32.totalorder %v5184, 0
        %vm5711 = vcmp.lt.s32.totalorder %v5195, 0
        %vm5712 = vcmp.lt.s32.totalorder %v5206, 0
        %vm5713 = vcmp.lt.s32.totalorder %v5217, 0
        %vm5714 = vcmp.lt.s32.totalorder %v5228, 0
        %vm5715 = vcmp.lt.s32.totalorder %v5239, 0
        %vm5716 = vcmp.lt.s32.totalorder %v5250, 0
        %vm5717 = vcmp.lt.s32.totalorder %v5261, 0
        %vm5718 = vcmp.lt.s32.totalorder %v5272, 0
        %vm5719 = vcmp.lt.s32.totalorder %v5283, 0
        %vm5720 = vcmp.lt.s32.totalorder %v5294, 0
        %vm5721 = vcmp.lt.s32.totalorder %v5305, 0
        %vm5722 = vcmp.lt.s32.totalorder %v5316, 0
        %vm5723 = vcmp.lt.s32.totalorder %v5327, 0
        %vm5724 = vcmp.lt.s32.totalorder %v5338, 0
        %vm5725 = vcmp.lt.s32.totalorder %v5349, 0
        %vm5726 = vcmp.lt.s32.totalorder %v5360, 0
        %vm5727 = vcmp.lt.s32.totalorder %v5371, 0
        %vm5728 = vcmp.lt.s32.totalorder %v5382, 0
        %vm5729 = vcmp.lt.s32.totalorder %v5393, 0
        %vm5730 = vcmp.lt.s32.totalorder %v5404, 0
        %vm5731 = vcmp.lt.s32.totalorder %v5415, 0
        %vm5732 = vcmp.lt.s32.totalorder %v5426, 0
        %vm5733 = vcmp.lt.s32.totalorder %v5437, 0
        %vm5734 = vcmp.lt.s32.totalorder %v5448, 0
        %vm5735 = vcmp.lt.s32.totalorder %v5459, 0
        %vm5736 = vcmp.lt.s32.totalorder %v5470, 0
        %vm5737 = vcmp.lt.s32.totalorder %v5481, 0
        %vm5738 = vcmp.lt.s32.totalorder %v5492, 0
        %vm5739 = vcmp.lt.s32.totalorder %v5503, 0
        %vm5740 = vcmp.lt.s32.totalorder %v5514, 0
        %vm5741 = vcmp.lt.s32.totalorder %v5525, 0
        %vm5742 = vcmp.lt.s32.totalorder %v5536, 0
        %vm5743 = vcmp.lt.s32.totalorder %v5547, 0
        %vm5744 = vcmp.lt.s32.totalorder %v5558, 0
        %vm5745 = vcmp.lt.s32.totalorder %v5569, 0
        %vm5746 = vcmp.lt.s32.totalorder %v5580, 0
        %vm5747 = vcmp.lt.s32.totalorder %v5591, 0
        %vm5748 = vcmp.lt.s32.totalorder %v5602, 0
        %vm5749 = vcmp.lt.s32.totalorder %v5613, 0
        %vm5750 = vcmp.lt.s32.totalorder %v5624, 0
        %vm5751 = vcmp.lt.s32.totalorder %v5635, 0
        %vm5752 = vcmp.lt.s32.totalorder %v5646, 0
        %vm5753 = vcmp.lt.s32.totalorder %v5657, 0
        %vm5754 = vmand %vm5706, %vm5658
        %vm5755 = vmand %vm5707, %vm5659
        %vm5756 = vmand %vm5708, %vm5660
        %vm5757 = vmand %vm5709, %vm5661
        %vm5758 = vmand %vm5710, %vm5662
        %vm5759 = vmand %vm5711, %vm5663
        %vm5760 = vmand %vm5712, %vm5664
        %vm5761 = vmand %vm5713, %vm5665
        %vm5762 = vmand %vm5714, %vm5666
        %vm5763 = vmand %vm5715, %vm5667
        %vm5764 = vmand %vm5716, %vm5668
        %vm5765 = vmand %vm5717, %vm5669
        %vm5766 = vmand %vm5718, %vm5670
        %vm5767 = vmand %vm5719, %vm5671
        %vm5768 = vmand %vm5720, %vm5672
        %vm5769 = vmand %vm5721, %vm5673
        %vm5770 = vmand %vm5722, %vm5674
        %vm5771 = vmand %vm5723, %vm5675
        %vm5772 = vmand %vm5724, %vm5676
        %vm5773 = vmand %vm5725, %vm5677
        %vm5774 = vmand %vm5726, %vm5678
        %vm5775 = vmand %vm5727, %vm5679
        %vm5776 = vmand %vm5728, %vm5680
        %vm5777 = vmand %vm5729, %vm5681
        %vm5778 = vmand %vm5730, %vm5682
        %vm5779 = vmand %vm5731, %vm5683
        %vm5780 = vmand %vm5732, %vm5684
        %vm5781 = vmand %vm5733, %vm5685
        %vm5782 = vmand %vm5734, %vm5686
        %vm5783 = vmand %vm5735, %vm5687
        %vm5784 = vmand %vm5736, %vm5688
        %vm5785 = vmand %vm5737, %vm5689
        %vm5786 = vmand %vm5738, %vm5690
        %vm5787 = vmand %vm5739, %vm5691
        %vm5788 = vmand %vm5740, %vm5692
        %vm5789 = vmand %vm5741, %vm5693
        %vm5790 = vmand %vm5742, %vm5694
        %vm5791 = vmand %vm5743, %vm5695
        %vm5792 = vmand %vm5744, %vm5696
        %vm5793 = vmand %vm5745, %vm5697
        %vm5794 = vmand %vm5746, %vm5698
        %vm5795 = vmand %vm5747, %vm5699
        %vm5796 = vmand %vm5748, %vm5700
        %vm5797 = vmand %vm5749, %vm5701
        %vm5798 = vmand %vm5750, %vm5702
        %vm5799 = vmand %vm5751, %vm5703
        %vm5800 = vmand %vm5752, %vm5704
        %vm5801 = vmand %vm5753, %vm5705
        %v5802 = vadd.s32 %v5140, 24
        %v5803 = vadd.s32 %v5151, 24
        %v5804 = vadd.s32 %v5162, 24
        %v5805 = vadd.s32 %v5173, 24
        %v5806 = vadd.s32 %v5184, 24
        %v5807 = vadd.s32 %v5195, 24
        %v5808 = vadd.s32 %v5206, 24
        %v5809 = vadd.s32 %v5217, 24
        %v5810 = vadd.s32 %v5228, 24
        %v5811 = vadd.s32 %v5239, 24
        %v5812 = vadd.s32 %v5250, 24
        %v5813 = vadd.s32 %v5261, 24
        %v5814 = vadd.s32 %v5272, 24
        %v5815 = vadd.s32 %v5283, 24
        %v5816 = vadd.s32 %v5294, 24
        %v5817 = vadd.s32 %v5305, 24
        %v5818 = vadd.s32 %v5316, 24
        %v5819 = vadd.s32 %v5327, 24
        %v5820 = vadd.s32 %v5338, 24
        %v5821 = vadd.s32 %v5349, 24
        %v5822 = vadd.s32 %v5360, 24
        %v5823 = vadd.s32 %v5371, 24
        %v5824 = vadd.s32 %v5382, 24
        %v5825 = vadd.s32 %v5393, 24
        %v5826 = vadd.s32 %v5404, 24
        %v5827 = vadd.s32 %v5415, 24
        %v5828 = vadd.s32 %v5426, 24
        %v5829 = vadd.s32 %v5437, 24
        %v5830 = vadd.s32 %v5448, 24
        %v5831 = vadd.s32 %v5459, 24
        %v5832 = vadd.s32 %v5470, 24
        %v5833 = vadd.s32 %v5481, 24
        %v5834 = vadd.s32 %v5492, 24
        %v5835 = vadd.s32 %v5503, 24
        %v5836 = vadd.s32 %v5514, 24
        %v5837 = vadd.s32 %v5525, 24
        %v5838 = vadd.s32 %v5536, 24
        %v5839 = vadd.s32 %v5547, 24
        %v5840 = vadd.s32 %v5558, 24
        %v5841 = vadd.s32 %v5569, 24
        %v5842 = vadd.s32 %v5580, 24
        %v5843 = vadd.s32 %v5591, 24
        %v5844 = vadd.s32 %v5602, 24
        %v5845 = vadd.s32 %v5613, 24
        %v5846 = vadd.s32 %v5624, 24
        %v5847 = vadd.s32 %v5635, 24
        %v5848 = vadd.s32 %v5646, 24
        %v5849 = vadd.s32 %v5657, 24
        %v5850 = vsel %vm5754, %v5802, %v5140
        %v5851 = vsel %vm5755, %v5803, %v5151
        %v5852 = vsel %vm5756, %v5804, %v5162
        %v5853 = vsel %vm5757, %v5805, %v5173
        %v5854 = vsel %vm5758, %v5806, %v5184
        %v5855 = vsel %vm5759, %v5807, %v5195
        %v5856 = vsel %vm5760, %v5808, %v5206
        %v5857 = vsel %vm5761, %v5809, %v5217
        %v5858 = vsel %vm5762, %v5810, %v5228
        %v5859 = vsel %vm5763, %v5811, %v5239
        %v5860 = vsel %vm5764, %v5812, %v5250
        %v5861 = vsel %vm5765, %v5813, %v5261
        %v5862 = vsel %vm5766, %v5814, %v5272
        %v5863 = vsel %vm5767, %v5815, %v5283
        %v5864 = vsel %vm5768, %v5816, %v5294
        %v5865 = vsel %vm5769, %v5817, %v5305
        %v5866 = vsel %vm5770, %v5818, %v5316
        %v5867 = vsel %vm5771, %v5819, %v5327
        %v5868 = vsel %vm5772, %v5820, %v5338
        %v5869 = vsel %vm5773, %v5821, %v5349
        %v5870 = vsel %vm5774, %v5822, %v5360
        %v5871 = vsel %vm5775, %v5823, %v5371
        %v5872 = vsel %vm5776, %v5824, %v5382
        %v5873 = vsel %vm5777, %v5825, %v5393
        %v5874 = vsel %vm5778, %v5826, %v5404
        %v5875 = vsel %vm5779, %v5827, %v5415
        %v5876 = vsel %vm5780, %v5828, %v5426
        %v5877 = vsel %vm5781, %v5829, %v5437
        %v5878 = vsel %vm5782, %v5830, %v5448
        %v5879 = vsel %vm5783, %v5831, %v5459
        %v5880 = vsel %vm5784, %v5832, %v5470
        %v5881 = vsel %vm5785, %v5833, %v5481
        %v5882 = vsel %vm5786, %v5834, %v5492
        %v5883 = vsel %vm5787, %v5835, %v5503
        %v5884 = vsel %vm5788, %v5836, %v5514
        %v5885 = vsel %vm5789, %v5837, %v5525
        %v5886 = vsel %vm5790, %v5838, %v5536
        %v5887 = vsel %vm5791, %v5839, %v5547
        %v5888 = vsel %vm5792, %v5840, %v5558
        %v5889 = vsel %vm5793, %v5841, %v5569
        %v5890 = vsel %vm5794, %v5842, %v5580
        %v5891 = vsel %vm5795, %v5843, %v5591
        %v5892 = vsel %vm5796, %v5844, %v5602
        %v5893 = vsel %vm5797, %v5845, %v5613
        %v5894 = vsel %vm5798, %v5846, %v5624
        %v5895 = vsel %vm5799, %v5847, %v5635
        %v5896 = vsel %vm5800, %v5848, %v5646
        %v5897 = vsel %vm5801, %v5849, %v5657
        %vm5898 = vcmp.lt.s32.totalorder %v5850, 16
        %vm5899 = vcmp.lt.s32.totalorder %v5851, 16
        %vm5900 = vcmp.lt.s32.totalorder %v5852, 16
        %vm5901 = vcmp.lt.s32.totalorder %v5853, 16
        %vm5902 = vcmp.lt.s32.totalorder %v5854, 16
        %vm5903 = vcmp.lt.s32.totalorder %v5855, 16
        %vm5904 = vcmp.lt.s32.totalorder %v5856, 16
        %vm5905 = vcmp.lt.s32.totalorder %v5857, 16
        %vm5906 = vcmp.lt.s32.totalorder %v5858, 16
        %vm5907 = vcmp.lt.s32.totalorder %v5859, 16
        %vm5908 = vcmp.lt.s32.totalorder %v5860, 16
        %vm5909 = vcmp.lt.s32.totalorder %v5861, 16
        %vm5910 = vcmp.lt.s32.totalorder %v5862, 16
        %vm5911 = vcmp.lt.s32.totalorder %v5863, 16
        %vm5912 = vcmp.lt.s32.totalorder %v5864, 16
        %vm5913 = vcmp.lt.s32.totalorder %v5865, 16
        %vm5914 = vcmp.lt.s32.totalorder %v5866, 16
        %vm5915 = vcmp.lt.s32.totalorder %v5867, 16
        %vm5916 = vcmp.lt.s32.totalorder %v5868, 16
        %vm5917 = vcmp.lt.s32.totalorder %v5869, 16
        %vm5918 = vcmp.lt.s32.totalorder %v5870, 16
        %vm5919 = vcmp.lt.s32.totalorder %v5871, 16
        %vm5920 = vcmp.lt.s32.totalorder %v5872, 16
        %vm5921 = vcmp.lt.s32.totalorder %v5873, 16
        %vm5922 = vcmp.lt.s32.totalorder %v5874, 16
        %vm5923 = vcmp.lt.s32.totalorder %v5875, 16
        %vm5924 = vcmp.lt.s32.totalorder %v5876, 16
        %vm5925 = vcmp.lt.s32.totalorder %v5877, 16
        %vm5926 = vcmp.lt.s32.totalorder %v5878, 16
        %vm5927 = vcmp.lt.s32.totalorder %v5879, 16
        %vm5928 = vcmp.lt.s32.totalorder %v5880, 16
        %vm5929 = vcmp.lt.s32.totalorder %v5881, 16
        %vm5930 = vcmp.lt.s32.totalorder %v5882, 16
        %vm5931 = vcmp.lt.s32.totalorder %v5883, 16
        %vm5932 = vcmp.lt.s32.totalorder %v5884, 16
        %vm5933 = vcmp.lt.s32.totalorder %v5885, 16
        %vm5934 = vcmp.lt.s32.totalorder %v5886, 16
        %vm5935 = vcmp.lt.s32.totalorder %v5887, 16
        %vm5936 = vcmp.lt.s32.totalorder %v5888, 16
        %vm5937 = vcmp.lt.s32.totalorder %v5889, 16
        %vm5938 = vcmp.lt.s32.totalorder %v5890, 16
        %vm5939 = vcmp.lt.s32.totalorder %v5891, 16
        %vm5940 = vcmp.lt.s32.totalorder %v5892, 16
        %vm5941 = vcmp.lt.s32.totalorder %v5893, 16
        %vm5942 = vcmp.lt.s32.totalorder %v5894, 16
        %vm5943 = vcmp.lt.s32.totalorder %v5895, 16
        %vm5944 = vcmp.lt.s32.totalorder %v5896, 16
        %vm5945 = vcmp.lt.s32.totalorder %v5897, 16
        %v5946 = vsel %vm5898, 1, 0
        %v5947 = vsel %vm5899, 1, 0
        %v5948 = vsel %vm5900, 1, 0
        %v5949 = vsel %vm5901, 1, 0
        %v5950 = vsel %vm5902, 1, 0
        %v5951 = vsel %vm5903, 1, 0
        %v5952 = vsel %vm5904, 1, 0
        %v5953 = vsel %vm5905, 1, 0
        %v5954 = vsel %vm5906, 1, 0
        %v5955 = vsel %vm5907, 1, 0
        %v5956 = vsel %vm5908, 1, 0
        %v5957 = vsel %vm5909, 1, 0
        %v5958 = vsel %vm5910, 1, 0
        %v5959 = vsel %vm5911, 1, 0
        %v5960 = vsel %vm5912, 1, 0
        %v5961 = vsel %vm5913, 1, 0
        %v5962 = vsel %vm5914, 1, 0
        %v5963 = vsel %vm5915, 1, 0
        %v5964 = vsel %vm5916, 1, 0
        %v5965 = vsel %vm5917, 1, 0
        %v5966 = vsel %vm5918, 1, 0
        %v5967 = vsel %vm5919, 1, 0
        %v5968 = vsel %vm5920, 1, 0
        %v5969 = vsel %vm5921, 1, 0
        %v5970 = vsel %vm5922, 1, 0
        %v5971 = vsel %vm5923, 1, 0
        %v5972 = vsel %vm5924, 1, 0
        %v5973 = vsel %vm5925, 1, 0
        %v5974 = vsel %vm5926, 1, 0
        %v5975 = vsel %vm5927, 1, 0
        %v5976 = vsel %vm5928, 1, 0
        %v5977 = vsel %vm5929, 1, 0
        %v5978 = vsel %vm5930, 1, 0
        %v5979 = vsel %vm5931, 1, 0
        %v5980 = vsel %vm5932, 1, 0
        %v5981 = vsel %vm5933, 1, 0
        %v5982 = vsel %vm5934, 1, 0
        %v5983 = vsel %vm5935, 1, 0
        %v5984 = vsel %vm5936, 1, 0
        %v5985 = vsel %vm5937, 1, 0
        %v5986 = vsel %vm5938, 1, 0
        %v5987 = vsel %vm5939, 1, 0
        %v5988 = vsel %vm5940, 1, 0
        %v5989 = vsel %vm5941, 1, 0
        %v5990 = vsel %vm5942, 1, 0
        %v5991 = vsel %vm5943, 1, 0
        %v5992 = vsel %vm5944, 1, 0
        %v5993 = vsel %vm5945, 1, 0
        %vm5994 = vcmp.eq.s32.totalorder %v5946, 1
        %vm5995 = vcmp.eq.s32.totalorder %v5947, 1
        %vm5996 = vcmp.eq.s32.totalorder %v5948, 1
        %vm5997 = vcmp.eq.s32.totalorder %v5949, 1
        %vm5998 = vcmp.eq.s32.totalorder %v5950, 1
        %vm5999 = vcmp.eq.s32.totalorder %v5951, 1
        %vm6000 = vcmp.eq.s32.totalorder %v5952, 1
        %vm6001 = vcmp.eq.s32.totalorder %v5953, 1
        %vm6002 = vcmp.eq.s32.totalorder %v5954, 1
        %vm6003 = vcmp.eq.s32.totalorder %v5955, 1
        %vm6004 = vcmp.eq.s32.totalorder %v5956, 1
        %vm6005 = vcmp.eq.s32.totalorder %v5957, 1
        %vm6006 = vcmp.eq.s32.totalorder %v5958, 1
        %vm6007 = vcmp.eq.s32.totalorder %v5959, 1
        %vm6008 = vcmp.eq.s32.totalorder %v5960, 1
        %vm6009 = vcmp.eq.s32.totalorder %v5961, 1
        %vm6010 = vcmp.eq.s32.totalorder %v5962, 1
        %vm6011 = vcmp.eq.s32.totalorder %v5963, 1
        %vm6012 = vcmp.eq.s32.totalorder %v5964, 1
        %vm6013 = vcmp.eq.s32.totalorder %v5965, 1
        %vm6014 = vcmp.eq.s32.totalorder %v5966, 1
        %vm6015 = vcmp.eq.s32.totalorder %v5967, 1
        %vm6016 = vcmp.eq.s32.totalorder %v5968, 1
        %vm6017 = vcmp.eq.s32.totalorder %v5969, 1
        %vm6018 = vcmp.eq.s32.totalorder %v5970, 1
        %vm6019 = vcmp.eq.s32.totalorder %v5971, 1
        %vm6020 = vcmp.eq.s32.totalorder %v5972, 1
        %vm6021 = vcmp.eq.s32.totalorder %v5973, 1
        %vm6022 = vcmp.eq.s32.totalorder %v5974, 1
        %vm6023 = vcmp.eq.s32.totalorder %v5975, 1
        %vm6024 = vcmp.eq.s32.totalorder %v5976, 1
        %vm6025 = vcmp.eq.s32.totalorder %v5977, 1
        %vm6026 = vcmp.eq.s32.totalorder %v5978, 1
        %vm6027 = vcmp.eq.s32.totalorder %v5979, 1
        %vm6028 = vcmp.eq.s32.totalorder %v5980, 1
        %vm6029 = vcmp.eq.s32.totalorder %v5981, 1
        %vm6030 = vcmp.eq.s32.totalorder %v5982, 1
        %vm6031 = vcmp.eq.s32.totalorder %v5983, 1
        %vm6032 = vcmp.eq.s32.totalorder %v5984, 1
        %vm6033 = vcmp.eq.s32.totalorder %v5985, 1
        %vm6034 = vcmp.eq.s32.totalorder %v5986, 1
        %vm6035 = vcmp.eq.s32.totalorder %v5987, 1
        %vm6036 = vcmp.eq.s32.totalorder %v5988, 1
        %vm6037 = vcmp.eq.s32.totalorder %v5989, 1
        %vm6038 = vcmp.eq.s32.totalorder %v5990, 1
        %vm6039 = vcmp.eq.s32.totalorder %v5991, 1
        %vm6040 = vcmp.eq.s32.totalorder %v5992, 1
        %vm6041 = vcmp.eq.s32.totalorder %v5993, 1
        %v6042 = vsel %vm5994, %v5033, 0.0
        %v6043 = vsel %vm5995, %v5034, 0.0
        %v6044 = vsel %vm5996, %v5035, 0.0
        %v6045 = vsel %vm5997, %v5036, 0.0
        %v6046 = vsel %vm5998, %v5037, 0.0
        %v6047 = vsel %vm5999, %v5038, 0.0
        %v6048 = vsel %vm6000, %v5039, 0.0
        %v6049 = vsel %vm6001, %v5040, 0.0
        %v6050 = vsel %vm6002, %v5041, 0.0
        %v6051 = vsel %vm6003, %v5042, 0.0
        %v6052 = vsel %vm6004, %v5043, 0.0
        %v6053 = vsel %vm6005, %v5044, 0.0
        %v6054 = vsel %vm6006, %v5045, 0.0
        %v6055 = vsel %vm6007, %v5046, 0.0
        %v6056 = vsel %vm6008, %v5047, 0.0
        %v6057 = vsel %vm6009, %v5048, 0.0
        %v6058 = vsel %vm6010, %v5049, 0.0
        %v6059 = vsel %vm6011, %v5050, 0.0
        %v6060 = vsel %vm6012, %v5051, 0.0
        %v6061 = vsel %vm6013, %v5052, 0.0
        %v6062 = vsel %vm6014, %v5053, 0.0
        %v6063 = vsel %vm6015, %v5054, 0.0
        %v6064 = vsel %vm6016, %v5055, 0.0
        %v6065 = vsel %vm6017, %v5056, 0.0
        %v6066 = vsel %vm6018, %v5057, 0.0
        %v6067 = vsel %vm6019, %v5058, 0.0
        %v6068 = vsel %vm6020, %v5059, 0.0
        %v6069 = vsel %vm6021, %v5060, 0.0
        %v6070 = vsel %vm6022, %v5061, 0.0
        %v6071 = vsel %vm6023, %v5062, 0.0
        %v6072 = vsel %vm6024, %v5063, 0.0
        %v6073 = vsel %vm6025, %v5064, 0.0
        %v6074 = vsel %vm6026, %v5065, 0.0
        %v6075 = vsel %vm6027, %v5066, 0.0
        %v6076 = vsel %vm6028, %v5067, 0.0
        %v6077 = vsel %vm6029, %v5068, 0.0
        %v6078 = vsel %vm6030, %v5069, 0.0
        %v6079 = vsel %vm6031, %v5070, 0.0
        %v6080 = vsel %vm6032, %v5071, 0.0
        %v6081 = vsel %vm6033, %v5072, 0.0
        %v6082 = vsel %vm6034, %v5073, 0.0
        %v6083 = vsel %vm6035, %v5074, 0.0
        %v6084 = vsel %vm6036, %v5075, 0.0
        %v6085 = vsel %vm6037, %v5076, 0.0
        %v6086 = vsel %vm6038, %v5077, 0.0
        %v6087 = vsel %vm6039, %v5078, 0.0
        %v6088 = vsel %vm6040, %v5079, 0.0
        %v6089 = vsel %vm6041, %v5080, 0.0
        %v6090 = vadd.f32 %v6042, %v6043
        %v6091 = vadd.f32 %v6090, %v6044
        %v6092 = vadd.f32 %v6091, %v6045
        %v6093 = vadd.f32 %v6092, %v6046
        %v6094 = vadd.f32 %v6093, %v6047
        %v6095 = vadd.f32 %v6094, %v6048
        %v6096 = vadd.f32 %v6095, %v6049
        %v6097 = vadd.f32 %v6096, %v6050
        %v6098 = vadd.f32 %v6097, %v6051
        %v6099 = vadd.f32 %v6098, %v6052
        %v6100 = vadd.f32 %v6099, %v6053
        %v6101 = vadd.f32 %v6100, %v6054
        %v6102 = vadd.f32 %v6101, %v6055
        %v6103 = vadd.f32 %v6102, %v6056
        %v6104 = vadd.f32 %v6103, %v6057
        %v6105 = vadd.f32 %v6104, %v6058
        %v6106 = vadd.f32 %v6105, %v6059
        %v6107 = vadd.f32 %v6106, %v6060
        %v6108 = vadd.f32 %v6107, %v6061
        %v6109 = vadd.f32 %v6108, %v6062
        %v6110 = vadd.f32 %v6109, %v6063
        %v6111 = vadd.f32 %v6110, %v6064
        %v6112 = vadd.f32 %v6111, %v6065
        %v6113 = vadd.f32 %v6112, %v6066
        %v6114 = vadd.f32 %v6113, %v6067
        %v6115 = vadd.f32 %v6114, %v6068
        %v6116 = vadd.f32 %v6115, %v6069
        %v6117 = vadd.f32 %v6116, %v6070
        %v6118 = vadd.f32 %v6117, %v6071
        %v6119 = vadd.f32 %v6118, %v6072
        %v6120 = vadd.f32 %v6119, %v6073
        %v6121 = vadd.f32 %v6120, %v6074
        %v6122 = vadd.f32 %v6121, %v6075
        %v6123 = vadd.f32 %v6122, %v6076
        %v6124 = vadd.f32 %v6123, %v6077
        %v6125 = vadd.f32 %v6124, %v6078
        %v6126 = vadd.f32 %v6125, %v6079
        %v6127 = vadd.f32 %v6126, %v6080
        %v6128 = vadd.f32 %v6127, %v6081
        %v6129 = vadd.f32 %v6128, %v6082
        %v6130 = vadd.f32 %v6129, %v6083
        %v6131 = vadd.f32 %v6130, %v6084
        %v6132 = vadd.f32 %v6131, %v6085
        %v6133 = vadd.f32 %v6132, %v6086
        %v6134 = vadd.f32 %v6133, %v6087
        %v6135 = vadd.f32 %v6134, %v6088
        %v6136 = vadd.f32 %v6135, %v6089
        %v6137 = vrot.slane %v6136, 4
        %v6138 = vadd.f32 %v6136, %v6137
        %v6139 = vrot.slane %v6138, 2
        %v6140 = vadd.f32 %v6138, %v6139
        %v6141 = vrot.slane %v6140, 1
        %v6142 = vadd.f32 %v6140, %v6141
        %v6143 = vmul.f32 %v5033, %v5033
        %v6144 = vmul.f32 %v5034, %v5034
        %v6145 = vmul.f32 %v5035, %v5035
        %v6146 = vmul.f32 %v5036, %v5036
        %v6147 = vmul.f32 %v5037, %v5037
        %v6148 = vmul.f32 %v5038, %v5038
        %v6149 = vmul.f32 %v5039, %v5039
        %v6150 = vmul.f32 %v5040, %v5040
        %v6151 = vmul.f32 %v5041, %v5041
        %v6152 = vmul.f32 %v5042, %v5042
        %v6153 = vmul.f32 %v5043, %v5043
        %v6154 = vmul.f32 %v5044, %v5044
        %v6155 = vmul.f32 %v5045, %v5045
        %v6156 = vmul.f32 %v5046, %v5046
        %v6157 = vmul.f32 %v5047, %v5047
        %v6158 = vmul.f32 %v5048, %v5048
        %v6159 = vmul.f32 %v5049, %v5049
        %v6160 = vmul.f32 %v5050, %v5050
        %v6161 = vmul.f32 %v5051, %v5051
        %v6162 = vmul.f32 %v5052, %v5052
        %v6163 = vmul.f32 %v5053, %v5053
        %v6164 = vmul.f32 %v5054, %v5054
        %v6165 = vmul.f32 %v5055, %v5055
        %v6166 = vmul.f32 %v5056, %v5056
        %v6167 = vmul.f32 %v5057, %v5057
        %v6168 = vmul.f32 %v5058, %v5058
        %v6169 = vmul.f32 %v5059, %v5059
        %v6170 = vmul.f32 %v5060, %v5060
        %v6171 = vmul.f32 %v5061, %v5061
        %v6172 = vmul.f32 %v5062, %v5062
        %v6173 = vmul.f32 %v5063, %v5063
        %v6174 = vmul.f32 %v5064, %v5064
        %v6175 = vmul.f32 %v5065, %v5065
        %v6176 = vmul.f32 %v5066, %v5066
        %v6177 = vmul.f32 %v5067, %v5067
        %v6178 = vmul.f32 %v5068, %v5068
        %v6179 = vmul.f32 %v5069, %v5069
        %v6180 = vmul.f32 %v5070, %v5070
        %v6181 = vmul.f32 %v5071, %v5071
        %v6182 = vmul.f32 %v5072, %v5072
        %v6183 = vmul.f32 %v5073, %v5073
        %v6184 = vmul.f32 %v5074, %v5074
        %v6185 = vmul.f32 %v5075, %v5075
        %v6186 = vmul.f32 %v5076, %v5076
        %v6187 = vmul.f32 %v5077, %v5077
        %v6188 = vmul.f32 %v5078, %v5078
        %v6189 = vmul.f32 %v5079, %v5079
        %v6190 = vmul.f32 %v5080, %v5080
        %v6191 = vsel %vm5994, %v6143, 0.0
        %v6192 = vsel %vm5995, %v6144, 0.0
        %v6193 = vsel %vm5996, %v6145, 0.0
        %v6194 = vsel %vm5997, %v6146, 0.0
        %v6195 = vsel %vm5998, %v6147, 0.0
        %v6196 = vsel %vm5999, %v6148, 0.0
        %v6197 = vsel %vm6000, %v6149, 0.0
        %v6198 = vsel %vm6001, %v6150, 0.0
        %v6199 = vsel %vm6002, %v6151, 0.0
        %v6200 = vsel %vm6003, %v6152, 0.0
        %v6201 = vsel %vm6004, %v6153, 0.0
        %v6202 = vsel %vm6005, %v6154, 0.0
        %v6203 = vsel %vm6006, %v6155, 0.0
        %v6204 = vsel %vm6007, %v6156, 0.0
        %v6205 = vsel %vm6008, %v6157, 0.0
        %v6206 = vsel %vm6009, %v6158, 0.0
        %v6207 = vsel %vm6010, %v6159, 0.0
        %v6208 = vsel %vm6011, %v6160, 0.0
        %v6209 = vsel %vm6012, %v6161, 0.0
        %v6210 = vsel %vm6013, %v6162, 0.0
        %v6211 = vsel %vm6014, %v6163, 0.0
        %v6212 = vsel %vm6015, %v6164, 0.0
        %v6213 = vsel %vm6016, %v6165, 0.0
        %v6214 = vsel %vm6017, %v6166, 0.0
        %v6215 = vsel %vm6018, %v6167, 0.0
        %v6216 = vsel %vm6019, %v6168, 0.0
        %v6217 = vsel %vm6020, %v6169, 0.0
        %v6218 = vsel %vm6021, %v6170, 0.0
        %v6219 = vsel %vm6022, %v6171, 0.0
        %v6220 = vsel %vm6023, %v6172, 0.0
        %v6221 = vsel %vm6024, %v6173, 0.0
        %v6222 = vsel %vm6025, %v6174, 0.0
        %v6223 = vsel %vm6026, %v6175, 0.0
        %v6224 = vsel %vm6027, %v6176, 0.0
        %v6225 = vsel %vm6028, %v6177, 0.0
        %v6226 = vsel %vm6029, %v6178, 0.0
        %v6227 = vsel %vm6030, %v6179, 0.0
        %v6228 = vsel %vm6031, %v6180, 0.0
        %v6229 = vsel %vm6032, %v6181, 0.0
        %v6230 = vsel %vm6033, %v6182, 0.0
        %v6231 = vsel %vm6034, %v6183, 0.0
        %v6232 = vsel %vm6035, %v6184, 0.0
        %v6233 = vsel %vm6036, %v6185, 0.0
        %v6234 = vsel %vm6037, %v6186, 0.0
        %v6235 = vsel %vm6038, %v6187, 0.0
        %v6236 = vsel %vm6039, %v6188, 0.0
        %v6237 = vsel %vm6040, %v6189, 0.0
        %v6238 = vsel %vm6041, %v6190, 0.0
        %v6239 = vadd.f32 %v6191, %v6192
        %v6240 = vadd.f32 %v6239, %v6193
        %v6241 = vadd.f32 %v6240, %v6194
        %v6242 = vadd.f32 %v6241, %v6195
        %v6243 = vadd.f32 %v6242, %v6196
        %v6244 = vadd.f32 %v6243, %v6197
        %v6245 = vadd.f32 %v6244, %v6198
        %v6246 = vadd.f32 %v6245, %v6199
        %v6247 = vadd.f32 %v6246, %v6200
        %v6248 = vadd.f32 %v6247, %v6201
        %v6249 = vadd.f32 %v6248, %v6202
        %v6250 = vadd.f32 %v6249, %v6203
        %v6251 = vadd.f32 %v6250, %v6204
        %v6252 = vadd.f32 %v6251, %v6205
        %v6253 = vadd.f32 %v6252, %v6206
        %v6254 = vadd.f32 %v6253, %v6207
        %v6255 = vadd.f32 %v6254, %v6208
        %v6256 = vadd.f32 %v6255, %v6209
        %v6257 = vadd.f32 %v6256, %v6210
        %v6258 = vadd.f32 %v6257, %v6211
        %v6259 = vadd.f32 %v6258, %v6212
        %v6260 = vadd.f32 %v6259, %v6213
        %v6261 = vadd.f32 %v6260, %v6214
        %v6262 = vadd.f32 %v6261, %v6215
        %v6263 = vadd.f32 %v6262, %v6216
        %v6264 = vadd.f32 %v6263, %v6217
        %v6265 = vadd.f32 %v6264, %v6218
        %v6266 = vadd.f32 %v6265, %v6219
        %v6267 = vadd.f32 %v6266, %v6220
        %v6268 = vadd.f32 %v6267, %v6221
        %v6269 = vadd.f32 %v6268, %v6222
        %v6270 = vadd.f32 %v6269, %v6223
        %v6271 = vadd.f32 %v6270, %v6224
        %v6272 = vadd.f32 %v6271, %v6225
        %v6273 = vadd.f32 %v6272, %v6226
        %v6274 = vadd.f32 %v6273, %v6227
        %v6275 = vadd.f32 %v6274, %v6228
        %v6276 = vadd.f32 %v6275, %v6229
        %v6277 = vadd.f32 %v6276, %v6230
        %v6278 = vadd.f32 %v6277, %v6231
        %v6279 = vadd.f32 %v6278, %v6232
        %v6280 = vadd.f32 %v6279, %v6233
        %v6281 = vadd.f32 %v6280, %v6234
        %v6282 = vadd.f32 %v6281, %v6235
        %v6283 = vadd.f32 %v6282, %v6236
        %v6284 = vadd.f32 %v6283, %v6237
        %v6285 = vadd.f32 %v6284, %v6238
        %v6286 = vrot.slane %v6285, 4
        %v6287 = vadd.f32 %v6285, %v6286
        %v6288 = vrot.slane %v6287, 2
        %v6289 = vadd.f32 %v6287, %v6288
        %v6290 = vrot.slane %v6289, 1
        %v6291 = vadd.f32 %v6289, %v6290
        %v6292 = vmul.f32 %v6142, 0.00390625
        %v6293 = vmul.f32 %v6291, 0.00390625
        %v6294 = vmul.f32 %v6292, %v6292
        %v6295 = vsub.f32 %v6293, %v6294
        %v6296 = vmax.f32 %v6295, 0.0
        %v6297 = vsub.f32 %v5033, %v6292
        %v6298 = vsub.f32 %v5034, %v6292
        %v6299 = vsub.f32 %v5035, %v6292
        %v6300 = vsub.f32 %v5036, %v6292
        %v6301 = vsub.f32 %v5037, %v6292
        %v6302 = vsub.f32 %v5038, %v6292
        %v6303 = vsub.f32 %v5039, %v6292
        %v6304 = vsub.f32 %v5040, %v6292
        %v6305 = vsub.f32 %v5041, %v6292
        %v6306 = vsub.f32 %v5042, %v6292
        %v6307 = vsub.f32 %v5043, %v6292
        %v6308 = vsub.f32 %v5044, %v6292
        %v6309 = vsub.f32 %v5045, %v6292
        %v6310 = vsub.f32 %v5046, %v6292
        %v6311 = vsub.f32 %v5047, %v6292
        %v6312 = vsub.f32 %v5048, %v6292
        %v6313 = vsub.f32 %v5049, %v6292
        %v6314 = vsub.f32 %v5050, %v6292
        %v6315 = vsub.f32 %v5051, %v6292
        %v6316 = vsub.f32 %v5052, %v6292
        %v6317 = vsub.f32 %v5053, %v6292
        %v6318 = vsub.f32 %v5054, %v6292
        %v6319 = vsub.f32 %v5055, %v6292
        %v6320 = vsub.f32 %v5056, %v6292
        %v6321 = vsub.f32 %v5057, %v6292
        %v6322 = vsub.f32 %v5058, %v6292
        %v6323 = vsub.f32 %v5059, %v6292
        %v6324 = vsub.f32 %v5060, %v6292
        %v6325 = vsub.f32 %v5061, %v6292
        %v6326 = vsub.f32 %v5062, %v6292
        %v6327 = vsub.f32 %v5063, %v6292
        %v6328 = vsub.f32 %v5064, %v6292
        %v6329 = vsub.f32 %v5065, %v6292
        %v6330 = vsub.f32 %v5066, %v6292
        %v6331 = vsub.f32 %v5067, %v6292
        %v6332 = vsub.f32 %v5068, %v6292
        %v6333 = vsub.f32 %v5069, %v6292
        %v6334 = vsub.f32 %v5070, %v6292
        %v6335 = vsub.f32 %v5071, %v6292
        %v6336 = vsub.f32 %v5072, %v6292
        %v6337 = vsub.f32 %v5073, %v6292
        %v6338 = vsub.f32 %v5074, %v6292
        %v6339 = vsub.f32 %v5075, %v6292
        %v6340 = vsub.f32 %v5076, %v6292
        %v6341 = vsub.f32 %v5077, %v6292
        %v6342 = vsub.f32 %v5078, %v6292
        %v6343 = vsub.f32 %v5079, %v6292
        %v6344 = vsub.f32 %v5080, %v6292
        %v6345 = vadd.f32 %v6296, 1e-05
        %v6346 = vrsqrt.pop %v6345
        %v6347 = vmul.f32 %v6297, %v6346
        %v6348 = vmul.f32 %v6298, %v6346
        %v6349 = vmul.f32 %v6299, %v6346
        %v6350 = vmul.f32 %v6300, %v6346
        %v6351 = vmul.f32 %v6301, %v6346
        %v6352 = vmul.f32 %v6302, %v6346
        %v6353 = vmul.f32 %v6303, %v6346
        %v6354 = vmul.f32 %v6304, %v6346
        %v6355 = vmul.f32 %v6305, %v6346
        %v6356 = vmul.f32 %v6306, %v6346
        %v6357 = vmul.f32 %v6307, %v6346
        %v6358 = vmul.f32 %v6308, %v6346
        %v6359 = vmul.f32 %v6309, %v6346
        %v6360 = vmul.f32 %v6310, %v6346
        %v6361 = vmul.f32 %v6311, %v6346
        %v6362 = vmul.f32 %v6312, %v6346
        %v6363 = vmul.f32 %v6313, %v6346
        %v6364 = vmul.f32 %v6314, %v6346
        %v6365 = vmul.f32 %v6315, %v6346
        %v6366 = vmul.f32 %v6316, %v6346
        %v6367 = vmul.f32 %v6317, %v6346
        %v6368 = vmul.f32 %v6318, %v6346
        %v6369 = vmul.f32 %v6319, %v6346
        %v6370 = vmul.f32 %v6320, %v6346
        %v6371 = vmul.f32 %v6321, %v6346
        %v6372 = vmul.f32 %v6322, %v6346
        %v6373 = vmul.f32 %v6323, %v6346
        %v6374 = vmul.f32 %v6324, %v6346
        %v6375 = vmul.f32 %v6325, %v6346
        %v6376 = vmul.f32 %v6326, %v6346
        %v6377 = vmul.f32 %v6327, %v6346
        %v6378 = vmul.f32 %v6328, %v6346
        %v6379 = vmul.f32 %v6329, %v6346
        %v6380 = vmul.f32 %v6330, %v6346
        %v6381 = vmul.f32 %v6331, %v6346
        %v6382 = vmul.f32 %v6332, %v6346
        %v6383 = vmul.f32 %v6333, %v6346
        %v6384 = vmul.f32 %v6334, %v6346
        %v6385 = vmul.f32 %v6335, %v6346
        %v6386 = vmul.f32 %v6336, %v6346
        %v6387 = vmul.f32 %v6337, %v6346
        %v6388 = vmul.f32 %v6338, %v6346
        %v6389 = vmul.f32 %v6339, %v6346
        %v6390 = vmul.f32 %v6340, %v6346
        %v6391 = vmul.f32 %v6341, %v6346
        %v6392 = vmul.f32 %v6342, %v6346
        %v6393 = vmul.f32 %v6343, %v6346
        %v6394 = vmul.f32 %v6344, %v6346
        %s6395 = sld [smem:[#allocation2]]
        %vm6396 = vcmp.ge.f32.partialorder %v6347, 0.0
        %vm6397 = vcmp.ge.f32.partialorder %v6348, 0.0
        %vm6398 = vcmp.ge.f32.partialorder %v6349, 0.0
        %vm6399 = vcmp.ge.f32.partialorder %v6350, 0.0
        %vm6400 = vcmp.ge.f32.partialorder %v6351, 0.0
        %vm6401 = vcmp.ge.f32.partialorder %v6352, 0.0
        %vm6402 = vcmp.ge.f32.partialorder %v6353, 0.0
        %vm6403 = vcmp.ge.f32.partialorder %v6354, 0.0
        %vm6404 = vcmp.ge.f32.partialorder %v6355, 0.0
        %vm6405 = vcmp.ge.f32.partialorder %v6356, 0.0
        %vm6406 = vcmp.ge.f32.partialorder %v6357, 0.0
        %vm6407 = vcmp.ge.f32.partialorder %v6358, 0.0
        %vm6408 = vcmp.ge.f32.partialorder %v6359, 0.0
        %vm6409 = vcmp.ge.f32.partialorder %v6360, 0.0
        %vm6410 = vcmp.ge.f32.partialorder %v6361, 0.0
        %vm6411 = vcmp.ge.f32.partialorder %v6362, 0.0
        %vm6412 = vcmp.ge.f32.partialorder %v6363, 0.0
        %vm6413 = vcmp.ge.f32.partialorder %v6364, 0.0
        %vm6414 = vcmp.ge.f32.partialorder %v6365, 0.0
        %vm6415 = vcmp.ge.f32.partialorder %v6366, 0.0
        %vm6416 = vcmp.ge.f32.partialorder %v6367, 0.0
        %vm6417 = vcmp.ge.f32.partialorder %v6368, 0.0
        %vm6418 = vcmp.ge.f32.partialorder %v6369, 0.0
        %vm6419 = vcmp.ge.f32.partialorder %v6370, 0.0
        %vm6420 = vcmp.ge.f32.partialorder %v6371, 0.0
        %vm6421 = vcmp.ge.f32.partialorder %v6372, 0.0
        %vm6422 = vcmp.ge.f32.partialorder %v6373, 0.0
        %vm6423 = vcmp.ge.f32.partialorder %v6374, 0.0
        %vm6424 = vcmp.ge.f32.partialorder %v6375, 0.0
        %vm6425 = vcmp.ge.f32.partialorder %v6376, 0.0
        %vm6426 = vcmp.ge.f32.partialorder %v6377, 0.0
        %vm6427 = vcmp.ge.f32.partialorder %v6378, 0.0
        %vm6428 = vcmp.ge.f32.partialorder %v6379, 0.0
        %vm6429 = vcmp.ge.f32.partialorder %v6380, 0.0
        %vm6430 = vcmp.ge.f32.partialorder %v6381, 0.0
        %vm6431 = vcmp.ge.f32.partialorder %v6382, 0.0
        %vm6432 = vcmp.ge.f32.partialorder %v6383, 0.0
        %vm6433 = vcmp.ge.f32.partialorder %v6384, 0.0
        %vm6434 = vcmp.ge.f32.partialorder %v6385, 0.0
        %vm6435 = vcmp.ge.f32.partialorder %v6386, 0.0
        %vm6436 = vcmp.ge.f32.partialorder %v6387, 0.0
        %vm6437 = vcmp.ge.f32.partialorder %v6388, 0.0
        %vm6438 = vcmp.ge.f32.partialorder %v6389, 0.0
        %vm6439 = vcmp.ge.f32.partialorder %v6390, 0.0
        %vm6440 = vcmp.ge.f32.partialorder %v6391, 0.0
        %vm6441 = vcmp.ge.f32.partialorder %v6392, 0.0
        %vm6442 = vcmp.ge.f32.partialorder %v6393, 0.0
        %vm6443 = vcmp.ge.f32.partialorder %v6394, 0.0
        %v6444 = vstv %s6395
        %v6445 = vmul.f32 %v6444, %v6347
        %v6446 = vmul.f32 %v6444, %v6348
        %v6447 = vmul.f32 %v6444, %v6349
        %v6448 = vmul.f32 %v6444, %v6350
        %v6449 = vmul.f32 %v6444, %v6351
        %v6450 = vmul.f32 %v6444, %v6352
        %v6451 = vmul.f32 %v6444, %v6353
        %v6452 = vmul.f32 %v6444, %v6354
        %v6453 = vmul.f32 %v6444, %v6355
        %v6454 = vmul.f32 %v6444, %v6356
        %v6455 = vmul.f32 %v6444, %v6357
        %v6456 = vmul.f32 %v6444, %v6358
        %v6457 = vmul.f32 %v6444, %v6359
        %v6458 = vmul.f32 %v6444, %v6360
        %v6459 = vmul.f32 %v6444, %v6361
        %v6460 = vmul.f32 %v6444, %v6362
        %v6461 = vmul.f32 %v6444, %v6363
        %v6462 = vmul.f32 %v6444, %v6364
        %v6463 = vmul.f32 %v6444, %v6365
        %v6464 = vmul.f32 %v6444, %v6366
        %v6465 = vmul.f32 %v6444, %v6367
        %v6466 = vmul.f32 %v6444, %v6368
        %v6467 = vmul.f32 %v6444, %v6369
        %v6468 = vmul.f32 %v6444, %v6370
        %v6469 = vmul.f32 %v6444, %v6371
        %v6470 = vmul.f32 %v6444, %v6372
        %v6471 = vmul.f32 %v6444, %v6373
        %v6472 = vmul.f32 %v6444, %v6374
        %v6473 = vmul.f32 %v6444, %v6375
        %v6474 = vmul.f32 %v6444, %v6376
        %v6475 = vmul.f32 %v6444, %v6377
        %v6476 = vmul.f32 %v6444, %v6378
        %v6477 = vmul.f32 %v6444, %v6379
        %v6478 = vmul.f32 %v6444, %v6380
        %v6479 = vmul.f32 %v6444, %v6381
        %v6480 = vmul.f32 %v6444, %v6382
        %v6481 = vmul.f32 %v6444, %v6383
        %v6482 = vmul.f32 %v6444, %v6384
        %v6483 = vmul.f32 %v6444, %v6385
        %v6484 = vmul.f32 %v6444, %v6386
        %v6485 = vmul.f32 %v6444, %v6387
        %v6486 = vmul.f32 %v6444, %v6388
        %v6487 = vmul.f32 %v6444, %v6389
        %v6488 = vmul.f32 %v6444, %v6390
        %v6489 = vmul.f32 %v6444, %v6391
        %v6490 = vmul.f32 %v6444, %v6392
        %v6491 = vmul.f32 %v6444, %v6393
        %v6492 = vmul.f32 %v6444, %v6394
        %v6493 = vsel %vm6396, %v6347, %v6445
        %v6494 = vsel %vm6397, %v6348, %v6446
        %v6495 = vsel %vm6398, %v6349, %v6447
        %v6496 = vsel %vm6399, %v6350, %v6448
        %v6497 = vsel %vm6400, %v6351, %v6449
        %v6498 = vsel %vm6401, %v6352, %v6450
        %v6499 = vsel %vm6402, %v6353, %v6451
        %v6500 = vsel %vm6403, %v6354, %v6452
        %v6501 = vsel %vm6404, %v6355, %v6453
        %v6502 = vsel %vm6405, %v6356, %v6454
        %v6503 = vsel %vm6406, %v6357, %v6455
        %v6504 = vsel %vm6407, %v6358, %v6456
        %v6505 = vsel %vm6408, %v6359, %v6457
        %v6506 = vsel %vm6409, %v6360, %v6458
        %v6507 = vsel %vm6410, %v6361, %v6459
        %v6508 = vsel %vm6411, %v6362, %v6460
        %v6509 = vsel %vm6412, %v6363, %v6461
        %v6510 = vsel %vm6413, %v6364, %v6462
        %v6511 = vsel %vm6414, %v6365, %v6463
        %v6512 = vsel %vm6415, %v6366, %v6464
        %v6513 = vsel %vm6416, %v6367, %v6465
        %v6514 = vsel %vm6417, %v6368, %v6466
        %v6515 = vsel %vm6418, %v6369, %v6467
        %v6516 = vsel %vm6419, %v6370, %v6468
        %v6517 = vsel %vm6420, %v6371, %v6469
        %v6518 = vsel %vm6421, %v6372, %v6470
        %v6519 = vsel %vm6422, %v6373, %v6471
        %v6520 = vsel %vm6423, %v6374, %v6472
        %v6521 = vsel %vm6424, %v6375, %v6473
        %v6522 = vsel %vm6425, %v6376, %v6474
        %v6523 = vsel %vm6426, %v6377, %v6475
        %v6524 = vsel %vm6427, %v6378, %v6476
        %v6525 = vsel %vm6428, %v6379, %v6477
        %v6526 = vsel %vm6429, %v6380, %v6478
        %v6527 = vsel %vm6430, %v6381, %v6479
        %v6528 = vsel %vm6431, %v6382, %v6480
        %v6529 = vsel %vm6432, %v6383, %v6481
        %v6530 = vsel %vm6433, %v6384, %v6482
        %v6531 = vsel %vm6434, %v6385, %v6483
        %v6532 = vsel %vm6435, %v6386, %v6484
        %v6533 = vsel %vm6436, %v6387, %v6485
        %v6534 = vsel %vm6437, %v6388, %v6486
        %v6535 = vsel %vm6438, %v6389, %v6487
        %v6536 = vsel %vm6439, %v6390, %v6488
        %v6537 = vsel %vm6440, %v6391, %v6489
        %v6538 = vsel %vm6441, %v6392, %v6490
        %v6539 = vsel %vm6442, %v6393, %v6491
        %v6540 = vsel %vm6443, %v6394, %v6492
        %v6541 = vpack.c.bf16 %v6494, %v6493
        %v6542 = vpack.c.bf16 %v6496, %v6495
        %v6543 = vpack.c.bf16 %v6498, %v6497
        %v6544 = vpack.c.bf16 %v6500, %v6499
        %v6545 = vpack.c.bf16 %v6502, %v6501
        %v6546 = vpack.c.bf16 %v6504, %v6503
        %v6547 = vpack.c.bf16 %v6506, %v6505
        %v6548 = vpack.c.bf16 %v6508, %v6507
        %v6549 = vpack.c.bf16 %v6510, %v6509
        %v6550 = vpack.c.bf16 %v6512, %v6511
        %v6551 = vpack.c.bf16 %v6514, %v6513
        %v6552 = vpack.c.bf16 %v6516, %v6515
        %v6553 = vpack.c.bf16 %v6518, %v6517
        %v6554 = vpack.c.bf16 %v6520, %v6519
        %v6555 = vpack.c.bf16 %v6522, %v6521
        %v6556 = vpack.c.bf16 %v6524, %v6523
        %v6557 = vpack.c.bf16 %v6526, %v6525
        %v6558 = vpack.c.bf16 %v6528, %v6527
        %v6559 = vpack.c.bf16 %v6530, %v6529
        %v6560 = vpack.c.bf16 %v6532, %v6531
        %v6561 = vpack.c.bf16 %v6534, %v6533
        %v6562 = vpack.c.bf16 %v6536, %v6535
        %v6563 = vpack.c.bf16 %v6538, %v6537
        %v6564 = vpack.c.bf16 %v6540, %v6539
        %v6589 = vunpack.c.l.b16 %v6541
        %v6590 = vunpack.c.h.b16 %v6541
        %v6591 = vunpack.c.l.b16 %v6542
        %v6592 = vunpack.c.h.b16 %v6542
        %v6593 = vunpack.c.l.b16 %v6543
        %v6594 = vunpack.c.h.b16 %v6543
        %v6595 = vunpack.c.l.b16 %v6544
        %v6596 = vunpack.c.h.b16 %v6544
        %v6597 = vunpack.c.l.b16 %v6545
        %v6598 = vunpack.c.h.b16 %v6545
        %v6599 = vunpack.c.l.b16 %v6546
        %v6600 = vunpack.c.h.b16 %v6546
        %v6601 = vunpack.c.l.b16 %v6547
        %v6602 = vunpack.c.h.b16 %v6547
        %v6603 = vunpack.c.l.b16 %v6548
        %v6604 = vunpack.c.h.b16 %v6548
        %v6605 = vunpack.c.l.b16 %v6549
        %v6606 = vunpack.c.h.b16 %v6549
        %v6607 = vunpack.c.l.b16 %v6550
        %v6608 = vunpack.c.h.b16 %v6550
        %v6609 = vunpack.c.l.b16 %v6551
        %v6610 = vunpack.c.h.b16 %v6551
        %v6611 = vunpack.c.l.b16 %v6552
        %v6612 = vunpack.c.h.b16 %v6552
        %v6613 = vunpack.c.l.b16 %v6553
        %v6614 = vunpack.c.h.b16 %v6553
        %v6615 = vunpack.c.l.b16 %v6554
        %v6616 = vunpack.c.h.b16 %v6554
        %v6617 = vunpack.c.l.b16 %v6555
        %v6618 = vunpack.c.h.b16 %v6555
        %v6619 = vunpack.c.l.b16 %v6556
        %v6620 = vunpack.c.h.b16 %v6556
        %v6621 = vunpack.c.l.b16 %v6557
        %v6622 = vunpack.c.h.b16 %v6557
        %v6623 = vunpack.c.l.b16 %v6558
        %v6624 = vunpack.c.h.b16 %v6558
        %v6625 = vunpack.c.l.b16 %v6559
        %v6626 = vunpack.c.h.b16 %v6559
        %v6627 = vunpack.c.l.b16 %v6560
        %v6628 = vunpack.c.h.b16 %v6560
        %v6629 = vunpack.c.l.b16 %v6561
        %v6630 = vunpack.c.h.b16 %v6561
        %v6631 = vunpack.c.l.b16 %v6562
        %v6632 = vunpack.c.h.b16 %v6562
        %v6633 = vunpack.c.l.b16 %v6563
        %v6634 = vunpack.c.h.b16 %v6563
        %v6635 = vunpack.c.l.b16 %v6564
        %v6636 = vunpack.c.h.b16 %v6564
        %v6637 = vpack.c.b16 %v6589, %v6589
        %v6638 = vpack.c.b16 %v6590, %v6590
        %v6639 = vpack.c.b16 %v6591, %v6591
        %v6640 = vpack.c.b16 %v6592, %v6592
        %v6641 = vpack.c.b16 %v6593, %v6593
        %v6642 = vpack.c.b16 %v6594, %v6594
        %v6643 = vpack.c.b16 %v6595, %v6595
        %v6644 = vpack.c.b16 %v6596, %v6596
        %v6645 = vpack.c.b16 %v6597, %v6597
        %v6646 = vpack.c.b16 %v6598, %v6598
        %v6647 = vpack.c.b16 %v6599, %v6599
        %v6648 = vpack.c.b16 %v6600, %v6600
        %v6649 = vpack.c.b16 %v6601, %v6601
        %v6650 = vpack.c.b16 %v6602, %v6602
        %v6651 = vpack.c.b16 %v6603, %v6603
        %v6652 = vpack.c.b16 %v6604, %v6604
        %v6653 = vpack.c.b16 %v6605, %v6605
        %v6654 = vpack.c.b16 %v6606, %v6606
        %v6655 = vpack.c.b16 %v6607, %v6607
        %v6656 = vpack.c.b16 %v6608, %v6608
        %v6657 = vpack.c.b16 %v6609, %v6609
        %v6658 = vpack.c.b16 %v6610, %v6610
        %v6659 = vpack.c.b16 %v6611, %v6611
        %v6660 = vpack.c.b16 %v6612, %v6612
        %v6661 = vpack.c.b16 %v6613, %v6613
        %v6662 = vpack.c.b16 %v6614, %v6614
        %v6663 = vpack.c.b16 %v6615, %v6615
        %v6664 = vpack.c.b16 %v6616, %v6616
        %v6665 = vpack.c.b16 %v6617, %v6617
        %v6666 = vpack.c.b16 %v6618, %v6618
        %v6667 = vpack.c.b16 %v6619, %v6619
        %v6668 = vpack.c.b16 %v6620, %v6620
        %v6669 = vpack.c.b16 %v6621, %v6621
        %v6670 = vpack.c.b16 %v6622, %v6622
        %v6671 = vpack.c.b16 %v6623, %v6623
        %v6672 = vpack.c.b16 %v6624, %v6624
        %v6673 = vpack.c.b16 %v6625, %v6625
        %v6674 = vpack.c.b16 %v6626, %v6626
        %v6675 = vpack.c.b16 %v6627, %v6627
        %v6676 = vpack.c.b16 %v6628, %v6628
        %v6677 = vpack.c.b16 %v6629, %v6629
        %v6678 = vpack.c.b16 %v6630, %v6630
        %v6679 = vpack.c.b16 %v6631, %v6631
        %v6680 = vpack.c.b16 %v6632, %v6632
        %v6681 = vpack.c.b16 %v6633, %v6633
        %v6682 = vpack.c.b16 %v6634, %v6634
        %v6683 = vpack.c.b16 %v6635, %v6635
        %v6684 = vpack.c.b16 %v6636, %v6636
        %6733 = vst [vmem:[%s204] sm:$0xf] %v6637
        %6734 = vst [vmem:[%s204 + $0x4] sm:$0xf] %v6638
        %6735 = vst [vmem:[%s204 + $0x8] sm:$0xf] %v6639
        %6736 = vst [vmem:[%s204 + $0xc] sm:$0xf] %v6640
        %6737 = vst [vmem:[%s204 + $0x10] sm:$0xf] %v6641
        %6738 = vst [vmem:[%s204 + $0x14] sm:$0xf] %v6642
        %6739 = vst [vmem:[%s204 + $0x18] sm:$0xf] %v6643
        %6740 = vst [vmem:[%s204 + $0x1c] sm:$0xf] %v6644
        %6741 = vst [vmem:[%s204 + $0x20] sm:$0xf] %v6645
        %6742 = vst [vmem:[%s204 + $0x24] sm:$0xf] %v6646
        %6743 = vst [vmem:[%s204 + $0x28] sm:$0xf] %v6647
        %6744 = vst [vmem:[%s204 + $0x2c] sm:$0xf] %v6648
        %6745 = vst [vmem:[%s204 + $0x30] sm:$0xf] %v6649
        %6746 = vst [vmem:[%s204 + $0x34] sm:$0xf] %v6650
        %6747 = vst [vmem:[%s204 + $0x38] sm:$0xf] %v6651
        %6748 = vst [vmem:[%s204 + $0x3c] sm:$0xf] %v6652
        %6749 = vst [vmem:[%s204 + $0x40] sm:$0xf] %v6653
        %6750 = vst [vmem:[%s204 + $0x44] sm:$0xf] %v6654
        %6751 = vst [vmem:[%s204 + $0x48] sm:$0xf] %v6655
        %6752 = vst [vmem:[%s204 + $0x4c] sm:$0xf] %v6656
        %6753 = vst [vmem:[%s204 + $0x50] sm:$0xf] %v6657
        %6754 = vst [vmem:[%s204 + $0x54] sm:$0xf] %v6658
        %6755 = vst [vmem:[%s204 + $0x58] sm:$0xf] %v6659
        %6756 = vst [vmem:[%s204 + $0x5c] sm:$0xf] %v6660
        %6757 = vst [vmem:[%s204 + $0x60] sm:$0xf] %v6661
        %6758 = vst [vmem:[%s204 + $0x64] sm:$0xf] %v6662
        %6759 = vst [vmem:[%s204 + $0x68] sm:$0xf] %v6663
        %6760 = vst [vmem:[%s204 + $0x6c] sm:$0xf] %v6664
        %6761 = vst [vmem:[%s204 + $0x70] sm:$0xf] %v6665
        %6762 = vst [vmem:[%s204 + $0x74] sm:$0xf] %v6666
        %6763 = vst [vmem:[%s204 + $0x78] sm:$0xf] %v6667
        %6764 = vst [vmem:[%s204 + $0x7c] sm:$0xf] %v6668
        %6765 = vst [vmem:[%s204 + $0x80] sm:$0xf] %v6669
        %6766 = vst [vmem:[%s204 + $0x84] sm:$0xf] %v6670
        %6767 = vst [vmem:[%s204 + $0x88] sm:$0xf] %v6671
        %6768 = vst [vmem:[%s204 + $0x8c] sm:$0xf] %v6672
        %6769 = vst [vmem:[%s204 + $0x90] sm:$0xf] %v6673
        %6770 = vst [vmem:[%s204 + $0x94] sm:$0xf] %v6674
        %6771 = vst [vmem:[%s204 + $0x98] sm:$0xf] %v6675
        %6772 = vst [vmem:[%s204 + $0x9c] sm:$0xf] %v6676
        %6773 = vst [vmem:[%s204 + $0xa0] sm:$0xf] %v6677
        %6774 = vst [vmem:[%s204 + $0xa4] sm:$0xf] %v6678
        %6775 = vst [vmem:[%s204 + $0xa8] sm:$0xf] %v6679
        %6776 = vst [vmem:[%s204 + $0xac] sm:$0xf] %v6680
        %6777 = vst [vmem:[%s204 + $0xb0] sm:$0xf] %v6681
        %6778 = vst [vmem:[%s204 + $0xb4] sm:$0xf] %v6682
        %6779 = vst [vmem:[%s204 + $0xb8] sm:$0xf] %v6683
        %6780 = vst [vmem:[%s204 + $0xbc] sm:$0xf] %v6684
        %s6781 = sand.u32 %s98, 1
        %s6782 = scalar_lea.sflag [#allocation5], %s6781
        %s6783 = sand.u32 %s98, 1
        %s6784 = smul.addr %s6783, 192
        %s6785 = scalar_lea.vmem [#allocation8], %s6784
        // Predicated region
        $region41: #{tpu_custom_call.1} parent=31 // pred_check
          %p6786 = pneg %p108
        $region42: #{tpu_custom_call.1} parent=31 // pred_check_branch
          %6788 = sbr.rel (%p6786) target = $region44
        $region43: #{tpu_custom_call.1} parent=31 // pred_region
          %s6790 = ssub.s32 3072, 3072
          %6791 = vsyncadd %s6782, %s6790
          %s6792 = smul.addr %s22, 48
          %s6793 = smul.addr %s6792, 64
          %s6794 = scalar_lea.hbm %s3, %s6793
          %s6795 = sshll.u32 %s6785, 4
          %s6796 = int_to_ptr.vmem [resolvable:$true] %s6795
          %6801 = dma.vmem_to_hbm [thread:$0]  %s6796, 3072, %s6794, %s6782, 64, 64, 4
        $region44: #{tpu_custom_call.1} parent=31 // pred_fallthru
          _
      $region32: #{tpu_custom_call.1} parent=5 // pred_fallthru
        _
      %p6802 = scmp.le.s32.totalorder 2, %s17
      // Predicated region
      $region45: #{tpu_custom_call.1} parent=5 // pred_check
        %p6803 = pneg %p6802
      $region46: #{tpu_custom_call.1} parent=5 // pred_check_branch
        %6805 = sbr.rel (%p6803) target = $region48
      $region47: #{tpu_custom_call.1} parent=5 // pred_region
        %s6806 = ssub.s32 %s17, 2
        // Predicated region
        $region49: #{tpu_custom_call.1} parent=47 // pred_check
          %p6807 = pneg %p114
        $region50: #{tpu_custom_call.1} parent=47 // pred_check_branch
          %6809 = sbr.rel (%p6807) target = $region52
        $region51: #{tpu_custom_call.1} parent=47 // pred_region
          %s6810 = sand.u32 %s99, 1
          %s6811 = scalar_lea.sflag [#allocation5], %s6810
          %s6812 = sand.u32 %s99, 1
          %s6813 = smul.addr %s6812, 192
          %s6814 = scalar_lea.vmem [#allocation8], %s6813
          %6815 = dma.done %s6811, 3072
        $region52: #{tpu_custom_call.1} parent=47 // pred_fallthru
          _
      $region48: #{tpu_custom_call.1} parent=5 // pred_fallthru
        _
    $region6: #{tpu_custom_call.1} parent=1 // loop_footer
      %s21 = sadd.s32 1, %s17
    $region7: #{tpu_custom_call.1} parent=1 // loop_footer_branch
      %16 = sbr.rel target = $region3
    $region8: #{tpu_custom_call.1} parent=1 // loop_exit
      _
    %6816 = vsyncpa [#allocation4], 1
    %s6817 = scalar_lea.sflag [#allocation4], 1
    %6818 = vsyncpa %s6817, 1
    %6819 = vsyncpa [#allocation7], 1
    %6820 = vsyncpa [#allocation5], 1
    %s6821 = scalar_lea.sflag [#allocation5], 1
    %6822 = vsyncpa %s6821, 1

</llo_original>
